<compile_context>
chip_gen: v7x
topology: tpu7x:2x2x1
jax: 0.10.0
libtpu: 0.0.40
codegen_flags: <defaults>
</compile_context>

<pallas_src>
import jax
import jax.numpy as jnp
from jax.experimental import pallas as pl
from jax.experimental.pallas import tpu as pltpu

IMAGE_SIZE = 784     # 28*28 -- kept at true width (full-dim blocks are legal)
H_DIM = 400
Z_DIM = 40

D_H = 512            # 400 -> 4*128 lane-padded hidden width
D_Z = 128            # 40  -> 128   lane-padded latent width
D_MULV = 2 * D_Z     # fused "mu || log_var" output slab


def _round_up(n, m):
    return ((n + m - 1) // m) * m


def _vae_kernel(x_ref, eps_ref,
                w1_ref, b1_ref, w23_ref, b23_ref,
                w4_ref, b4_ref, w5_ref, b5_ref,
                mulv_ref, rec_ref):
    cdt = w1_ref.dtype                                     # compute dtype (bf16/f32)
    x = x_ref[...].astype(cdt)                             # [bt, 784]
    eps = eps_ref[...]                                     # [bt, 128] f32

    # ---- encode: h = tanh(x @ W1 + b1) --------------------------------------
    h = jnp.tanh(jnp.dot(x, w1_ref[...],
                         preferred_element_type=jnp.float32)
                 + b1_ref[...])                            # [bt, 512] f32

    # ---- fused mu / log_var projection --------------------------------------
    mulv = jnp.dot(h.astype(cdt), w23_ref[...],
                   preferred_element_type=jnp.float32) + b23_ref[...]   # [bt, 256]
    mu = mulv[:, :D_Z]                                     # [bt, 128]
    log_var = mulv[:, D_Z:]                                # [bt, 128]

    # ---- reparameterize: z = mu + eps * exp(log_var / 2) ---------------------
    z = mu + eps * jnp.exp(log_var * 0.5)                  # [bt, 128] f32

    # ---- decode ---------------------------------------------------------------
    hd = jnp.tanh(jnp.dot(z.astype(cdt), w4_ref[...],
                          preferred_element_type=jnp.float32)
                  + b4_ref[...])                           # [bt, 512] f32
    logits = jnp.dot(hd.astype(cdt), w5_ref[...],
                     preferred_element_type=jnp.float32) + b5_ref[...]  # [bt, 784]

    mulv_ref[...] = mulv
    # sigmoid(x) == 0.5*tanh(0.5*x) + 0.5 : single EUP push, exact same function.
    rec_ref[...] = (0.5 * jnp.tanh(0.5 * logits) + 0.5).astype(rec_ref.dtype)


def vae_forward(x, eps, params, *, batch_tile=512,
                compute_dtype=jnp.bfloat16, rec_dtype=jnp.bfloat16):
    """Runs the VAE forward. Returns (mu, log_var, reconstruction) at true shapes."""
    B = x.shape[0]
    assert x.shape[1] == IMAGE_SIZE and eps.shape == (B, Z_DIM)

    # Batch tile: big (amortize per-step grid overhead) but capped so the
    # "parallel" batch axis has >= 2 steps whenever two >=8-row tiles fit
    # (so v7x's two TensorCores can split the grid).
    bt = min(batch_tile, _round_up(B, 8))
    if _round_up(B, 8) >= 16:
        bt = min(bt, _round_up(-(-B // 2), 8))
    assert bt % 8 == 0, "batch tile must be a multiple of 8 (sublane constraint)"
    Bp = _round_up(B, bt)
    grid = (Bp // bt,)

    (w1, b1, w2, b2, w3, b3, w4, b4, w5, b5) = params

    def pad2(a, rows, cols):
        return jnp.pad(a, ((0, rows - a.shape[0]), (0, cols - a.shape[1])))

    # Weights: zero-pad only the lane (output) dims; one-time, tiny.
    w1p = pad2(w1, IMAGE_SIZE, D_H).astype(compute_dtype)          # [784, 512]
    b1p = pad2(b1, 1, D_H)                                         # [1, 512] f32

    w23 = jnp.zeros((D_H, D_MULV), jnp.float32)
    w23 = w23.at[:H_DIM, :Z_DIM].set(w2).at[:H_DIM, D_Z:D_Z + Z_DIM].set(w3)
    w23p = w23.astype(compute_dtype)                               # [512, 256]
    b23p = jnp.zeros((1, D_MULV), jnp.float32)
    b23p = b23p.at[:, :Z_DIM].set(b2).at[:, D_Z:D_Z + Z_DIM].set(b3)

    w4p = pad2(w4, D_Z, D_H).astype(compute_dtype)                 # [128, 512]
    b4p = pad2(b4, 1, D_H)                                         # [1, 512]
    w5p = pad2(w5, D_H, IMAGE_SIZE).astype(compute_dtype)          # [512, 784]
    b5p = b5                                                       # [1, 784] f32

    # x / eps: no feature-dim padding or casting of x in the wrapper; the batch
    # dim is padded only when it is not a multiple of the tile.
    xp = x if Bp == B else jnp.pad(x, ((0, Bp - B), (0, 0)))
    epsp = jnp.pad(eps, ((0, Bp - B), (0, D_Z - Z_DIM)))           # tiny, stays f32

    def resident(arr):
        # Constant index_map -> DMA'd once, resident in VMEM across grid steps.
        return pl.BlockSpec(arr.shape, lambda i: (0, 0))

    in_specs = [
        pl.BlockSpec((bt, IMAGE_SIZE), lambda i: (i, 0)),   # x tile (full last dim)
        pl.BlockSpec((bt, D_Z), lambda i: (i, 0)),          # eps tile
        resident(w1p), resident(b1p),
        resident(w23p), resident(b23p),
        resident(w4p), resident(b4p),
        resident(w5p), resident(b5p),
    ]
    out_specs = [
        pl.BlockSpec((bt, D_MULV), lambda i: (i, 0)),       # mu || log_var (f32)
        pl.BlockSpec((bt, IMAGE_SIZE), lambda i: (i, 0)),   # reconstruction (true width)
    ]
    out_shape = (
        jax.ShapeDtypeStruct((Bp, D_MULV), jnp.float32),
        jax.ShapeDtypeStruct((Bp, IMAGE_SIZE), rec_dtype),
    )

    # ---- advisory cost estimate ----------------------------------------------
    flops = 2 * Bp * (IMAGE_SIZE * D_H + D_H * D_MULV + D_Z * D_H + D_H * IMAGE_SIZE)
    transcendentals = Bp * (D_H + D_Z + D_H + IMAGE_SIZE)   # tanh, exp, tanh, "sigmoid"
    operands = (xp, epsp, w1p, b1p, w23p, b23p, w4p, b4p, w5p, b5p)
    bytes_accessed = sum(int(a.size) * a.dtype.itemsize for a in operands)
    bytes_accessed += Bp * D_MULV * 4 + Bp * IMAGE_SIZE * jnp.dtype(rec_dtype).itemsize
    cost = pl.CostEstimate(flops=int(flops),
                           transcendentals=int(transcendentals),
                           bytes_accessed=int(bytes_accessed))

    mulv, rec = pl.pallas_call(
        _vae_kernel,
        out_shape=out_shape,
        grid_spec=pltpu.PrefetchScalarGridSpec(
            num_scalar_prefetch=0,
            grid=grid,
            in_specs=in_specs,
            out_specs=out_specs,
        ),
        compiler_params=pltpu.CompilerParams(
            dimension_semantics=("parallel",),          # batch axis -> megacore split
            vmem_limit_bytes=32 * 1024 * 1024,          # ~16 MiB needed at bt=512 bf16
        ),
        cost_estimate=cost,
    )(xp, epsp, w1p, b1p, w23p, b23p, w4p, b4p, w5p, b5p)

    mu = mulv[:B, :Z_DIM]
    log_var = mulv[:B, D_Z:D_Z + Z_DIM]
    reconst = rec if Bp == B else rec[:B]               # no column slice needed
    return mu, log_var, reconst


def init_params(key):
    """nn.Linear-style init (uniform +-1/sqrt(fan_in)).
    Weights stored as [in, out]; biases as [1, out]."""
    def linear(k, fan_in, fan_out):
        kw, kb = jax.random.split(k)
        bound = 1.0 / jnp.sqrt(fan_in)
        w = jax.random.uniform(kw, (fan_in, fan_out), jnp.float32, -bound, bound)
        b = jax.random.uniform(kb, (1, fan_out), jnp.float32, -bound, bound)
        return w, b

    k1, k2, k3, k4, k5 = jax.random.split(key, 5)
    w1, b1 = linear(k1, IMAGE_SIZE, H_DIM)
    w2, b2 = linear(k2, H_DIM, Z_DIM)
    w3, b3 = linear(k3, H_DIM, Z_DIM)
    w4, b4 = linear(k4, Z_DIM, H_DIM)
    w5, b5 = linear(k5, H_DIM, IMAGE_SIZE)
    return (w1, b1, w2, b2, w3, b3, w4, b4, w5, b5)


def vae_forward_ref(x, eps, params):
    """Pure-JAX f32 reference of the PyTorch forward."""
    (w1, b1, w2, b2, w3, b3, w4, b4, w5, b5) = params
    h = jnp.tanh(x @ w1 + b1)
    mu = h @ w2 + b2
    log_var = h @ w3 + b3
    z = mu + eps * jnp.exp(log_var / 2.0)
    hd = jnp.tanh(z @ w4 + b4)
    rec = jax.nn.sigmoid(hd @ w5 + b5)
    return mu, log_var, rec


if __name__ == "__main__":
    key = jax.random.PRNGKey(0)
    kx1, ke1, kx2, ke2, kparams = jax.random.split(key, 5)
    params = init_params(kparams)

    # --- 1) f32 path: verifies the fused / padded / unpadded-x scheme is exact ---
    B1 = 64                                                    # -> bt=32, grid=(2,)
    x1 = jax.random.uniform(kx1, (B1, IMAGE_SIZE), jnp.float32)
    e1 = jax.random.normal(ke1, (B1, Z_DIM), jnp.float32)
    mu_r1, lv_r1, rec_r1 = vae_forward_ref(x1, e1, params)

    mu32, lv32, rec32 = vae_forward(x1, e1, params,
                                    compute_dtype=jnp.float32,
                                    rec_dtype=jnp.float32)
    jax.block_until_ready((mu32, lv32, rec32))
    assert mu32.shape == (B1, Z_DIM) and lv32.shape == (B1, Z_DIM)
    assert rec32.shape == (B1, IMAGE_SIZE)
    assert jnp.allclose(mu32, mu_r1, atol=1e-3, rtol=1e-3)
    assert jnp.allclose(lv32, lv_r1, atol=1e-3, rtol=1e-3)
    assert jnp.allclose(rec32, rec_r1, atol=1e-3, rtol=1e-3)

    # --- 2) default perf path (bf16 weights + bf16 reconstruction);
    #        ragged batch exercises batch padding and row slicing. -------------
    B2 = 50                                                    # -> bt=32, Bp=64, grid=(2,)
    x2 = jax.random.uniform(kx2, (B2, IMAGE_SIZE), jnp.float32)
    e2 = jax.random.normal(ke2, (B2, Z_DIM), jnp.float32)
    mu_r2, lv_r2, rec_r2 = vae_forward_ref(x2, e2, params)

    mu16, lv16, rec16 = vae_forward(x2, e2, params)
    jax.block_until_ready((mu16, lv16, rec16))
    assert mu16.shape == (B2, Z_DIM) and lv16.shape == (B2, Z_DIM)
    assert rec16.shape == (B2, IMAGE_SIZE)
    assert jnp.allclose(mu16, mu_r2, atol=2e-2, rtol=2e-2)
    assert jnp.allclose(lv16, lv_r2, atol=2e-2, rtol=2e-2)
    assert jnp.allclose(rec16.astype(jnp.float32), rec_r2, atol=2.5e-2, rtol=2.5e-2)

    print("KERNEL_OK")
</pallas_src>

<mosaic_0001>
module attributes {stable_mosaic.version = 11 : i64} {
  func.func @_vae_kernel(%arg0: i32, %arg1: memref<32x784xf32, #tpu.memory_space<vmem>>, %arg2: memref<32x128xf32, #tpu.memory_space<vmem>>, %arg3: memref<784x512xf32, #tpu.memory_space<vmem>>, %arg4: memref<1x512xf32, #tpu.memory_space<vmem>>, %arg5: memref<512x256xf32, #tpu.memory_space<vmem>>, %arg6: memref<1x256xf32, #tpu.memory_space<vmem>>, %arg7: memref<128x512xf32, #tpu.memory_space<vmem>>, %arg8: memref<1x512xf32, #tpu.memory_space<vmem>>, %arg9: memref<512x784xf32, #tpu.memory_space<vmem>>, %arg10: memref<1x784xf32, #tpu.memory_space<vmem>>, %arg11: memref<32x256xf32, #tpu.memory_space<vmem>>, %arg12: memref<32x784xf32, #tpu.memory_space<vmem>>) attributes {dimension_semantics = [#tpu.dimension_semantics<parallel>], iteration_bounds = array<i64: 2>, scalar_prefetch = 0 : i64, scratch_operands = 0 : i64, tpu.core_type = #tpu.core_type<tc>, window_params = [{transform_indices = @transform_0, window_bounds = array<i64: 32, 784>}, {transform_indices = @transform_1, window_bounds = array<i64: 32, 128>}, {pipeline_mode = #tpu.pipeline_mode<synchronous>, transform_indices = @transform_2, window_bounds = array<i64: 784, 512>}, {pipeline_mode = #tpu.pipeline_mode<synchronous>, transform_indices = @transform_3, window_bounds = array<i64: 1, 512>}, {pipeline_mode = #tpu.pipeline_mode<synchronous>, transform_indices = @transform_4, window_bounds = array<i64: 512, 256>}, {pipeline_mode = #tpu.pipeline_mode<synchronous>, transform_indices = @transform_5, window_bounds = array<i64: 1, 256>}, {pipeline_mode = #tpu.pipeline_mode<synchronous>, transform_indices = @transform_6, window_bounds = array<i64: 128, 512>}, {pipeline_mode = #tpu.pipeline_mode<synchronous>, transform_indices = @transform_7, window_bounds = array<i64: 1, 512>}, {pipeline_mode = #tpu.pipeline_mode<synchronous>, transform_indices = @transform_8, window_bounds = array<i64: 512, 784>}, {pipeline_mode = #tpu.pipeline_mode<synchronous>, transform_indices = @transform_9, window_bounds = array<i64: 1, 784>}, {transform_indices = @transform_10, window_bounds = array<i64: 32, 256>}, {transform_indices = @transform_11, window_bounds = array<i64: 32, 784>}]} {
    %c0 = arith.constant 0 : index
    %c0_0 = arith.constant 0 : index
    %0 = vector.load %arg1[%c0, %c0_0] : memref<32x784xf32, #tpu.memory_space<vmem>>, vector<32x784xf32>
    %c0_1 = arith.constant 0 : index
    %c0_2 = arith.constant 0 : index
    %1 = vector.load %arg2[%c0_1, %c0_2] : memref<32x128xf32, #tpu.memory_space<vmem>>, vector<32x128xf32>
    %c0_3 = arith.constant 0 : index
    %c0_4 = arith.constant 0 : index
    %2 = vector.load %arg3[%c0_3, %c0_4] : memref<784x512xf32, #tpu.memory_space<vmem>>, vector<784x512xf32>
    %cst = arith.constant dense<0.000000e+00> : vector<32x512xf32>
    %3 = tpu.matmul %0, %2, %cst {dimension_numbers = #tpu.dot_dimension_numbers<[1], [0], [0], [1], [0, 0, 1, 1], [], []>} : vector<32x784xf32>, vector<784x512xf32>, vector<32x512xf32> -> vector<32x512xf32>
    %c0_5 = arith.constant 0 : index
    %c0_6 = arith.constant 0 : index
    %4 = vector.load %arg4[%c0_5, %c0_6] : memref<1x512xf32, #tpu.memory_space<vmem>>, vector<1x512xf32>
    %5 = vector.broadcast %4 : vector<1x512xf32> to vector<32x512xf32>
    %6 = arith.addf %3, %5 : vector<32x512xf32>
    %7 = math.tanh %6 : vector<32x512xf32>
    %c0_7 = arith.constant 0 : index
    %c0_8 = arith.constant 0 : index
    %8 = vector.load %arg5[%c0_7, %c0_8] : memref<512x256xf32, #tpu.memory_space<vmem>>, vector<512x256xf32>
    %cst_9 = arith.constant dense<0.000000e+00> : vector<32x256xf32>
    %9 = tpu.matmul %7, %8, %cst_9 {dimension_numbers = #tpu.dot_dimension_numbers<[1], [0], [0], [1], [0, 0, 1, 1], [], []>} : vector<32x512xf32>, vector<512x256xf32>, vector<32x256xf32> -> vector<32x256xf32>
    %c0_10 = arith.constant 0 : index
    %c0_11 = arith.constant 0 : index
    %10 = vector.load %arg6[%c0_10, %c0_11] : memref<1x256xf32, #tpu.memory_space<vmem>>, vector<1x256xf32>
    %11 = vector.broadcast %10 : vector<1x256xf32> to vector<32x256xf32>
    %12 = arith.addf %9, %11 : vector<32x256xf32>
    %13 = vector.extract_strided_slice %12 {offsets = [0, 0], sizes = [32, 128], strides = [1, 1]} : vector<32x256xf32> to vector<32x128xf32>
    %14 = vector.extract_strided_slice %12 {offsets = [0, 128], sizes = [32, 128], strides = [1, 1]} : vector<32x256xf32> to vector<32x128xf32>
    %cst_12 = arith.constant 5.000000e-01 : f32
    %15 = vector.broadcast %cst_12 : f32 to vector<32x128xf32>
    %16 = arith.mulf %14, %15 : vector<32x128xf32>
    %17 = math.exp %16 : vector<32x128xf32>
    %18 = arith.mulf %1, %17 : vector<32x128xf32>
    %19 = arith.addf %13, %18 : vector<32x128xf32>
    %c0_13 = arith.constant 0 : index
    %c0_14 = arith.constant 0 : index
    %20 = vector.load %arg7[%c0_13, %c0_14] : memref<128x512xf32, #tpu.memory_space<vmem>>, vector<128x512xf32>
    %cst_15 = arith.constant dense<0.000000e+00> : vector<32x512xf32>
    %21 = tpu.matmul %19, %20, %cst_15 {dimension_numbers = #tpu.dot_dimension_numbers<[1], [0], [0], [1], [0, 0, 1, 1], [], []>} : vector<32x128xf32>, vector<128x512xf32>, vector<32x512xf32> -> vector<32x512xf32>
    %c0_16 = arith.constant 0 : index
    %c0_17 = arith.constant 0 : index
    %22 = vector.load %arg8[%c0_16, %c0_17] : memref<1x512xf32, #tpu.memory_space<vmem>>, vector<1x512xf32>
    %23 = vector.broadcast %22 : vector<1x512xf32> to vector<32x512xf32>
    %24 = arith.addf %21, %23 : vector<32x512xf32>
    %25 = math.tanh %24 : vector<32x512xf32>
    %c0_18 = arith.constant 0 : index
    %c0_19 = arith.constant 0 : index
    %26 = vector.load %arg9[%c0_18, %c0_19] : memref<512x784xf32, #tpu.memory_space<vmem>>, vector<512x784xf32>
    %cst_20 = arith.constant dense<0.000000e+00> : vector<32x784xf32>
    %27 = tpu.matmul %25, %26, %cst_20 {dimension_numbers = #tpu.dot_dimension_numbers<[1], [0], [0], [1], [0, 0, 1, 1], [], []>} : vector<32x512xf32>, vector<512x784xf32>, vector<32x784xf32> -> vector<32x784xf32>
    %c0_21 = arith.constant 0 : index
    %c0_22 = arith.constant 0 : index
    %28 = vector.load %arg10[%c0_21, %c0_22] : memref<1x784xf32, #tpu.memory_space<vmem>>, vector<1x784xf32>
    %29 = vector.broadcast %28 : vector<1x784xf32> to vector<32x784xf32>
    %30 = arith.addf %27, %29 : vector<32x784xf32>
    %c0_23 = arith.constant 0 : index
    %c0_24 = arith.constant 0 : index
    %31 = vector.load %arg11[%c0_23, %c0_24] : memref<32x256xf32, #tpu.memory_space<vmem>>, vector<32x256xf32>
    tpu.vector_store %arg11[%c0_23, %c0_24], %12 {strides = array<i32>} : memref<32x256xf32, #tpu.memory_space<vmem>>, vector<32x256xf32>,
    %cst_25 = arith.constant 5.000000e-01 : f32
    %32 = vector.broadcast %cst_25 : f32 to vector<32x784xf32>
    %33 = arith.mulf %32, %30 : vector<32x784xf32>
    %34 = math.tanh %33 : vector<32x784xf32>
    %cst_26 = arith.constant 5.000000e-01 : f32
    %35 = vector.broadcast %cst_26 : f32 to vector<32x784xf32>
    %36 = arith.mulf %35, %34 : vector<32x784xf32>
    %cst_27 = arith.constant 5.000000e-01 : f32
    %37 = vector.broadcast %cst_27 : f32 to vector<32x784xf32>
    %38 = arith.addf %36, %37 : vector<32x784xf32>
    %c0_28 = arith.constant 0 : index
    %c0_29 = arith.constant 0 : index
    %39 = vector.load %arg12[%c0_28, %c0_29] : memref<32x784xf32, #tpu.memory_space<vmem>>, vector<32x784xf32>
    tpu.vector_store %arg12[%c0_28, %c0_29], %38 {strides = array<i32>} : memref<32x784xf32, #tpu.memory_space<vmem>>, vector<32x784xf32>,
    return
  }
  func.func @transform_0(%arg0: i32) -> (i32, i32) {
    %c0_i32 = arith.constant 0 : i32
    %c0_i32_0 = arith.constant 0 : i32
    return %arg0, %c0_i32 : i32, i32
  }
  func.func @transform_1(%arg0: i32) -> (i32, i32) {
    %c0_i32 = arith.constant 0 : i32
    %c0_i32_0 = arith.constant 0 : i32
    return %arg0, %c0_i32 : i32, i32
  }
  func.func @transform_2(%arg0: i32) -> (i32, i32) {
    %c0_i32 = arith.constant 0 : i32
    %c0_i32_0 = arith.constant 0 : i32
    %c0_i32_1 = arith.constant 0 : i32
    return %c0_i32, %c0_i32_0 : i32, i32
  }
  func.func @transform_3(%arg0: i32) -> (i32, i32) {
    %c0_i32 = arith.constant 0 : i32
    %c0_i32_0 = arith.constant 0 : i32
    %c0_i32_1 = arith.constant 0 : i32
    return %c0_i32, %c0_i32_0 : i32, i32
  }
  func.func @transform_4(%arg0: i32) -> (i32, i32) {
    %c0_i32 = arith.constant 0 : i32
    %c0_i32_0 = arith.constant 0 : i32
    %c0_i32_1 = arith.constant 0 : i32
    return %c0_i32, %c0_i32_0 : i32, i32
  }
  func.func @transform_5(%arg0: i32) -> (i32, i32) {
    %c0_i32 = arith.constant 0 : i32
    %c0_i32_0 = arith.constant 0 : i32
    %c0_i32_1 = arith.constant 0 : i32
    return %c0_i32, %c0_i32_0 : i32, i32
  }
  func.func @transform_6(%arg0: i32) -> (i32, i32) {
    %c0_i32 = arith.constant 0 : i32
    %c0_i32_0 = arith.constant 0 : i32
    %c0_i32_1 = arith.constant 0 : i32
    return %c0_i32, %c0_i32_0 : i32, i32
  }
  func.func @transform_7(%arg0: i32) -> (i32, i32) {
    %c0_i32 = arith.constant 0 : i32
    %c0_i32_0 = arith.constant 0 : i32
    %c0_i32_1 = arith.constant 0 : i32
    return %c0_i32, %c0_i32_0 : i32, i32
  }
  func.func @transform_8(%arg0: i32) -> (i32, i32) {
    %c0_i32 = arith.constant 0 : i32
    %c0_i32_0 = arith.constant 0 : i32
    %c0_i32_1 = arith.constant 0 : i32
    return %c0_i32, %c0_i32_0 : i32, i32
  }
  func.func @transform_9(%arg0: i32) -> (i32, i32) {
    %c0_i32 = arith.constant 0 : i32
    %c0_i32_0 = arith.constant 0 : i32
    %c0_i32_1 = arith.constant 0 : i32
    return %c0_i32, %c0_i32_0 : i32, i32
  }
  func.func @transform_10(%arg0: i32) -> (i32, i32) {
    %c0_i32 = arith.constant 0 : i32
    %c0_i32_0 = arith.constant 0 : i32
    return %arg0, %c0_i32 : i32, i32
  }
  func.func @transform_11(%arg0: i32) -> (i32, i32) {
    %c0_i32 = arith.constant 0 : i32
    %c0_i32_0 = arith.constant 0 : i32
    return %arg0, %c0_i32 : i32, i32
  }
}

</mosaic_0001>

<llo_original>
// kernel: tpu_custom_call.1
$region0: #{tpu_custom_call.1}
  #allocation0 [shape = 'u32[]', space=smem, size = 0x4, offset = 0x4, fixed_abs, tag = 'smem constant byte address 0x4 - core index']
  #allocation1 [shape = 'u32[144,128]{1,0:T(1,128)}', space=vmem, size = 0x12000, scoped, tag = 'internal scratch']
  %s0 = inlined_call_operand.vmem [shape: f32[64,784], index: 0, kind: input, shape index: {}]
  %s1 = inlined_call_operand.vmem [shape: f32[64,128], index: 1, kind: input, shape index: {}]
  %s2 = inlined_call_operand.vmem [shape: f32[784,512], index: 2, kind: input, shape index: {}]
  %s3 = inlined_call_operand.vmem [shape: f32[1,512], index: 3, kind: input, shape index: {}]
  %s4 = inlined_call_operand.vmem [shape: f32[512,256], index: 4, kind: input, shape index: {}]
  %s5 = inlined_call_operand.vmem [shape: f32[1,256], index: 5, kind: input, shape index: {}]
  %s6 = inlined_call_operand.vmem [shape: f32[128,512], index: 6, kind: input, shape index: {}]
  %s7 = inlined_call_operand.vmem [shape: f32[1,512], index: 7, kind: input, shape index: {}]
  %s8 = inlined_call_operand.vmem [shape: f32[512,784], index: 8, kind: input, shape index: {}]
  %s9 = inlined_call_operand.vmem [shape: f32[1,784], index: 9, kind: input, shape index: {}]
  %s10 = inlined_call_operand.hbm [shape: f32[64,256], index: 10, kind: output, shape index: {0}]
  %s11 = inlined_call_operand.hbm [shape: f32[64,784], index: 11, kind: output, shape index: {1}]
  %12 = xla_tuple %s10, %s11
  %s13 = sld [smem:[#allocation0]]
  $region81: #{tpu_custom_call.1} parent=0
    _
  %s15 = ssub.s32 1, %s13
  %s16 = scalar_select 0, %s15, %s13
  $region1: #{tpu_custom_call.1} parent=0
    #allocation2 [shape = 'u8[65536]{0}', space=vmem, size = 0x10000, scoped, tag = 'output window, operand 0']
    #allocation3 [shape = 's32[2]{0}', space=sflag, size = 0x8, scoped, tag = 'scoped memory for tpu_custom_call.1']
    #allocation4 [shape = 'u8[229376]{0}', space=vmem, size = 0x38000, scoped, tag = 'output window, operand 1']
    #allocation5 [shape = 's32[2]{0}', space=sflag, size = 0x8, scoped, tag = 'scoped memory for tpu_custom_call.1']
    %17 = vsyncpa [#allocation3], 0
    %s18 = scalar_lea.sflag [#allocation3], 1
    %19 = vsyncpa %s18, 0
    %20 = vsyncpa [#allocation5], 0
    %s21 = scalar_lea.sflag [#allocation5], 1
    %22 = vsyncpa %s21, 0
    loop: start=0, step=1, limit=4
    $region2: #{tpu_custom_call.1} parent=1 // loop_pre_header
      _
    $region3: #{tpu_custom_call.1} parent=1 // loop_header
      %s24 = sphi 0, %s28
      %p25 = scmp.ge.s32.totalorder %s24, 4
      %s34 = sphi 0, %s36
      %s37 = sphi 0, %s34
      %s38 = sphi 0, %s37
      %s54 = sphi 0, %s38
      %s60 = sphi 0, %s62
      %s63 = sphi 0, %s60
      %s64 = sphi 0, %s63
      %s80 = sphi 0, %s64
      %s84 = sphi 0, %s84
      %s86 = sphi 0, %s84
      %s87 = sphi 0, %s86
      %s101 = sphi 0, %s87
      %s105 = sphi 0, %s105
      %s107 = sphi 0, %s105
      %s108 = sphi 0, %s107
      %s122 = sphi 0, %s108
      %s126 = sphi 0, %s126
      %s128 = sphi 0, %s126
      %s129 = sphi 0, %s128
      %s143 = sphi 0, %s129
      %s147 = sphi 0, %s147
      %s149 = sphi 0, %s147
      %s150 = sphi 0, %s149
      %s164 = sphi 0, %s150
      %s168 = sphi 0, %s168
      %s170 = sphi 0, %s168
      %s171 = sphi 0, %s170
      %s185 = sphi 0, %s171
      %s189 = sphi 0, %s189
      %s191 = sphi 0, %s189
      %s192 = sphi 0, %s191
      %s206 = sphi 0, %s192
      %s210 = sphi 0, %s210
      %s212 = sphi 0, %s210
      %s213 = sphi 0, %s212
      %s227 = sphi 0, %s213
      %s231 = sphi 0, %s231
      %s233 = sphi 0, %s231
      %s234 = sphi 0, %s233
      %s248 = sphi 0, %s234
      %s254 = sphi 0, %s256
      %s257 = sphi 0, %s254
      %s258 = sphi 0, %s257
      %s274 = sphi 0, %s258
      %s280 = sphi 0, %s282
      %s283 = sphi 0, %s280
      %s284 = sphi 0, %s283
      %s300 = sphi 0, %s284
    $region4: #{tpu_custom_call.1} parent=1 // loop_header_branch
      %27 = sbr.rel (%p25) target = $region8
    $region5: #{tpu_custom_call.1} parent=1 // loop_body
      %s29 = ssub.s32 %s24, 1
      %s30 = ssub.s32 %s24, 2
      %s31 = sadd.s32 %s24, 1
      %s32 = ssub.s32 %s24, %s31
      %p33 = scmp.eq.s32.totalorder %s32, 0
      %s35 = sadd.s32 %s34, 1
      %s36 = scalar_select %p33, %s34, %s35
      %p39 = pneg %p33
      %p40 = scmp.eq.s32.totalorder %s24, 1
      %p41 = por %p39, %p40
      %p42 = scmp.ne.s32.totalorder %s34, %s37
      %p43 = scmp.eq.s32.totalorder %s24, 0
      %p44 = por %p42, %p43
      %p45 = scmp.ne.s32.totalorder %s34, %s37
      %p46 = scmp.eq.s32.totalorder %s29, 1
      %p47 = por %p45, %p46
      %p48 = scmp.ne.s32.totalorder %s37, %s38
      %p49 = scmp.eq.s32.totalorder %s29, 0
      %p50 = por %p48, %p49
      %p51 = scmp.ne.s32.totalorder %s37, %s38
      %p52 = scmp.eq.s32.totalorder %s30, 1
      %p53 = por %p51, %p52
      %p55 = scmp.ne.s32.totalorder %s38, %s54
      %p56 = scmp.eq.s32.totalorder %s30, 0
      %p57 = por %p55, %p56
      %s58 = ssub.s32 %s24, %s31
      %p59 = scmp.eq.s32.totalorder %s58, 0
      %s61 = sadd.s32 %s60, 1
      %s62 = scalar_select %p59, %s60, %s61
      %p65 = pneg %p59
      %p66 = scmp.eq.s32.totalorder %s24, 1
      %p67 = por %p65, %p66
      %p68 = scmp.ne.s32.totalorder %s60, %s63
      %p69 = scmp.eq.s32.totalorder %s24, 0
      %p70 = por %p68, %p69
      %p71 = scmp.ne.s32.totalorder %s60, %s63
      %p72 = scmp.eq.s32.totalorder %s29, 1
      %p73 = por %p71, %p72
      %p74 = scmp.ne.s32.totalorder %s63, %s64
      %p75 = scmp.eq.s32.totalorder %s29, 0
      %p76 = por %p74, %p75
      %p77 = scmp.ne.s32.totalorder %s63, %s64
      %p78 = scmp.eq.s32.totalorder %s30, 1
      %p79 = por %p77, %p78
      %p81 = scmp.ne.s32.totalorder %s64, %s80
      %p82 = scmp.eq.s32.totalorder %s30, 0
      %p83 = por %p81, %p82
      %s85 = sadd.s32 %s84, 1
      %p88 = scmp.eq.s32.totalorder %s24, 1
      %p89 = scmp.ne.s32.totalorder %s84, %s86
      %p90 = scmp.eq.s32.totalorder %s24, 0
      %p91 = por %p89, %p90
      %p92 = scmp.ne.s32.totalorder %s84, %s86
      %p93 = scmp.eq.s32.totalorder %s29, 1
      %p94 = por %p92, %p93
      %p95 = scmp.ne.s32.totalorder %s86, %s87
      %p96 = scmp.eq.s32.totalorder %s29, 0
      %p97 = por %p95, %p96
      %p98 = scmp.ne.s32.totalorder %s86, %s87
      %p99 = scmp.eq.s32.totalorder %s30, 1
      %p100 = por %p98, %p99
      %p102 = scmp.ne.s32.totalorder %s87, %s101
      %p103 = scmp.eq.s32.totalorder %s30, 0
      %p104 = por %p102, %p103
      %s106 = sadd.s32 %s105, 1
      %p109 = scmp.eq.s32.totalorder %s24, 1
      %p110 = scmp.ne.s32.totalorder %s105, %s107
      %p111 = scmp.eq.s32.totalorder %s24, 0
      %p112 = por %p110, %p111
      %p113 = scmp.ne.s32.totalorder %s105, %s107
      %p114 = scmp.eq.s32.totalorder %s29, 1
      %p115 = por %p113, %p114
      %p116 = scmp.ne.s32.totalorder %s107, %s108
      %p117 = scmp.eq.s32.totalorder %s29, 0
      %p118 = por %p116, %p117
      %p119 = scmp.ne.s32.totalorder %s107, %s108
      %p120 = scmp.eq.s32.totalorder %s30, 1
      %p121 = por %p119, %p120
      %p123 = scmp.ne.s32.totalorder %s108, %s122
      %p124 = scmp.eq.s32.totalorder %s30, 0
      %p125 = por %p123, %p124
      %s127 = sadd.s32 %s126, 1
      %p130 = scmp.eq.s32.totalorder %s24, 1
      %p131 = scmp.ne.s32.totalorder %s126, %s128
      %p132 = scmp.eq.s32.totalorder %s24, 0
      %p133 = por %p131, %p132
      %p134 = scmp.ne.s32.totalorder %s126, %s128
      %p135 = scmp.eq.s32.totalorder %s29, 1
      %p136 = por %p134, %p135
      %p137 = scmp.ne.s32.totalorder %s128, %s129
      %p138 = scmp.eq.s32.totalorder %s29, 0
      %p139 = por %p137, %p138
      %p140 = scmp.ne.s32.totalorder %s128, %s129
      %p141 = scmp.eq.s32.totalorder %s30, 1
      %p142 = por %p140, %p141
      %p144 = scmp.ne.s32.totalorder %s129, %s143
      %p145 = scmp.eq.s32.totalorder %s30, 0
      %p146 = por %p144, %p145
      %s148 = sadd.s32 %s147, 1
      %p151 = scmp.eq.s32.totalorder %s24, 1
      %p152 = scmp.ne.s32.totalorder %s147, %s149
      %p153 = scmp.eq.s32.totalorder %s24, 0
      %p154 = por %p152, %p153
      %p155 = scmp.ne.s32.totalorder %s147, %s149
      %p156 = scmp.eq.s32.totalorder %s29, 1
      %p157 = por %p155, %p156
      %p158 = scmp.ne.s32.totalorder %s149, %s150
      %p159 = scmp.eq.s32.totalorder %s29, 0
      %p160 = por %p158, %p159
      %p161 = scmp.ne.s32.totalorder %s149, %s150
      %p162 = scmp.eq.s32.totalorder %s30, 1
      %p163 = por %p161, %p162
      %p165 = scmp.ne.s32.totalorder %s150, %s164
      %p166 = scmp.eq.s32.totalorder %s30, 0
      %p167 = por %p165, %p166
      %s169 = sadd.s32 %s168, 1
      %p172 = scmp.eq.s32.totalorder %s24, 1
      %p173 = scmp.ne.s32.totalorder %s168, %s170
      %p174 = scmp.eq.s32.totalorder %s24, 0
      %p175 = por %p173, %p174
      %p176 = scmp.ne.s32.totalorder %s168, %s170
      %p177 = scmp.eq.s32.totalorder %s29, 1
      %p178 = por %p176, %p177
      %p179 = scmp.ne.s32.totalorder %s170, %s171
      %p180 = scmp.eq.s32.totalorder %s29, 0
      %p181 = por %p179, %p180
      %p182 = scmp.ne.s32.totalorder %s170, %s171
      %p183 = scmp.eq.s32.totalorder %s30, 1
      %p184 = por %p182, %p183
      %p186 = scmp.ne.s32.totalorder %s171, %s185
      %p187 = scmp.eq.s32.totalorder %s30, 0
      %p188 = por %p186, %p187
      %s190 = sadd.s32 %s189, 1
      %p193 = scmp.eq.s32.totalorder %s24, 1
      %p194 = scmp.ne.s32.totalorder %s189, %s191
      %p195 = scmp.eq.s32.totalorder %s24, 0
      %p196 = por %p194, %p195
      %p197 = scmp.ne.s32.totalorder %s189, %s191
      %p198 = scmp.eq.s32.totalorder %s29, 1
      %p199 = por %p197, %p198
      %p200 = scmp.ne.s32.totalorder %s191, %s192
      %p201 = scmp.eq.s32.totalorder %s29, 0
      %p202 = por %p200, %p201
      %p203 = scmp.ne.s32.totalorder %s191, %s192
      %p204 = scmp.eq.s32.totalorder %s30, 1
      %p205 = por %p203, %p204
      %p207 = scmp.ne.s32.totalorder %s192, %s206
      %p208 = scmp.eq.s32.totalorder %s30, 0
      %p209 = por %p207, %p208
      %s211 = sadd.s32 %s210, 1
      %p214 = scmp.eq.s32.totalorder %s24, 1
      %p215 = scmp.ne.s32.totalorder %s210, %s212
      %p216 = scmp.eq.s32.totalorder %s24, 0
      %p217 = por %p215, %p216
      %p218 = scmp.ne.s32.totalorder %s210, %s212
      %p219 = scmp.eq.s32.totalorder %s29, 1
      %p220 = por %p218, %p219
      %p221 = scmp.ne.s32.totalorder %s212, %s213
      %p222 = scmp.eq.s32.totalorder %s29, 0
      %p223 = por %p221, %p222
      %p224 = scmp.ne.s32.totalorder %s212, %s213
      %p225 = scmp.eq.s32.totalorder %s30, 1
      %p226 = por %p224, %p225
      %p228 = scmp.ne.s32.totalorder %s213, %s227
      %p229 = scmp.eq.s32.totalorder %s30, 0
      %p230 = por %p228, %p229
      %s232 = sadd.s32 %s231, 1
      %p235 = scmp.eq.s32.totalorder %s24, 1
      %p236 = scmp.ne.s32.totalorder %s231, %s233
      %p237 = scmp.eq.s32.totalorder %s24, 0
      %p238 = por %p236, %p237
      %p239 = scmp.ne.s32.totalorder %s231, %s233
      %p240 = scmp.eq.s32.totalorder %s29, 1
      %p241 = por %p239, %p240
      %p242 = scmp.ne.s32.totalorder %s233, %s234
      %p243 = scmp.eq.s32.totalorder %s29, 0
      %p244 = por %p242, %p243
      %p245 = scmp.ne.s32.totalorder %s233, %s234
      %p246 = scmp.eq.s32.totalorder %s30, 1
      %p247 = por %p245, %p246
      %p249 = scmp.ne.s32.totalorder %s234, %s248
      %p250 = scmp.eq.s32.totalorder %s30, 0
      %p251 = por %p249, %p250
      %s252 = ssub.s32 %s24, %s31
      %p253 = scmp.eq.s32.totalorder %s252, 0
      %s255 = sadd.s32 %s254, 1
      %s256 = scalar_select %p253, %s254, %s255
      %p259 = pneg %p253
      %p260 = scmp.eq.s32.totalorder %s24, 1
      %p261 = por %p259, %p260
      %p262 = scmp.ne.s32.totalorder %s254, %s257
      %p263 = scmp.eq.s32.totalorder %s24, 0
      %p264 = por %p262, %p263
      %p265 = scmp.ne.s32.totalorder %s254, %s257
      %p266 = scmp.eq.s32.totalorder %s29, 1
      %p267 = por %p265, %p266
      %p268 = scmp.ne.s32.totalorder %s257, %s258
      %p269 = scmp.eq.s32.totalorder %s29, 0
      %p270 = por %p268, %p269
      %p271 = scmp.ne.s32.totalorder %s257, %s258
      %p272 = scmp.eq.s32.totalorder %s30, 1
      %p273 = por %p271, %p272
      %p275 = scmp.ne.s32.totalorder %s258, %s274
      %p276 = scmp.eq.s32.totalorder %s30, 0
      %p277 = por %p275, %p276
      %s278 = ssub.s32 %s24, %s31
      %p279 = scmp.eq.s32.totalorder %s278, 0
      %s281 = sadd.s32 %s280, 1
      %s282 = scalar_select %p279, %s280, %s281
      %p285 = pneg %p279
      %p286 = scmp.eq.s32.totalorder %s24, 1
      %p287 = por %p285, %p286
      %p288 = scmp.ne.s32.totalorder %s280, %s283
      %p289 = scmp.eq.s32.totalorder %s24, 0
      %p290 = por %p288, %p289
      %p291 = scmp.ne.s32.totalorder %s280, %s283
      %p292 = scmp.eq.s32.totalorder %s29, 1
      %p293 = por %p291, %p292
      %p294 = scmp.ne.s32.totalorder %s283, %s284
      %p295 = scmp.eq.s32.totalorder %s29, 0
      %p296 = por %p294, %p295
      %p297 = scmp.ne.s32.totalorder %s283, %s284
      %p298 = scmp.eq.s32.totalorder %s30, 1
      %p299 = por %p297, %p298
      %p301 = scmp.ne.s32.totalorder %s284, %s300
      %p302 = scmp.eq.s32.totalorder %s30, 0
      %p303 = por %p301, %p302
      %p304 = scmp.le.s32.totalorder 1, %s24
      %p305 = scmp.lt.s32.totalorder %s24, 3
      %p306 = pnand %p304, %p305
      %p307 = pneg %p306
      // Predicated region
      $region9: #{tpu_custom_call.1} parent=5 // pred_check
        _
      $region10: #{tpu_custom_call.1} parent=5 // pred_check_branch
        %309 = sbr.rel (%p306) target = $region12
      $region11: #{tpu_custom_call.1} parent=5 // pred_region
        %s310 = ssub.s32 %s24, 1
        // Predicated region
        $region13: #{tpu_custom_call.1} parent=11 // pred_check
          %p311 = pneg %p97
        $region14: #{tpu_custom_call.1} parent=11 // pred_check_branch
          %313 = sbr.rel (%p311) target = $region16
        $region15: #{tpu_custom_call.1} parent=11 // pred_region
          _
        $region16: #{tpu_custom_call.1} parent=11 // pred_fallthru
          _
        // Predicated region
        $region17: #{tpu_custom_call.1} parent=11 // pred_check
          %p314 = pneg %p118
        $region18: #{tpu_custom_call.1} parent=11 // pred_check_branch
          %316 = sbr.rel (%p314) target = $region20
        $region19: #{tpu_custom_call.1} parent=11 // pred_region
          _
        $region20: #{tpu_custom_call.1} parent=11 // pred_fallthru
          _
        // Predicated region
        $region21: #{tpu_custom_call.1} parent=11 // pred_check
          %p317 = pneg %p139
        $region22: #{tpu_custom_call.1} parent=11 // pred_check_branch
          %319 = sbr.rel (%p317) target = $region24
        $region23: #{tpu_custom_call.1} parent=11 // pred_region
          _
        $region24: #{tpu_custom_call.1} parent=11 // pred_fallthru
          _
        // Predicated region
        $region25: #{tpu_custom_call.1} parent=11 // pred_check
          %p320 = pneg %p160
        $region26: #{tpu_custom_call.1} parent=11 // pred_check_branch
          %322 = sbr.rel (%p320) target = $region28
        $region27: #{tpu_custom_call.1} parent=11 // pred_region
          _
        $region28: #{tpu_custom_call.1} parent=11 // pred_fallthru
          _
        // Predicated region
        $region29: #{tpu_custom_call.1} parent=11 // pred_check
          %p323 = pneg %p181
        $region30: #{tpu_custom_call.1} parent=11 // pred_check_branch
          %325 = sbr.rel (%p323) target = $region32
        $region31: #{tpu_custom_call.1} parent=11 // pred_region
          _
        $region32: #{tpu_custom_call.1} parent=11 // pred_fallthru
          _
        // Predicated region
        $region33: #{tpu_custom_call.1} parent=11 // pred_check
          %p326 = pneg %p202
        $region34: #{tpu_custom_call.1} parent=11 // pred_check_branch
          %328 = sbr.rel (%p326) target = $region36
        $region35: #{tpu_custom_call.1} parent=11 // pred_region
          _
        $region36: #{tpu_custom_call.1} parent=11 // pred_fallthru
          _
        // Predicated region
        $region37: #{tpu_custom_call.1} parent=11 // pred_check
          %p329 = pneg %p223
        $region38: #{tpu_custom_call.1} parent=11 // pred_check_branch
          %331 = sbr.rel (%p329) target = $region40
        $region39: #{tpu_custom_call.1} parent=11 // pred_region
          _
        $region40: #{tpu_custom_call.1} parent=11 // pred_fallthru
          _
        // Predicated region
        $region41: #{tpu_custom_call.1} parent=11 // pred_check
          %p332 = pneg %p244
        $region42: #{tpu_custom_call.1} parent=11 // pred_check_branch
          %334 = sbr.rel (%p332) target = $region44
        $region43: #{tpu_custom_call.1} parent=11 // pred_region
          _
        $region44: #{tpu_custom_call.1} parent=11 // pred_fallthru
          _
      $region12: #{tpu_custom_call.1} parent=5 // pred_fallthru
        _
      %p335 = scmp.lt.s32.totalorder %s24, 2
      // Predicated region
      $region45: #{tpu_custom_call.1} parent=5 // pred_check
        %p336 = pneg %p335
      $region46: #{tpu_custom_call.1} parent=5 // pred_check_branch
        %338 = sbr.rel (%p336) target = $region48
      $region47: #{tpu_custom_call.1} parent=5 // pred_region
        // Predicated region
        $region49: #{tpu_custom_call.1} parent=47 // pred_check
          %p339 = pneg %p44
        $region50: #{tpu_custom_call.1} parent=47 // pred_check_branch
          %341 = sbr.rel (%p339) target = $region52
        $region51: #{tpu_custom_call.1} parent=47 // pred_region
          %s342 = smul.u32 4, %s24
          %p343 = scmp.lt.s32.totalorder %s342, 7
          %s344 = scalar_select %p343, %s342, 7
          %s345 = smul.addr %s344, 7
          %s346 = smul.addr %s345, 8
          %s347 = scalar_lea.vmem %s0, %s346
          %s348 = smul.u32 4, %s24
        $region52: #{tpu_custom_call.1} parent=47 // pred_fallthru
          _
        // Predicated region
        $region53: #{tpu_custom_call.1} parent=47 // pred_check
          %p349 = pneg %p70
        $region54: #{tpu_custom_call.1} parent=47 // pred_check_branch
          %351 = sbr.rel (%p349) target = $region56
        $region55: #{tpu_custom_call.1} parent=47 // pred_region
          %s352 = smul.u32 4, %s24
          %p353 = scmp.lt.s32.totalorder %s352, 7
          %s354 = scalar_select %p353, %s352, 7
          %s355 = smul.addr %s354, 8
          %s356 = scalar_lea.vmem %s1, %s355
          %s357 = smul.u32 4, %s24
        $region56: #{tpu_custom_call.1} parent=47 // pred_fallthru
          _
      $region48: #{tpu_custom_call.1} parent=5 // pred_fallthru
        _
      %p358 = scmp.le.s32.totalorder 1, %s24
      %p359 = scmp.lt.s32.totalorder %s24, 3
      %p360 = pnand %p358, %p359
      %p361 = pneg %p360
      // Predicated region
      $region57: #{tpu_custom_call.1} parent=5 // pred_check
        _
      $region58: #{tpu_custom_call.1} parent=5 // pred_check_branch
        %363 = sbr.rel (%p360) target = $region60
      $region59: #{tpu_custom_call.1} parent=5 // pred_region
        %s364 = ssub.s32 %s24, 1
        %s365 = smul.u32 4, %s29
        %p366 = scmp.lt.s32.totalorder %s365, 7
        %s367 = scalar_select %p366, %s365, 7
        %s368 = smul.addr %s367, 7
        %s369 = smul.addr %s368, 8
        %s370 = scalar_lea.vmem %s0, %s369
        %p371 = pneg %p50
        %p372 = pneg %p47
        %s373 = smul.u32 4, %s29
        %p374 = scmp.lt.s32.totalorder %s373, 7
        %s375 = scalar_select %p374, %s373, 7
        %s376 = smul.addr %s375, 8
        %s377 = scalar_lea.vmem %s1, %s376
        %p378 = pneg %p76
        %p379 = pneg %p73
        %p380 = pneg %p97
        %p381 = pneg %p94
        %p382 = pneg %p118
        %p383 = pneg %p115
        %p384 = pneg %p139
        %p385 = pneg %p136
        %p386 = pneg %p160
        %p387 = pneg %p157
        %p388 = pneg %p181
        %p389 = pneg %p178
        %p390 = pneg %p202
        %p391 = pneg %p199
        %p392 = pneg %p223
        %p393 = pneg %p220
        %p394 = pneg %p244
        %p395 = pneg %p241
        %p396 = pneg %p270
        %p397 = pneg %p267
        %s398 = sand.u32 %s257, 1
        %s399 = scalar_lea.sflag [#allocation3], %s398
        %s400 = sand.u32 %s257, 1
        %s401 = smul.addr %s400, 64
        %s402 = scalar_lea.vmem [#allocation2], %s401
        %p403 = pneg %p296
        %p404 = pneg %p293
        %s405 = sand.u32 %s283, 1
        %s406 = scalar_lea.sflag [#allocation5], %s405
        %s407 = sand.u32 %s283, 1
        %s408 = smul.addr %s407, 224
        %s409 = scalar_lea.vmem [#allocation4], %s408
        %s410 = smul.u32 4, %s29
        %p411 = scmp.lt.s32.totalorder %s410, 7
        %s412 = scalar_select %p411, %s410, 7
        %s413 = smul.addr %s412, 7
        %s414 = smul.addr %s413, 8
        %s415 = scalar_lea.vmem %s0, %s414
        %s416 = smul.u32 4, %s29
        %s417 = smul.u32 4, %s29
        %p418 = scmp.lt.s32.totalorder %s417, 7
        %s419 = scalar_select %p418, %s417, 7
        %s420 = smul.addr %s419, 8
        %s421 = scalar_lea.vmem %s1, %s420
        %s422 = smul.u32 4, %s29
        %s423 = smul.u32 4, %s29
        %s424 = smul.u32 4, %s29
        %v425 = vld [vmem:[%s415] sm:$0xff]
        %v426 = vld [vmem:[%s415 + $0x8] sm:$0xff]
        %v427 = vld [vmem:[%s415 + $0x10] sm:$0xff]
        %v428 = vld [vmem:[%s415 + $0x18] sm:$0xff]
        %v429 = vld [vmem:[%s415 + $0x20] sm:$0xff]
        %v430 = vld [vmem:[%s415 + $0x28] sm:$0xff]
        %v431 = vld [vmem:[%s415 + $0x30] sm:$0xff]
        %v432 = vld [vmem:[%s415 + $0x38] sm:$0xff]
        %v433 = vld [vmem:[%s415 + $0x40] sm:$0xff]
        %v434 = vld [vmem:[%s415 + $0x48] sm:$0xff]
        %v435 = vld [vmem:[%s415 + $0x50] sm:$0xff]
        %v436 = vld [vmem:[%s415 + $0x58] sm:$0xff]
        %v437 = vld [vmem:[%s415 + $0x60] sm:$0xff]
        %v438 = vld [vmem:[%s415 + $0x68] sm:$0xff]
        %v439 = vld [vmem:[%s415 + $0x70] sm:$0xff]
        %v440 = vld [vmem:[%s415 + $0x78] sm:$0xff]
        %v441 = vld [vmem:[%s415 + $0x80] sm:$0xff]
        %v442 = vld [vmem:[%s415 + $0x88] sm:$0xff]
        %v443 = vld [vmem:[%s415 + $0x90] sm:$0xff]
        %v444 = vld [vmem:[%s415 + $0x98] sm:$0xff]
        %v445 = vld [vmem:[%s415 + $0xa0] sm:$0xff]
        %v446 = vld [vmem:[%s415 + $0xa8] sm:$0xff]
        %v447 = vld [vmem:[%s415 + $0xb0] sm:$0xff]
        %v448 = vld [vmem:[%s415 + $0xb8] sm:$0xff]
        %v449 = vld [vmem:[%s415 + $0xc0] sm:$0xff]
        %v450 = vld [vmem:[%s415 + $0xc8] sm:$0xff]
        %v451 = vld [vmem:[%s415 + $0xd0] sm:$0xff]
        %v452 = vld [vmem:[%s415 + $0xd8] sm:$0xff]
        %v453 = vld [vmem:[%s421] sm:$0xff]
        %v454 = vld [vmem:[%s421 + $0x8] sm:$0xff]
        %v455 = vld [vmem:[%s421 + $0x10] sm:$0xff]
        %v456 = vld [vmem:[%s421 + $0x18] sm:$0xff]
        %v457 = vld [vmem:[%s2] sm:$0xff]
        %v458 = vld [vmem:[%s2 + $0x8] sm:$0xff]
        %v459 = vld [vmem:[%s2 + $0x10] sm:$0xff]
        %v460 = vld [vmem:[%s2 + $0x18] sm:$0xff]
        %v461 = vld [vmem:[%s2 + $0x20] sm:$0xff]
        %v462 = vld [vmem:[%s2 + $0x28] sm:$0xff]
        %v463 = vld [vmem:[%s2 + $0x30] sm:$0xff]
        %v464 = vld [vmem:[%s2 + $0x38] sm:$0xff]
        %v465 = vld [vmem:[%s2 + $0x40] sm:$0xff]
        %v466 = vld [vmem:[%s2 + $0x48] sm:$0xff]
        %v467 = vld [vmem:[%s2 + $0x50] sm:$0xff]
        %v468 = vld [vmem:[%s2 + $0x58] sm:$0xff]
        %v469 = vld [vmem:[%s2 + $0x60] sm:$0xff]
        %v470 = vld [vmem:[%s2 + $0x68] sm:$0xff]
        %v471 = vld [vmem:[%s2 + $0x70] sm:$0xff]
        %v472 = vld [vmem:[%s2 + $0x78] sm:$0xff]
        %v473 = vld [vmem:[%s2 + $0x80] sm:$0xff]
        %v474 = vld [vmem:[%s2 + $0x88] sm:$0xff]
        %v475 = vld [vmem:[%s2 + $0x90] sm:$0xff]
        %v476 = vld [vmem:[%s2 + $0x98] sm:$0xff]
        %v477 = vld [vmem:[%s2 + $0xa0] sm:$0xff]
        %v478 = vld [vmem:[%s2 + $0xa8] sm:$0xff]
        %v479 = vld [vmem:[%s2 + $0xb0] sm:$0xff]
        %v480 = vld [vmem:[%s2 + $0xb8] sm:$0xff]
        %v481 = vld [vmem:[%s2 + $0xc0] sm:$0xff]
        %v482 = vld [vmem:[%s2 + $0xc8] sm:$0xff]
        %v483 = vld [vmem:[%s2 + $0xd0] sm:$0xff]
        %v484 = vld [vmem:[%s2 + $0xd8] sm:$0xff]
        %v485 = vld [vmem:[%s2 + $0xe0] sm:$0xff]
        %v486 = vld [vmem:[%s2 + $0xe8] sm:$0xff]
        %v487 = vld [vmem:[%s2 + $0xf0] sm:$0xff]
        %v488 = vld [vmem:[%s2 + $0xf8] sm:$0xff]
        %v489 = vld [vmem:[%s2 + $0x100] sm:$0xff]
        %v490 = vld [vmem:[%s2 + $0x108] sm:$0xff]
        %v491 = vld [vmem:[%s2 + $0x110] sm:$0xff]
        %v492 = vld [vmem:[%s2 + $0x118] sm:$0xff]
        %v493 = vld [vmem:[%s2 + $0x120] sm:$0xff]
        %v494 = vld [vmem:[%s2 + $0x128] sm:$0xff]
        %v495 = vld [vmem:[%s2 + $0x130] sm:$0xff]
        %v496 = vld [vmem:[%s2 + $0x138] sm:$0xff]
        %v497 = vld [vmem:[%s2 + $0x140] sm:$0xff]
        %v498 = vld [vmem:[%s2 + $0x148] sm:$0xff]
        %v499 = vld [vmem:[%s2 + $0x150] sm:$0xff]
        %v500 = vld [vmem:[%s2 + $0x158] sm:$0xff]
        %v501 = vld [vmem:[%s2 + $0x160] sm:$0xff]
        %v502 = vld [vmem:[%s2 + $0x168] sm:$0xff]
        %v503 = vld [vmem:[%s2 + $0x170] sm:$0xff]
        %v504 = vld [vmem:[%s2 + $0x178] sm:$0xff]
        %v505 = vld [vmem:[%s2 + $0x180] sm:$0xff]
        %v506 = vld [vmem:[%s2 + $0x188] sm:$0xff]
        %v507 = vld [vmem:[%s2 + $0x190] sm:$0xff]
        %v508 = vld [vmem:[%s2 + $0x198] sm:$0xff]
        %v509 = vld [vmem:[%s2 + $0x1a0] sm:$0xff]
        %v510 = vld [vmem:[%s2 + $0x1a8] sm:$0xff]
        %v511 = vld [vmem:[%s2 + $0x1b0] sm:$0xff]
        %v512 = vld [vmem:[%s2 + $0x1b8] sm:$0xff]
        %v513 = vld [vmem:[%s2 + $0x1c0] sm:$0xff]
        %v514 = vld [vmem:[%s2 + $0x1c8] sm:$0xff]
        %v515 = vld [vmem:[%s2 + $0x1d0] sm:$0xff]
        %v516 = vld [vmem:[%s2 + $0x1d8] sm:$0xff]
        %v517 = vld [vmem:[%s2 + $0x1e0] sm:$0xff]
        %v518 = vld [vmem:[%s2 + $0x1e8] sm:$0xff]
        %v519 = vld [vmem:[%s2 + $0x1f0] sm:$0xff]
        %v520 = vld [vmem:[%s2 + $0x1f8] sm:$0xff]
        %v521 = vld [vmem:[%s2 + $0x200] sm:$0xff]
        %v522 = vld [vmem:[%s2 + $0x208] sm:$0xff]
        %v523 = vld [vmem:[%s2 + $0x210] sm:$0xff]
        %v524 = vld [vmem:[%s2 + $0x218] sm:$0xff]
        %v525 = vld [vmem:[%s2 + $0x220] sm:$0xff]
        %v526 = vld [vmem:[%s2 + $0x228] sm:$0xff]
        %v527 = vld [vmem:[%s2 + $0x230] sm:$0xff]
        %v528 = vld [vmem:[%s2 + $0x238] sm:$0xff]
        %v529 = vld [vmem:[%s2 + $0x240] sm:$0xff]
        %v530 = vld [vmem:[%s2 + $0x248] sm:$0xff]
        %v531 = vld [vmem:[%s2 + $0x250] sm:$0xff]
        %v532 = vld [vmem:[%s2 + $0x258] sm:$0xff]
        %v533 = vld [vmem:[%s2 + $0x260] sm:$0xff]
        %v534 = vld [vmem:[%s2 + $0x268] sm:$0xff]
        %v535 = vld [vmem:[%s2 + $0x270] sm:$0xff]
        %v536 = vld [vmem:[%s2 + $0x278] sm:$0xff]
        %v537 = vld [vmem:[%s2 + $0x280] sm:$0xff]
        %v538 = vld [vmem:[%s2 + $0x288] sm:$0xff]
        %v539 = vld [vmem:[%s2 + $0x290] sm:$0xff]
        %v540 = vld [vmem:[%s2 + $0x298] sm:$0xff]
        %v541 = vld [vmem:[%s2 + $0x2a0] sm:$0xff]
        %v542 = vld [vmem:[%s2 + $0x2a8] sm:$0xff]
        %v543 = vld [vmem:[%s2 + $0x2b0] sm:$0xff]
        %v544 = vld [vmem:[%s2 + $0x2b8] sm:$0xff]
        %v545 = vld [vmem:[%s2 + $0x2c0] sm:$0xff]
        %v546 = vld [vmem:[%s2 + $0x2c8] sm:$0xff]
        %v547 = vld [vmem:[%s2 + $0x2d0] sm:$0xff]
        %v548 = vld [vmem:[%s2 + $0x2d8] sm:$0xff]
        %v549 = vld [vmem:[%s2 + $0x2e0] sm:$0xff]
        %v550 = vld [vmem:[%s2 + $0x2e8] sm:$0xff]
        %v551 = vld [vmem:[%s2 + $0x2f0] sm:$0xff]
        %v552 = vld [vmem:[%s2 + $0x2f8] sm:$0xff]
        %v553 = vld [vmem:[%s2 + $0x300] sm:$0xff]
        %v554 = vld [vmem:[%s2 + $0x308] sm:$0xff]
        %v555 = vld [vmem:[%s2 + $0x310] sm:$0xff]
        %v556 = vld [vmem:[%s2 + $0x318] sm:$0xff]
        %v557 = vld [vmem:[%s2 + $0x320] sm:$0xff]
        %v558 = vld [vmem:[%s2 + $0x328] sm:$0xff]
        %v559 = vld [vmem:[%s2 + $0x330] sm:$0xff]
        %v560 = vld [vmem:[%s2 + $0x338] sm:$0xff]
        %v561 = vld [vmem:[%s2 + $0x340] sm:$0xff]
        %v562 = vld [vmem:[%s2 + $0x348] sm:$0xff]
        %v563 = vld [vmem:[%s2 + $0x350] sm:$0xff]
        %v564 = vld [vmem:[%s2 + $0x358] sm:$0xff]
        %v565 = vld [vmem:[%s2 + $0x360] sm:$0xff]
        %v566 = vld [vmem:[%s2 + $0x368] sm:$0xff]
        %v567 = vld [vmem:[%s2 + $0x370] sm:$0xff]
        %v568 = vld [vmem:[%s2 + $0x378] sm:$0xff]
        %v569 = vld [vmem:[%s2 + $0x380] sm:$0xff]
        %v570 = vld [vmem:[%s2 + $0x388] sm:$0xff]
        %v571 = vld [vmem:[%s2 + $0x390] sm:$0xff]
        %v572 = vld [vmem:[%s2 + $0x398] sm:$0xff]
        %v573 = vld [vmem:[%s2 + $0x3a0] sm:$0xff]
        %v574 = vld [vmem:[%s2 + $0x3a8] sm:$0xff]
        %v575 = vld [vmem:[%s2 + $0x3b0] sm:$0xff]
        %v576 = vld [vmem:[%s2 + $0x3b8] sm:$0xff]
        %v577 = vld [vmem:[%s2 + $0x3c0] sm:$0xff]
        %v578 = vld [vmem:[%s2 + $0x3c8] sm:$0xff]
        %v579 = vld [vmem:[%s2 + $0x3d0] sm:$0xff]
        %v580 = vld [vmem:[%s2 + $0x3d8] sm:$0xff]
        %v581 = vld [vmem:[%s2 + $0x3e0] sm:$0xff]
        %v582 = vld [vmem:[%s2 + $0x3e8] sm:$0xff]
        %v583 = vld [vmem:[%s2 + $0x3f0] sm:$0xff]
        %v584 = vld [vmem:[%s2 + $0x3f8] sm:$0xff]
        %v585 = vld [vmem:[%s2 + $0x400] sm:$0xff]
        %v586 = vld [vmem:[%s2 + $0x408] sm:$0xff]
        %v587 = vld [vmem:[%s2 + $0x410] sm:$0xff]
        %v588 = vld [vmem:[%s2 + $0x418] sm:$0xff]
        %v589 = vld [vmem:[%s2 + $0x420] sm:$0xff]
        %v590 = vld [vmem:[%s2 + $0x428] sm:$0xff]
        %v591 = vld [vmem:[%s2 + $0x430] sm:$0xff]
        %v592 = vld [vmem:[%s2 + $0x438] sm:$0xff]
        %v593 = vld [vmem:[%s2 + $0x440] sm:$0xff]
        %v594 = vld [vmem:[%s2 + $0x448] sm:$0xff]
        %v595 = vld [vmem:[%s2 + $0x450] sm:$0xff]
        %v596 = vld [vmem:[%s2 + $0x458] sm:$0xff]
        %v597 = vld [vmem:[%s2 + $0x460] sm:$0xff]
        %v598 = vld [vmem:[%s2 + $0x468] sm:$0xff]
        %v599 = vld [vmem:[%s2 + $0x470] sm:$0xff]
        %v600 = vld [vmem:[%s2 + $0x478] sm:$0xff]
        %v601 = vld [vmem:[%s2 + $0x480] sm:$0xff]
        %v602 = vld [vmem:[%s2 + $0x488] sm:$0xff]
        %v603 = vld [vmem:[%s2 + $0x490] sm:$0xff]
        %v604 = vld [vmem:[%s2 + $0x498] sm:$0xff]
        %v605 = vld [vmem:[%s2 + $0x4a0] sm:$0xff]
        %v606 = vld [vmem:[%s2 + $0x4a8] sm:$0xff]
        %v607 = vld [vmem:[%s2 + $0x4b0] sm:$0xff]
        %v608 = vld [vmem:[%s2 + $0x4b8] sm:$0xff]
        %v609 = vld [vmem:[%s2 + $0x4c0] sm:$0xff]
        %v610 = vld [vmem:[%s2 + $0x4c8] sm:$0xff]
        %v611 = vld [vmem:[%s2 + $0x4d0] sm:$0xff]
        %v612 = vld [vmem:[%s2 + $0x4d8] sm:$0xff]
        %v613 = vld [vmem:[%s2 + $0x4e0] sm:$0xff]
        %v614 = vld [vmem:[%s2 + $0x4e8] sm:$0xff]
        %v615 = vld [vmem:[%s2 + $0x4f0] sm:$0xff]
        %v616 = vld [vmem:[%s2 + $0x4f8] sm:$0xff]
        %v617 = vld [vmem:[%s2 + $0x500] sm:$0xff]
        %v618 = vld [vmem:[%s2 + $0x508] sm:$0xff]
        %v619 = vld [vmem:[%s2 + $0x510] sm:$0xff]
        %v620 = vld [vmem:[%s2 + $0x518] sm:$0xff]
        %v621 = vld [vmem:[%s2 + $0x520] sm:$0xff]
        %v622 = vld [vmem:[%s2 + $0x528] sm:$0xff]
        %v623 = vld [vmem:[%s2 + $0x530] sm:$0xff]
        %v624 = vld [vmem:[%s2 + $0x538] sm:$0xff]
        %v625 = vld [vmem:[%s2 + $0x540] sm:$0xff]
        %v626 = vld [vmem:[%s2 + $0x548] sm:$0xff]
        %v627 = vld [vmem:[%s2 + $0x550] sm:$0xff]
        %v628 = vld [vmem:[%s2 + $0x558] sm:$0xff]
        %v629 = vld [vmem:[%s2 + $0x560] sm:$0xff]
        %v630 = vld [vmem:[%s2 + $0x568] sm:$0xff]
        %v631 = vld [vmem:[%s2 + $0x570] sm:$0xff]
        %v632 = vld [vmem:[%s2 + $0x578] sm:$0xff]
        %v633 = vld [vmem:[%s2 + $0x580] sm:$0xff]
        %v634 = vld [vmem:[%s2 + $0x588] sm:$0xff]
        %v635 = vld [vmem:[%s2 + $0x590] sm:$0xff]
        %v636 = vld [vmem:[%s2 + $0x598] sm:$0xff]
        %v637 = vld [vmem:[%s2 + $0x5a0] sm:$0xff]
        %v638 = vld [vmem:[%s2 + $0x5a8] sm:$0xff]
        %v639 = vld [vmem:[%s2 + $0x5b0] sm:$0xff]
        %v640 = vld [vmem:[%s2 + $0x5b8] sm:$0xff]
        %v641 = vld [vmem:[%s2 + $0x5c0] sm:$0xff]
        %v642 = vld [vmem:[%s2 + $0x5c8] sm:$0xff]
        %v643 = vld [vmem:[%s2 + $0x5d0] sm:$0xff]
        %v644 = vld [vmem:[%s2 + $0x5d8] sm:$0xff]
        %v645 = vld [vmem:[%s2 + $0x5e0] sm:$0xff]
        %v646 = vld [vmem:[%s2 + $0x5e8] sm:$0xff]
        %v647 = vld [vmem:[%s2 + $0x5f0] sm:$0xff]
        %v648 = vld [vmem:[%s2 + $0x5f8] sm:$0xff]
        %v649 = vld [vmem:[%s2 + $0x600] sm:$0xff]
        %v650 = vld [vmem:[%s2 + $0x608] sm:$0xff]
        %v651 = vld [vmem:[%s2 + $0x610] sm:$0xff]
        %v652 = vld [vmem:[%s2 + $0x618] sm:$0xff]
        %v653 = vld [vmem:[%s2 + $0x620] sm:$0xff]
        %v654 = vld [vmem:[%s2 + $0x628] sm:$0xff]
        %v655 = vld [vmem:[%s2 + $0x630] sm:$0xff]
        %v656 = vld [vmem:[%s2 + $0x638] sm:$0xff]
        %v657 = vld [vmem:[%s2 + $0x640] sm:$0xff]
        %v658 = vld [vmem:[%s2 + $0x648] sm:$0xff]
        %v659 = vld [vmem:[%s2 + $0x650] sm:$0xff]
        %v660 = vld [vmem:[%s2 + $0x658] sm:$0xff]
        %v661 = vld [vmem:[%s2 + $0x660] sm:$0xff]
        %v662 = vld [vmem:[%s2 + $0x668] sm:$0xff]
        %v663 = vld [vmem:[%s2 + $0x670] sm:$0xff]
        %v664 = vld [vmem:[%s2 + $0x678] sm:$0xff]
        %v665 = vld [vmem:[%s2 + $0x680] sm:$0xff]
        %v666 = vld [vmem:[%s2 + $0x688] sm:$0xff]
        %v667 = vld [vmem:[%s2 + $0x690] sm:$0xff]
        %v668 = vld [vmem:[%s2 + $0x698] sm:$0xff]
        %v669 = vld [vmem:[%s2 + $0x6a0] sm:$0xff]
        %v670 = vld [vmem:[%s2 + $0x6a8] sm:$0xff]
        %v671 = vld [vmem:[%s2 + $0x6b0] sm:$0xff]
        %v672 = vld [vmem:[%s2 + $0x6b8] sm:$0xff]
        %v673 = vld [vmem:[%s2 + $0x6c0] sm:$0xff]
        %v674 = vld [vmem:[%s2 + $0x6c8] sm:$0xff]
        %v675 = vld [vmem:[%s2 + $0x6d0] sm:$0xff]
        %v676 = vld [vmem:[%s2 + $0x6d8] sm:$0xff]
        %v677 = vld [vmem:[%s2 + $0x6e0] sm:$0xff]
        %v678 = vld [vmem:[%s2 + $0x6e8] sm:$0xff]
        %v679 = vld [vmem:[%s2 + $0x6f0] sm:$0xff]
        %v680 = vld [vmem:[%s2 + $0x6f8] sm:$0xff]
        %v681 = vld [vmem:[%s2 + $0x700] sm:$0xff]
        %v682 = vld [vmem:[%s2 + $0x708] sm:$0xff]
        %v683 = vld [vmem:[%s2 + $0x710] sm:$0xff]
        %v684 = vld [vmem:[%s2 + $0x718] sm:$0xff]
        %v685 = vld [vmem:[%s2 + $0x720] sm:$0xff]
        %v686 = vld [vmem:[%s2 + $0x728] sm:$0xff]
        %v687 = vld [vmem:[%s2 + $0x730] sm:$0xff]
        %v688 = vld [vmem:[%s2 + $0x738] sm:$0xff]
        %v689 = vld [vmem:[%s2 + $0x740] sm:$0xff]
        %v690 = vld [vmem:[%s2 + $0x748] sm:$0xff]
        %v691 = vld [vmem:[%s2 + $0x750] sm:$0xff]
        %v692 = vld [vmem:[%s2 + $0x758] sm:$0xff]
        %v693 = vld [vmem:[%s2 + $0x760] sm:$0xff]
        %v694 = vld [vmem:[%s2 + $0x768] sm:$0xff]
        %v695 = vld [vmem:[%s2 + $0x770] sm:$0xff]
        %v696 = vld [vmem:[%s2 + $0x778] sm:$0xff]
        %v697 = vld [vmem:[%s2 + $0x780] sm:$0xff]
        %v698 = vld [vmem:[%s2 + $0x788] sm:$0xff]
        %v699 = vld [vmem:[%s2 + $0x790] sm:$0xff]
        %v700 = vld [vmem:[%s2 + $0x798] sm:$0xff]
        %v701 = vld [vmem:[%s2 + $0x7a0] sm:$0xff]
        %v702 = vld [vmem:[%s2 + $0x7a8] sm:$0xff]
        %v703 = vld [vmem:[%s2 + $0x7b0] sm:$0xff]
        %v704 = vld [vmem:[%s2 + $0x7b8] sm:$0xff]
        %v705 = vld [vmem:[%s2 + $0x7c0] sm:$0xff]
        %v706 = vld [vmem:[%s2 + $0x7c8] sm:$0xff]
        %v707 = vld [vmem:[%s2 + $0x7d0] sm:$0xff]
        %v708 = vld [vmem:[%s2 + $0x7d8] sm:$0xff]
        %v709 = vld [vmem:[%s2 + $0x7e0] sm:$0xff]
        %v710 = vld [vmem:[%s2 + $0x7e8] sm:$0xff]
        %v711 = vld [vmem:[%s2 + $0x7f0] sm:$0xff]
        %v712 = vld [vmem:[%s2 + $0x7f8] sm:$0xff]
        %v713 = vld [vmem:[%s2 + $0x800] sm:$0xff]
        %v714 = vld [vmem:[%s2 + $0x808] sm:$0xff]
        %v715 = vld [vmem:[%s2 + $0x810] sm:$0xff]
        %v716 = vld [vmem:[%s2 + $0x818] sm:$0xff]
        %v717 = vld [vmem:[%s2 + $0x820] sm:$0xff]
        %v718 = vld [vmem:[%s2 + $0x828] sm:$0xff]
        %v719 = vld [vmem:[%s2 + $0x830] sm:$0xff]
        %v720 = vld [vmem:[%s2 + $0x838] sm:$0xff]
        %v721 = vld [vmem:[%s2 + $0x840] sm:$0xff]
        %v722 = vld [vmem:[%s2 + $0x848] sm:$0xff]
        %v723 = vld [vmem:[%s2 + $0x850] sm:$0xff]
        %v724 = vld [vmem:[%s2 + $0x858] sm:$0xff]
        %v725 = vld [vmem:[%s2 + $0x860] sm:$0xff]
        %v726 = vld [vmem:[%s2 + $0x868] sm:$0xff]
        %v727 = vld [vmem:[%s2 + $0x870] sm:$0xff]
        %v728 = vld [vmem:[%s2 + $0x878] sm:$0xff]
        %v729 = vld [vmem:[%s2 + $0x880] sm:$0xff]
        %v730 = vld [vmem:[%s2 + $0x888] sm:$0xff]
        %v731 = vld [vmem:[%s2 + $0x890] sm:$0xff]
        %v732 = vld [vmem:[%s2 + $0x898] sm:$0xff]
        %v733 = vld [vmem:[%s2 + $0x8a0] sm:$0xff]
        %v734 = vld [vmem:[%s2 + $0x8a8] sm:$0xff]
        %v735 = vld [vmem:[%s2 + $0x8b0] sm:$0xff]
        %v736 = vld [vmem:[%s2 + $0x8b8] sm:$0xff]
        %v737 = vld [vmem:[%s2 + $0x8c0] sm:$0xff]
        %v738 = vld [vmem:[%s2 + $0x8c8] sm:$0xff]
        %v739 = vld [vmem:[%s2 + $0x8d0] sm:$0xff]
        %v740 = vld [vmem:[%s2 + $0x8d8] sm:$0xff]
        %v741 = vld [vmem:[%s2 + $0x8e0] sm:$0xff]
        %v742 = vld [vmem:[%s2 + $0x8e8] sm:$0xff]
        %v743 = vld [vmem:[%s2 + $0x8f0] sm:$0xff]
        %v744 = vld [vmem:[%s2 + $0x8f8] sm:$0xff]
        %v745 = vld [vmem:[%s2 + $0x900] sm:$0xff]
        %v746 = vld [vmem:[%s2 + $0x908] sm:$0xff]
        %v747 = vld [vmem:[%s2 + $0x910] sm:$0xff]
        %v748 = vld [vmem:[%s2 + $0x918] sm:$0xff]
        %v749 = vld [vmem:[%s2 + $0x920] sm:$0xff]
        %v750 = vld [vmem:[%s2 + $0x928] sm:$0xff]
        %v751 = vld [vmem:[%s2 + $0x930] sm:$0xff]
        %v752 = vld [vmem:[%s2 + $0x938] sm:$0xff]
        %v753 = vld [vmem:[%s2 + $0x940] sm:$0xff]
        %v754 = vld [vmem:[%s2 + $0x948] sm:$0xff]
        %v755 = vld [vmem:[%s2 + $0x950] sm:$0xff]
        %v756 = vld [vmem:[%s2 + $0x958] sm:$0xff]
        %v757 = vld [vmem:[%s2 + $0x960] sm:$0xff]
        %v758 = vld [vmem:[%s2 + $0x968] sm:$0xff]
        %v759 = vld [vmem:[%s2 + $0x970] sm:$0xff]
        %v760 = vld [vmem:[%s2 + $0x978] sm:$0xff]
        %v761 = vld [vmem:[%s2 + $0x980] sm:$0xff]
        %v762 = vld [vmem:[%s2 + $0x988] sm:$0xff]
        %v763 = vld [vmem:[%s2 + $0x990] sm:$0xff]
        %v764 = vld [vmem:[%s2 + $0x998] sm:$0xff]
        %v765 = vld [vmem:[%s2 + $0x9a0] sm:$0xff]
        %v766 = vld [vmem:[%s2 + $0x9a8] sm:$0xff]
        %v767 = vld [vmem:[%s2 + $0x9b0] sm:$0xff]
        %v768 = vld [vmem:[%s2 + $0x9b8] sm:$0xff]
        %v769 = vld [vmem:[%s2 + $0x9c0] sm:$0xff]
        %v770 = vld [vmem:[%s2 + $0x9c8] sm:$0xff]
        %v771 = vld [vmem:[%s2 + $0x9d0] sm:$0xff]
        %v772 = vld [vmem:[%s2 + $0x9d8] sm:$0xff]
        %v773 = vld [vmem:[%s2 + $0x9e0] sm:$0xff]
        %v774 = vld [vmem:[%s2 + $0x9e8] sm:$0xff]
        %v775 = vld [vmem:[%s2 + $0x9f0] sm:$0xff]
        %v776 = vld [vmem:[%s2 + $0x9f8] sm:$0xff]
        %v777 = vld [vmem:[%s2 + $0xa00] sm:$0xff]
        %v778 = vld [vmem:[%s2 + $0xa08] sm:$0xff]
        %v779 = vld [vmem:[%s2 + $0xa10] sm:$0xff]
        %v780 = vld [vmem:[%s2 + $0xa18] sm:$0xff]
        %v781 = vld [vmem:[%s2 + $0xa20] sm:$0xff]
        %v782 = vld [vmem:[%s2 + $0xa28] sm:$0xff]
        %v783 = vld [vmem:[%s2 + $0xa30] sm:$0xff]
        %v784 = vld [vmem:[%s2 + $0xa38] sm:$0xff]
        %v785 = vld [vmem:[%s2 + $0xa40] sm:$0xff]
        %v786 = vld [vmem:[%s2 + $0xa48] sm:$0xff]
        %v787 = vld [vmem:[%s2 + $0xa50] sm:$0xff]
        %v788 = vld [vmem:[%s2 + $0xa58] sm:$0xff]
        %v789 = vld [vmem:[%s2 + $0xa60] sm:$0xff]
        %v790 = vld [vmem:[%s2 + $0xa68] sm:$0xff]
        %v791 = vld [vmem:[%s2 + $0xa70] sm:$0xff]
        %v792 = vld [vmem:[%s2 + $0xa78] sm:$0xff]
        %v793 = vld [vmem:[%s2 + $0xa80] sm:$0xff]
        %v794 = vld [vmem:[%s2 + $0xa88] sm:$0xff]
        %v795 = vld [vmem:[%s2 + $0xa90] sm:$0xff]
        %v796 = vld [vmem:[%s2 + $0xa98] sm:$0xff]
        %v797 = vld [vmem:[%s2 + $0xaa0] sm:$0xff]
        %v798 = vld [vmem:[%s2 + $0xaa8] sm:$0xff]
        %v799 = vld [vmem:[%s2 + $0xab0] sm:$0xff]
        %v800 = vld [vmem:[%s2 + $0xab8] sm:$0xff]
        %v801 = vld [vmem:[%s2 + $0xac0] sm:$0xff]
        %v802 = vld [vmem:[%s2 + $0xac8] sm:$0xff]
        %v803 = vld [vmem:[%s2 + $0xad0] sm:$0xff]
        %v804 = vld [vmem:[%s2 + $0xad8] sm:$0xff]
        %v805 = vld [vmem:[%s2 + $0xae0] sm:$0xff]
        %v806 = vld [vmem:[%s2 + $0xae8] sm:$0xff]
        %v807 = vld [vmem:[%s2 + $0xaf0] sm:$0xff]
        %v808 = vld [vmem:[%s2 + $0xaf8] sm:$0xff]
        %v809 = vld [vmem:[%s2 + $0xb00] sm:$0xff]
        %v810 = vld [vmem:[%s2 + $0xb08] sm:$0xff]
        %v811 = vld [vmem:[%s2 + $0xb10] sm:$0xff]
        %v812 = vld [vmem:[%s2 + $0xb18] sm:$0xff]
        %v813 = vld [vmem:[%s2 + $0xb20] sm:$0xff]
        %v814 = vld [vmem:[%s2 + $0xb28] sm:$0xff]
        %v815 = vld [vmem:[%s2 + $0xb30] sm:$0xff]
        %v816 = vld [vmem:[%s2 + $0xb38] sm:$0xff]
        %v817 = vld [vmem:[%s2 + $0xb40] sm:$0xff]
        %v818 = vld [vmem:[%s2 + $0xb48] sm:$0xff]
        %v819 = vld [vmem:[%s2 + $0xb50] sm:$0xff]
        %v820 = vld [vmem:[%s2 + $0xb58] sm:$0xff]
        %v821 = vld [vmem:[%s2 + $0xb60] sm:$0xff]
        %v822 = vld [vmem:[%s2 + $0xb68] sm:$0xff]
        %v823 = vld [vmem:[%s2 + $0xb70] sm:$0xff]
        %v824 = vld [vmem:[%s2 + $0xb78] sm:$0xff]
        %v825 = vld [vmem:[%s2 + $0xb80] sm:$0xff]
        %v826 = vld [vmem:[%s2 + $0xb88] sm:$0xff]
        %v827 = vld [vmem:[%s2 + $0xb90] sm:$0xff]
        %v828 = vld [vmem:[%s2 + $0xb98] sm:$0xff]
        %v829 = vld [vmem:[%s2 + $0xba0] sm:$0xff]
        %v830 = vld [vmem:[%s2 + $0xba8] sm:$0xff]
        %v831 = vld [vmem:[%s2 + $0xbb0] sm:$0xff]
        %v832 = vld [vmem:[%s2 + $0xbb8] sm:$0xff]
        %v833 = vld [vmem:[%s2 + $0xbc0] sm:$0xff]
        %v834 = vld [vmem:[%s2 + $0xbc8] sm:$0xff]
        %v835 = vld [vmem:[%s2 + $0xbd0] sm:$0xff]
        %v836 = vld [vmem:[%s2 + $0xbd8] sm:$0xff]
        %v837 = vld [vmem:[%s2 + $0xbe0] sm:$0xff]
        %v838 = vld [vmem:[%s2 + $0xbe8] sm:$0xff]
        %v839 = vld [vmem:[%s2 + $0xbf0] sm:$0xff]
        %v840 = vld [vmem:[%s2 + $0xbf8] sm:$0xff]
        %v841 = vld [vmem:[%s2 + $0xc00] sm:$0xff]
        %v842 = vld [vmem:[%s2 + $0xc08] sm:$0xff]
        %v843 = vld [vmem:[%s2 + $0xc10] sm:$0xff]
        %v844 = vld [vmem:[%s2 + $0xc18] sm:$0xff]
        %v845 = vld [vmem:[%s2 + $0xc20] sm:$0xff]
        %v846 = vld [vmem:[%s2 + $0xc28] sm:$0xff]
        %v847 = vld [vmem:[%s2 + $0xc30] sm:$0xff]
        %v848 = vld [vmem:[%s2 + $0xc38] sm:$0xff]
        %v849 = vld [vmem:[%s3] sm:$0xf]
        %v851 = vlaneseq
        %v852 = vshrl.u32 %v851, 7
        %v853 = vsub.s32 0, %v852
        %v854 = vrot.slane %v849, %v853
        %v855 = vlaneseq
        %v856 = vshrl.u32 %v855, 7
        %v857 = vsub.s32 1, %v856
        %v858 = vrot.slane %v849, %v857
        %v859 = vlaneseq
        %v860 = vshrl.u32 %v859, 7
        %v861 = vsub.s32 2, %v860
        %v862 = vrot.slane %v849, %v861
        %v863 = vlaneseq
        %v864 = vshrl.u32 %v863, 7
        %v865 = vsub.s32 3, %v864
        %v866 = vrot.slane %v849, %v865
        %vm871 = vcmask 130048
        %v873 = vsel %vm871, %v431, 0
        %v876 = vsel %vm871, %v438, 0
        %v879 = vsel %vm871, %v445, 0
        %v882 = vsel %vm871, %v452, 0
        %884 = vmatprep.subr.mxu0 %v458
        %885 = vmatpush1.msra.mxu0 %v457
        %886 = vmatprep.subr.mxu0 %v462
        %887 = vmatpush1.msra.mxu0 %v461
        %888 = vmatprep.subr.mxu0 %v466
        %889 = vmatpush1.msra.mxu0 %v465
        %890 = vmatprep.subr.mxu0 %v470
        %891 = vmatpush1.msra.mxu0 %v469
        %892 = vmatprep.subr.mxu0 %v474
        %893 = vmatpush1.msra.mxu0 %v473
        %894 = vmatprep.subr.mxu0 %v478
        %895 = vmatpush1.msra.mxu0 %v477
        %896 = vmatprep.subr.mxu0 %v482
        %897 = vmatpush1.msra.mxu0 %v481
        %898 = vmatprep.subr.mxu0 %v486
        %899 = vmatpush1.msra.mxu0 %v485
        %900 = vmatprep.subr.mxu0 %v490
        %901 = vmatpush1.msra.mxu0 %v489
        %902 = vmatprep.subr.mxu0 %v494
        %903 = vmatpush1.msra.mxu0 %v493
        %904 = vmatprep.subr.mxu0 %v498
        %905 = vmatpush1.msra.mxu0 %v497
        %906 = vmatprep.subr.mxu0 %v502
        %907 = vmatpush1.msra.mxu0 %v501
        %908 = vmatprep.subr.mxu0 %v506
        %909 = vmatpush1.msra.mxu0 %v505
        %910 = vmatprep.subr.mxu0 %v510
        %911 = vmatpush1.msra.mxu0 %v509
        %912 = vmatprep.subr.mxu0 %v514
        %913 = vmatpush1.msra.mxu0 %v513
        %914 = vmatprep.subr.mxu0 %v518
        %915 = vmatpush1.msra.mxu0 %v517
        %916 = vmatprep.subr.mxu0 %v522
        %917 = vmatpush1.msra.mxu0 %v521
        %918 = vmatprep.subr.mxu0 %v526
        %919 = vmatpush1.msra.mxu0 %v525
        %920 = vmatprep.subr.mxu0 %v530
        %921 = vmatpush1.msra.mxu0 %v529
        %922 = vmatprep.subr.mxu0 %v534
        %923 = vmatpush1.msra.mxu0 %v533
        %924 = vmatprep.subr.mxu0 %v538
        %925 = vmatpush1.msra.mxu0 %v537
        %926 = vmatprep.subr.mxu0 %v542
        %927 = vmatpush1.msra.mxu0 %v541
        %928 = vmatprep.subr.mxu0 %v546
        %929 = vmatpush1.msra.mxu0 %v545
        %930 = vmatprep.subr.mxu0 %v550
        %931 = vmatpush1.msra.mxu0 %v549
        %932 = vmatprep.subr.mxu0 %v554
        %933 = vmatpush1.msra.mxu0 %v553
        %934 = vmatprep.subr.mxu0 %v558
        %935 = vmatpush1.msra.mxu0 %v557
        %936 = vmatprep.subr.mxu0 %v562
        %937 = vmatpush1.msra.mxu0 %v561
        %938 = vmatprep.subr.mxu0 %v566
        %939 = vmatpush1.msra.mxu0 %v565
        %940 = vmatprep.subr.mxu0 %v570
        %941 = vmatpush1.msra.mxu0 %v569
        %942 = vmatprep.subr.mxu0 %v574
        %943 = vmatpush1.msra.mxu0 %v573
        %944 = vmatprep.subr.mxu0 %v578
        %945 = vmatpush1.msra.mxu0 %v577
        %946 = vmatprep.subr.mxu0 %v582
        %947 = vmatpush1.msra.mxu0 %v581
        %948 = vmatprep.mubr.f32.mxu0 %v426
        %949 = vmatmul.mubr.f32.gmra.mrb[0].mxu0 %v425
        %v950 = vpop.f32.mrb[0].mxu0
        %v951 = vadd.f32 %v854, %v950
        %v952 = vpop.f32.mrb[0].mxu0
        %v953 = vadd.f32 %v858, %v952
        %954 = vmatprep.mubr.f32.mxu0 %v433
        %955 = vmatmul.mubr.f32.gmra.mrb[0].mxu0 %v432
        %v956 = vpop.f32.mrb[0].mxu0
        %v957 = vadd.f32 %v854, %v956
        %v958 = vpop.f32.mrb[0].mxu0
        %v959 = vadd.f32 %v858, %v958
        %960 = vmatprep.mubr.f32.mxu0 %v440
        %961 = vmatmul.mubr.f32.gmra.mrb[0].mxu0 %v439
        %v962 = vpop.f32.mrb[0].mxu0
        %v963 = vadd.f32 %v854, %v962
        %v964 = vpop.f32.mrb[0].mxu0
        %v965 = vadd.f32 %v858, %v964
        %966 = vmatprep.mubr.f32.mxu0 %v447
        %967 = vmatmul.mubr.f32.gmra.mrb[0].mxu0 %v446
        %v968 = vpop.f32.mrb[0].mxu0
        %v969 = vadd.f32 %v854, %v968
        %v970 = vpop.f32.mrb[0].mxu0
        %v971 = vadd.f32 %v858, %v970
        %972 = vdwg.mxu0
        %973 = vmatprep.subr.mxu0 %v586
        %974 = vmatpush1.msra.mxu0 %v585
        %975 = vmatprep.subr.mxu0 %v590
        %976 = vmatpush1.msra.mxu0 %v589
        %977 = vmatprep.subr.mxu0 %v594
        %978 = vmatpush1.msra.mxu0 %v593
        %979 = vmatprep.subr.mxu0 %v598
        %980 = vmatpush1.msra.mxu0 %v597
        %981 = vmatprep.subr.mxu0 %v602
        %982 = vmatpush1.msra.mxu0 %v601
        %983 = vmatprep.subr.mxu0 %v606
        %984 = vmatpush1.msra.mxu0 %v605
        %985 = vmatprep.subr.mxu0 %v610
        %986 = vmatpush1.msra.mxu0 %v609
        %987 = vmatprep.subr.mxu0 %v614
        %988 = vmatpush1.msra.mxu0 %v613
        %989 = vmatprep.subr.mxu0 %v618
        %990 = vmatpush1.msra.mxu0 %v617
        %991 = vmatprep.subr.mxu0 %v622
        %992 = vmatpush1.msra.mxu0 %v621
        %993 = vmatprep.subr.mxu0 %v626
        %994 = vmatpush1.msra.mxu0 %v625
        %995 = vmatprep.subr.mxu0 %v630
        %996 = vmatpush1.msra.mxu0 %v629
        %997 = vmatprep.subr.mxu0 %v634
        %998 = vmatpush1.msra.mxu0 %v633
        %999 = vmatprep.subr.mxu0 %v638
        %1000 = vmatpush1.msra.mxu0 %v637
        %1001 = vmatprep.subr.mxu0 %v642
        %1002 = vmatpush1.msra.mxu0 %v641
        %1003 = vmatprep.subr.mxu0 %v646
        %1004 = vmatpush1.msra.mxu0 %v645
        %1005 = vmatprep.subr.mxu0 %v650
        %1006 = vmatpush1.msra.mxu0 %v649
        %1007 = vmatprep.subr.mxu0 %v654
        %1008 = vmatpush1.msra.mxu0 %v653
        %1009 = vmatprep.subr.mxu0 %v658
        %1010 = vmatpush1.msra.mxu0 %v657
        %1011 = vmatprep.subr.mxu0 %v662
        %1012 = vmatpush1.msra.mxu0 %v661
        %1013 = vmatprep.subr.mxu0 %v666
        %1014 = vmatpush1.msra.mxu0 %v665
        %1015 = vmatprep.subr.mxu0 %v670
        %1016 = vmatpush1.msra.mxu0 %v669
        %1017 = vmatprep.subr.mxu0 %v674
        %1018 = vmatpush1.msra.mxu0 %v673
        %1019 = vmatprep.subr.mxu0 %v678
        %1020 = vmatpush1.msra.mxu0 %v677
        %1021 = vmatprep.subr.mxu0 %v682
        %1022 = vmatpush1.msra.mxu0 %v681
        %1023 = vmatprep.subr.mxu0 %v686
        %1024 = vmatpush1.msra.mxu0 %v685
        %1025 = vmatprep.subr.mxu0 %v690
        %1026 = vmatpush1.msra.mxu0 %v689
        %1027 = vmatprep.subr.mxu0 %v694
        %1028 = vmatpush1.msra.mxu0 %v693
        %1029 = vmatprep.subr.mxu0 %v698
        %1030 = vmatpush1.msra.mxu0 %v697
        %1031 = vmatprep.subr.mxu0 %v702
        %1032 = vmatpush1.msra.mxu0 %v701
        %1033 = vmatprep.subr.mxu0 %v706
        %1034 = vmatpush1.msra.mxu0 %v705
        %1035 = vmatprep.subr.mxu0 %v710
        %1036 = vmatpush1.msra.mxu0 %v709
        %1037 = vmatprep.mubr.f32.mxu0 %v428
        %1038 = vmatmul.mubr.f32.gmra.mrb[0].mxu0 %v427
        %v1039 = vpop.f32.mrb[0].mxu0
        %v1040 = vadd.f32 %v951, %v1039
        %v1041 = vpop.f32.mrb[0].mxu0
        %v1042 = vadd.f32 %v953, %v1041
        %1043 = vmatprep.mubr.f32.mxu0 %v435
        %1044 = vmatmul.mubr.f32.gmra.mrb[0].mxu0 %v434
        %v1045 = vpop.f32.mrb[0].mxu0
        %v1046 = vadd.f32 %v957, %v1045
        %v1047 = vpop.f32.mrb[0].mxu0
        %v1048 = vadd.f32 %v959, %v1047
        %1049 = vmatprep.mubr.f32.mxu0 %v442
        %1050 = vmatmul.mubr.f32.gmra.mrb[0].mxu0 %v441
        %v1051 = vpop.f32.mrb[0].mxu0
        %v1052 = vadd.f32 %v963, %v1051
        %v1053 = vpop.f32.mrb[0].mxu0
        %v1054 = vadd.f32 %v965, %v1053
        %1055 = vmatprep.mubr.f32.mxu0 %v449
        %1056 = vmatmul.mubr.f32.gmra.mrb[0].mxu0 %v448
        %v1057 = vpop.f32.mrb[0].mxu0
        %v1058 = vadd.f32 %v969, %v1057
        %v1059 = vpop.f32.mrb[0].mxu0
        %v1060 = vadd.f32 %v971, %v1059
        %1061 = vdwg.mxu0
        %1062 = vmatprep.subr.mxu0 %v714
        %1063 = vmatpush1.msra.mxu0 %v713
        %1064 = vmatprep.subr.mxu0 %v718
        %1065 = vmatpush1.msra.mxu0 %v717
        %1066 = vmatprep.subr.mxu0 %v722
        %1067 = vmatpush1.msra.mxu0 %v721
        %1068 = vmatprep.subr.mxu0 %v726
        %1069 = vmatpush1.msra.mxu0 %v725
        %1070 = vmatprep.subr.mxu0 %v730
        %1071 = vmatpush1.msra.mxu0 %v729
        %1072 = vmatprep.subr.mxu0 %v734
        %1073 = vmatpush1.msra.mxu0 %v733
        %1074 = vmatprep.subr.mxu0 %v738
        %1075 = vmatpush1.msra.mxu0 %v737
        %1076 = vmatprep.subr.mxu0 %v742
        %1077 = vmatpush1.msra.mxu0 %v741
        %1078 = vmatprep.subr.mxu0 %v746
        %1079 = vmatpush1.msra.mxu0 %v745
        %1080 = vmatprep.subr.mxu0 %v750
        %1081 = vmatpush1.msra.mxu0 %v749
        %1082 = vmatprep.subr.mxu0 %v754
        %1083 = vmatpush1.msra.mxu0 %v753
        %1084 = vmatprep.subr.mxu0 %v758
        %1085 = vmatpush1.msra.mxu0 %v757
        %1086 = vmatprep.subr.mxu0 %v762
        %1087 = vmatpush1.msra.mxu0 %v761
        %1088 = vmatprep.subr.mxu0 %v766
        %1089 = vmatpush1.msra.mxu0 %v765
        %1090 = vmatprep.subr.mxu0 %v770
        %1091 = vmatpush1.msra.mxu0 %v769
        %1092 = vmatprep.subr.mxu0 %v774
        %1093 = vmatpush1.msra.mxu0 %v773
        %1094 = vmatprep.subr.mxu0 %v778
        %1095 = vmatpush1.msra.mxu0 %v777
        %1096 = vmatprep.subr.mxu0 %v782
        %1097 = vmatpush1.msra.mxu0 %v781
        %1098 = vmatprep.subr.mxu0 %v786
        %1099 = vmatpush1.msra.mxu0 %v785
        %1100 = vmatprep.subr.mxu0 %v790
        %1101 = vmatpush1.msra.mxu0 %v789
        %1102 = vmatprep.subr.mxu0 %v794
        %1103 = vmatpush1.msra.mxu0 %v793
        %1104 = vmatprep.subr.mxu0 %v798
        %1105 = vmatpush1.msra.mxu0 %v797
        %1106 = vmatprep.subr.mxu0 %v802
        %1107 = vmatpush1.msra.mxu0 %v801
        %1108 = vmatprep.subr.mxu0 %v806
        %1109 = vmatpush1.msra.mxu0 %v805
        %1110 = vmatprep.subr.mxu0 %v810
        %1111 = vmatpush1.msra.mxu0 %v809
        %1112 = vmatprep.subr.mxu0 %v814
        %1113 = vmatpush1.msra.mxu0 %v813
        %1114 = vmatprep.subr.mxu0 %v818
        %1115 = vmatpush1.msra.mxu0 %v817
        %1116 = vmatprep.subr.mxu0 %v822
        %1117 = vmatpush1.msra.mxu0 %v821
        %1118 = vmatprep.subr.mxu0 %v826
        %1119 = vmatpush1.msra.mxu0 %v825
        %1120 = vmatprep.subr.mxu0 %v830
        %1121 = vmatpush1.msra.mxu0 %v829
        %1122 = vmatprep.subr.mxu0 %v834
        %1123 = vmatpush1.msra.mxu0 %v833
        %1124 = vmatprep.subr.mxu0 %v838
        %1125 = vmatpush1.msra.mxu0 %v837
        %1126 = vmatprep.mubr.f32.mxu0 %v430
        %1127 = vmatmul.mubr.f32.gmra.mrb[0].mxu0 %v429
        %v1128 = vpop.f32.mrb[0].mxu0
        %v1129 = vadd.f32 %v1040, %v1128
        %v1130 = vpop.f32.mrb[0].mxu0
        %v1131 = vadd.f32 %v1042, %v1130
        %1132 = vmatprep.mubr.f32.mxu0 %v437
        %1133 = vmatmul.mubr.f32.gmra.mrb[0].mxu0 %v436
        %v1134 = vpop.f32.mrb[0].mxu0
        %v1135 = vadd.f32 %v1046, %v1134
        %v1136 = vpop.f32.mrb[0].mxu0
        %v1137 = vadd.f32 %v1048, %v1136
        %1138 = vmatprep.mubr.f32.mxu0 %v444
        %1139 = vmatmul.mubr.f32.gmra.mrb[0].mxu0 %v443
        %v1140 = vpop.f32.mrb[0].mxu0
        %v1141 = vadd.f32 %v1052, %v1140
        %v1142 = vpop.f32.mrb[0].mxu0
        %v1143 = vadd.f32 %v1054, %v1142
        %1144 = vmatprep.mubr.f32.mxu0 %v451
        %1145 = vmatmul.mubr.f32.gmra.mrb[0].mxu0 %v450
        %v1146 = vpop.f32.mrb[0].mxu0
        %v1147 = vadd.f32 %v1058, %v1146
        %v1148 = vpop.f32.mrb[0].mxu0
        %v1149 = vadd.f32 %v1060, %v1148
        %1150 = vdwg.mxu0
        %1151 = vmatprep.subr.mxu0 %v842
        %1152 = vmatpush1.msra.mxu0 %v841
        %1153 = vmatprep.subr.mxu0 %v846
        %1154 = vmatpush1.msra.mxu0 %v845
        %1155 = vmatprep.subr.mxu0 0.0
        %1156 = vmatpush1.msra.mxu0 0.0
        %1157 = vmatprep.subr.mxu0 0.0
        %1158 = vmatpush1.msra.mxu0 0.0
        %1159 = vmatprep.subr.mxu0 0.0
        %1160 = vmatpush1.msra.mxu0 0.0
        %1161 = vmatprep.subr.mxu0 0.0
        %1162 = vmatpush1.msra.mxu0 0.0
        %1163 = vmatprep.subr.mxu0 0.0
        %1164 = vmatpush1.msra.mxu0 0.0
        %1165 = vmatprep.subr.mxu0 0.0
        %1166 = vmatpush1.msra.mxu0 0.0
        %1167 = vmatprep.subr.mxu0 0.0
        %1168 = vmatpush1.msra.mxu0 0.0
        %1169 = vmatprep.subr.mxu0 0.0
        %1170 = vmatpush1.msra.mxu0 0.0
        %1171 = vmatprep.subr.mxu0 0.0
        %1172 = vmatpush1.msra.mxu0 0.0
        %1173 = vmatprep.subr.mxu0 0.0
        %1174 = vmatpush1.msra.mxu0 0.0
        %1175 = vmatprep.subr.mxu0 0.0
        %1176 = vmatpush1.msra.mxu0 0.0
        %1177 = vmatprep.subr.mxu0 0.0
        %1178 = vmatpush1.msra.mxu0 0.0
        %1179 = vmatprep.subr.mxu0 0.0
        %1180 = vmatpush1.msra.mxu0 0.0
        %1181 = vmatprep.subr.mxu0 0.0
        %1182 = vmatpush1.msra.mxu0 0.0
        %1183 = vmatprep.subr.mxu0 0.0
        %1184 = vmatpush1.msra.mxu0 0.0
        %1185 = vmatprep.subr.mxu0 0.0
        %1186 = vmatpush1.msra.mxu0 0.0
        %1187 = vmatprep.subr.mxu0 0.0
        %1188 = vmatpush1.msra.mxu0 0.0
        %1189 = vmatprep.subr.mxu0 0.0
        %1190 = vmatpush1.msra.mxu0 0.0
        %1191 = vmatprep.subr.mxu0 0.0
        %1192 = vmatpush1.msra.mxu0 0.0
        %1193 = vmatprep.subr.mxu0 0.0
        %1194 = vmatpush1.msra.mxu0 0.0
        %1195 = vmatprep.subr.mxu0 0.0
        %1196 = vmatpush1.msra.mxu0 0.0
        %1197 = vmatprep.subr.mxu0 0.0
        %1198 = vmatpush1.msra.mxu0 0.0
        %1199 = vmatprep.subr.mxu0 0.0
        %1200 = vmatpush1.msra.mxu0 0.0
        %1201 = vmatprep.subr.mxu0 0.0
        %1202 = vmatpush1.msra.mxu0 0.0
        %1203 = vmatprep.subr.mxu0 0.0
        %1204 = vmatpush1.msra.mxu0 0.0
        %1205 = vmatprep.subr.mxu0 0.0
        %1206 = vmatpush1.msra.mxu0 0.0
        %1207 = vmatprep.subr.mxu0 0.0
        %1208 = vmatpush1.msra.mxu0 0.0
        %1209 = vmatprep.subr.mxu0 0.0
        %1210 = vmatpush1.msra.mxu0 0.0
        %1211 = vmatprep.subr.mxu0 0.0
        %1212 = vmatpush1.msra.mxu0 0.0
        %1213 = vmatprep.subr.mxu0 0.0
        %1214 = vmatpush1.msra.mxu0 0.0
        %1215 = vmatprep.mubr.f32.mxu0 0.0
        %1216 = vmatmul.mubr.f32.gmra.mrb[0].mxu0 %v873
        %v1217 = vpop.f32.mrb[0].mxu0
        %v1218 = vadd.f32 %v1129, %v1217
        %v1219 = vpop.f32.mrb[0].mxu0
        %v1220 = vadd.f32 %v1131, %v1219
        %1221 = vmatprep.mubr.f32.mxu0 0.0
        %1222 = vmatmul.mubr.f32.gmra.mrb[0].mxu0 %v876
        %v1223 = vpop.f32.mrb[0].mxu0
        %v1224 = vadd.f32 %v1135, %v1223
        %v1225 = vpop.f32.mrb[0].mxu0
        %v1226 = vadd.f32 %v1137, %v1225
        %1227 = vmatprep.mubr.f32.mxu0 0.0
        %1228 = vmatmul.mubr.f32.gmra.mrb[0].mxu0 %v879
        %v1229 = vpop.f32.mrb[0].mxu0
        %v1230 = vadd.f32 %v1141, %v1229
        %v1231 = vpop.f32.mrb[0].mxu0
        %v1232 = vadd.f32 %v1143, %v1231
        %1233 = vmatprep.mubr.f32.mxu0 0.0
        %1234 = vmatmul.mubr.f32.gmra.mrb[0].mxu0 %v882
        %v1235 = vpop.f32.mrb[0].mxu0
        %v1236 = vadd.f32 %v1147, %v1235
        %v1237 = vpop.f32.mrb[0].mxu0
        %v1238 = vadd.f32 %v1149, %v1237
        %1239 = vdwg.mxu0
        %1240 = vmatprep.subr.mxu0 %v460
        %1241 = vmatpush1.msra.mxu0 %v459
        %1242 = vmatprep.subr.mxu0 %v464
        %1243 = vmatpush1.msra.mxu0 %v463
        %1244 = vmatprep.subr.mxu0 %v468
        %1245 = vmatpush1.msra.mxu0 %v467
        %1246 = vmatprep.subr.mxu0 %v472
        %1247 = vmatpush1.msra.mxu0 %v471
        %1248 = vmatprep.subr.mxu0 %v476
        %1249 = vmatpush1.msra.mxu0 %v475
        %1250 = vmatprep.subr.mxu0 %v480
        %1251 = vmatpush1.msra.mxu0 %v479
        %1252 = vmatprep.subr.mxu0 %v484
        %1253 = vmatpush1.msra.mxu0 %v483
        %1254 = vmatprep.subr.mxu0 %v488
        %1255 = vmatpush1.msra.mxu0 %v487
        %1256 = vmatprep.subr.mxu0 %v492
        %1257 = vmatpush1.msra.mxu0 %v491
        %1258 = vmatprep.subr.mxu0 %v496
        %1259 = vmatpush1.msra.mxu0 %v495
        %1260 = vmatprep.subr.mxu0 %v500
        %1261 = vmatpush1.msra.mxu0 %v499
        %1262 = vmatprep.subr.mxu0 %v504
        %1263 = vmatpush1.msra.mxu0 %v503
        %1264 = vmatprep.subr.mxu0 %v508
        %1265 = vmatpush1.msra.mxu0 %v507
        %1266 = vmatprep.subr.mxu0 %v512
        %1267 = vmatpush1.msra.mxu0 %v511
        %1268 = vmatprep.subr.mxu0 %v516
        %1269 = vmatpush1.msra.mxu0 %v515
        %1270 = vmatprep.subr.mxu0 %v520
        %1271 = vmatpush1.msra.mxu0 %v519
        %1272 = vmatprep.subr.mxu0 %v524
        %1273 = vmatpush1.msra.mxu0 %v523
        %1274 = vmatprep.subr.mxu0 %v528
        %1275 = vmatpush1.msra.mxu0 %v527
        %1276 = vmatprep.subr.mxu0 %v532
        %1277 = vmatpush1.msra.mxu0 %v531
        %1278 = vmatprep.subr.mxu0 %v536
        %1279 = vmatpush1.msra.mxu0 %v535
        %1280 = vmatprep.subr.mxu0 %v540
        %1281 = vmatpush1.msra.mxu0 %v539
        %1282 = vmatprep.subr.mxu0 %v544
        %1283 = vmatpush1.msra.mxu0 %v543
        %1284 = vmatprep.subr.mxu0 %v548
        %1285 = vmatpush1.msra.mxu0 %v547
        %1286 = vmatprep.subr.mxu0 %v552
        %1287 = vmatpush1.msra.mxu0 %v551
        %1288 = vmatprep.subr.mxu0 %v556
        %1289 = vmatpush1.msra.mxu0 %v555
        %1290 = vmatprep.subr.mxu0 %v560
        %1291 = vmatpush1.msra.mxu0 %v559
        %1292 = vmatprep.subr.mxu0 %v564
        %1293 = vmatpush1.msra.mxu0 %v563
        %1294 = vmatprep.subr.mxu0 %v568
        %1295 = vmatpush1.msra.mxu0 %v567
        %1296 = vmatprep.subr.mxu0 %v572
        %1297 = vmatpush1.msra.mxu0 %v571
        %1298 = vmatprep.subr.mxu0 %v576
        %1299 = vmatpush1.msra.mxu0 %v575
        %1300 = vmatprep.subr.mxu0 %v580
        %1301 = vmatpush1.msra.mxu0 %v579
        %1302 = vmatprep.subr.mxu0 %v584
        %1303 = vmatpush1.msra.mxu0 %v583
        %1304 = vmatprep.mubr.f32.mxu0 %v426
        %1305 = vmatmul.mubr.f32.gmra.mrb[0].mxu0 %v425
        %v1306 = vpop.f32.mrb[0].mxu0
        %v1307 = vadd.f32 %v862, %v1306
        %v1308 = vpop.f32.mrb[0].mxu0
        %v1309 = vadd.f32 %v866, %v1308
        %1310 = vmatprep.mubr.f32.mxu0 %v433
        %1311 = vmatmul.mubr.f32.gmra.mrb[0].mxu0 %v432
        %v1312 = vpop.f32.mrb[0].mxu0
        %v1313 = vadd.f32 %v862, %v1312
        %v1314 = vpop.f32.mrb[0].mxu0
        %v1315 = vadd.f32 %v866, %v1314
        %1316 = vmatprep.mubr.f32.mxu0 %v440
        %1317 = vmatmul.mubr.f32.gmra.mrb[0].mxu0 %v439
        %v1318 = vpop.f32.mrb[0].mxu0
        %v1319 = vadd.f32 %v862, %v1318
        %v1320 = vpop.f32.mrb[0].mxu0
        %v1321 = vadd.f32 %v866, %v1320
        %1322 = vmatprep.mubr.f32.mxu0 %v447
        %1323 = vmatmul.mubr.f32.gmra.mrb[0].mxu0 %v446
        %v1324 = vpop.f32.mrb[0].mxu0
        %v1325 = vadd.f32 %v862, %v1324
        %v1326 = vpop.f32.mrb[0].mxu0
        %v1327 = vadd.f32 %v866, %v1326
        %1328 = vdwg.mxu0
        %1329 = vmatprep.subr.mxu0 %v588
        %1330 = vmatpush1.msra.mxu0 %v587
        %1331 = vmatprep.subr.mxu0 %v592
        %1332 = vmatpush1.msra.mxu0 %v591
        %1333 = vmatprep.subr.mxu0 %v596
        %1334 = vmatpush1.msra.mxu0 %v595
        %1335 = vmatprep.subr.mxu0 %v600
        %1336 = vmatpush1.msra.mxu0 %v599
        %1337 = vmatprep.subr.mxu0 %v604
        %1338 = vmatpush1.msra.mxu0 %v603
        %1339 = vmatprep.subr.mxu0 %v608
        %1340 = vmatpush1.msra.mxu0 %v607
        %1341 = vmatprep.subr.mxu0 %v612
        %1342 = vmatpush1.msra.mxu0 %v611
        %1343 = vmatprep.subr.mxu0 %v616
        %1344 = vmatpush1.msra.mxu0 %v615
        %1345 = vmatprep.subr.mxu0 %v620
        %1346 = vmatpush1.msra.mxu0 %v619
        %1347 = vmatprep.subr.mxu0 %v624
        %1348 = vmatpush1.msra.mxu0 %v623
        %1349 = vmatprep.subr.mxu0 %v628
        %1350 = vmatpush1.msra.mxu0 %v627
        %1351 = vmatprep.subr.mxu0 %v632
        %1352 = vmatpush1.msra.mxu0 %v631
        %1353 = vmatprep.subr.mxu0 %v636
        %1354 = vmatpush1.msra.mxu0 %v635
        %1355 = vmatprep.subr.mxu0 %v640
        %1356 = vmatpush1.msra.mxu0 %v639
        %1357 = vmatprep.subr.mxu0 %v644
        %1358 = vmatpush1.msra.mxu0 %v643
        %1359 = vmatprep.subr.mxu0 %v648
        %1360 = vmatpush1.msra.mxu0 %v647
        %1361 = vmatprep.subr.mxu0 %v652
        %1362 = vmatpush1.msra.mxu0 %v651
        %1363 = vmatprep.subr.mxu0 %v656
        %1364 = vmatpush1.msra.mxu0 %v655
        %1365 = vmatprep.subr.mxu0 %v660
        %1366 = vmatpush1.msra.mxu0 %v659
        %1367 = vmatprep.subr.mxu0 %v664
        %1368 = vmatpush1.msra.mxu0 %v663
        %1369 = vmatprep.subr.mxu0 %v668
        %1370 = vmatpush1.msra.mxu0 %v667
        %1371 = vmatprep.subr.mxu0 %v672
        %1372 = vmatpush1.msra.mxu0 %v671
        %1373 = vmatprep.subr.mxu0 %v676
        %1374 = vmatpush1.msra.mxu0 %v675
        %1375 = vmatprep.subr.mxu0 %v680
        %1376 = vmatpush1.msra.mxu0 %v679
        %1377 = vmatprep.subr.mxu0 %v684
        %1378 = vmatpush1.msra.mxu0 %v683
        %1379 = vmatprep.subr.mxu0 %v688
        %1380 = vmatpush1.msra.mxu0 %v687
        %1381 = vmatprep.subr.mxu0 %v692
        %1382 = vmatpush1.msra.mxu0 %v691
        %1383 = vmatprep.subr.mxu0 %v696
        %1384 = vmatpush1.msra.mxu0 %v695
        %1385 = vmatprep.subr.mxu0 %v700
        %1386 = vmatpush1.msra.mxu0 %v699
        %1387 = vmatprep.subr.mxu0 %v704
        %1388 = vmatpush1.msra.mxu0 %v703
        %1389 = vmatprep.subr.mxu0 %v708
        %1390 = vmatpush1.msra.mxu0 %v707
        %1391 = vmatprep.subr.mxu0 %v712
        %1392 = vmatpush1.msra.mxu0 %v711
        %1393 = vmatprep.mubr.f32.mxu0 %v428
        %1394 = vmatmul.mubr.f32.gmra.mrb[0].mxu0 %v427
        %v1395 = vpop.f32.mrb[0].mxu0
        %v1396 = vadd.f32 %v1307, %v1395
        %v1397 = vpop.f32.mrb[0].mxu0
        %v1398 = vadd.f32 %v1309, %v1397
        %1399 = vmatprep.mubr.f32.mxu0 %v435
        %1400 = vmatmul.mubr.f32.gmra.mrb[0].mxu0 %v434
        %v1401 = vpop.f32.mrb[0].mxu0
        %v1402 = vadd.f32 %v1313, %v1401
        %v1403 = vpop.f32.mrb[0].mxu0
        %v1404 = vadd.f32 %v1315, %v1403
        %1405 = vmatprep.mubr.f32.mxu0 %v442
        %1406 = vmatmul.mubr.f32.gmra.mrb[0].mxu0 %v441
        %v1407 = vpop.f32.mrb[0].mxu0
        %v1408 = vadd.f32 %v1319, %v1407
        %v1409 = vpop.f32.mrb[0].mxu0
        %v1410 = vadd.f32 %v1321, %v1409
        %1411 = vmatprep.mubr.f32.mxu0 %v449
        %1412 = vmatmul.mubr.f32.gmra.mrb[0].mxu0 %v448
        %v1413 = vpop.f32.mrb[0].mxu0
        %v1414 = vadd.f32 %v1325, %v1413
        %v1415 = vpop.f32.mrb[0].mxu0
        %v1416 = vadd.f32 %v1327, %v1415
        %1417 = vdwg.mxu0
        %1418 = vmatprep.subr.mxu0 %v716
        %1419 = vmatpush1.msra.mxu0 %v715
        %1420 = vmatprep.subr.mxu0 %v720
        %1421 = vmatpush1.msra.mxu0 %v719
        %1422 = vmatprep.subr.mxu0 %v724
        %1423 = vmatpush1.msra.mxu0 %v723
        %1424 = vmatprep.subr.mxu0 %v728
        %1425 = vmatpush1.msra.mxu0 %v727
        %1426 = vmatprep.subr.mxu0 %v732
        %1427 = vmatpush1.msra.mxu0 %v731
        %1428 = vmatprep.subr.mxu0 %v736
        %1429 = vmatpush1.msra.mxu0 %v735
        %1430 = vmatprep.subr.mxu0 %v740
        %1431 = vmatpush1.msra.mxu0 %v739
        %1432 = vmatprep.subr.mxu0 %v744
        %1433 = vmatpush1.msra.mxu0 %v743
        %1434 = vmatprep.subr.mxu0 %v748
        %1435 = vmatpush1.msra.mxu0 %v747
        %1436 = vmatprep.subr.mxu0 %v752
        %1437 = vmatpush1.msra.mxu0 %v751
        %1438 = vmatprep.subr.mxu0 %v756
        %1439 = vmatpush1.msra.mxu0 %v755
        %1440 = vmatprep.subr.mxu0 %v760
        %1441 = vmatpush1.msra.mxu0 %v759
        %1442 = vmatprep.subr.mxu0 %v764
        %1443 = vmatpush1.msra.mxu0 %v763
        %1444 = vmatprep.subr.mxu0 %v768
        %1445 = vmatpush1.msra.mxu0 %v767
        %1446 = vmatprep.subr.mxu0 %v772
        %1447 = vmatpush1.msra.mxu0 %v771
        %1448 = vmatprep.subr.mxu0 %v776
        %1449 = vmatpush1.msra.mxu0 %v775
        %1450 = vmatprep.subr.mxu0 %v780
        %1451 = vmatpush1.msra.mxu0 %v779
        %1452 = vmatprep.subr.mxu0 %v784
        %1453 = vmatpush1.msra.mxu0 %v783
        %1454 = vmatprep.subr.mxu0 %v788
        %1455 = vmatpush1.msra.mxu0 %v787
        %1456 = vmatprep.subr.mxu0 %v792
        %1457 = vmatpush1.msra.mxu0 %v791
        %1458 = vmatprep.subr.mxu0 %v796
        %1459 = vmatpush1.msra.mxu0 %v795
        %1460 = vmatprep.subr.mxu0 %v800
        %1461 = vmatpush1.msra.mxu0 %v799
        %1462 = vmatprep.subr.mxu0 %v804
        %1463 = vmatpush1.msra.mxu0 %v803
        %1464 = vmatprep.subr.mxu0 %v808
        %1465 = vmatpush1.msra.mxu0 %v807
        %1466 = vmatprep.subr.mxu0 %v812
        %1467 = vmatpush1.msra.mxu0 %v811
        %1468 = vmatprep.subr.mxu0 %v816
        %1469 = vmatpush1.msra.mxu0 %v815
        %1470 = vmatprep.subr.mxu0 %v820
        %1471 = vmatpush1.msra.mxu0 %v819
        %1472 = vmatprep.subr.mxu0 %v824
        %1473 = vmatpush1.msra.mxu0 %v823
        %1474 = vmatprep.subr.mxu0 %v828
        %1475 = vmatpush1.msra.mxu0 %v827
        %1476 = vmatprep.subr.mxu0 %v832
        %1477 = vmatpush1.msra.mxu0 %v831
        %1478 = vmatprep.subr.mxu0 %v836
        %1479 = vmatpush1.msra.mxu0 %v835
        %1480 = vmatprep.subr.mxu0 %v840
        %1481 = vmatpush1.msra.mxu0 %v839
        %1482 = vmatprep.mubr.f32.mxu0 %v430
        %1483 = vmatmul.mubr.f32.gmra.mrb[0].mxu0 %v429
        %v1484 = vpop.f32.mrb[0].mxu0
        %v1485 = vadd.f32 %v1396, %v1484
        %v1486 = vpop.f32.mrb[0].mxu0
        %v1487 = vadd.f32 %v1398, %v1486
        %1488 = vmatprep.mubr.f32.mxu0 %v437
        %1489 = vmatmul.mubr.f32.gmra.mrb[0].mxu0 %v436
        %v1490 = vpop.f32.mrb[0].mxu0
        %v1491 = vadd.f32 %v1402, %v1490
        %v1492 = vpop.f32.mrb[0].mxu0
        %v1493 = vadd.f32 %v1404, %v1492
        %1494 = vmatprep.mubr.f32.mxu0 %v444
        %1495 = vmatmul.mubr.f32.gmra.mrb[0].mxu0 %v443
        %v1496 = vpop.f32.mrb[0].mxu0
        %v1497 = vadd.f32 %v1408, %v1496
        %v1498 = vpop.f32.mrb[0].mxu0
        %v1499 = vadd.f32 %v1410, %v1498
        %1500 = vmatprep.mubr.f32.mxu0 %v451
        %1501 = vmatmul.mubr.f32.gmra.mrb[0].mxu0 %v450
        %v1502 = vpop.f32.mrb[0].mxu0
        %v1503 = vadd.f32 %v1414, %v1502
        %v1504 = vpop.f32.mrb[0].mxu0
        %v1505 = vadd.f32 %v1416, %v1504
        %1506 = vdwg.mxu0
        %1507 = vmatprep.subr.mxu0 %v844
        %1508 = vmatpush1.msra.mxu0 %v843
        %1509 = vmatprep.subr.mxu0 %v848
        %1510 = vmatpush1.msra.mxu0 %v847
        %1511 = vmatprep.subr.mxu0 0.0
        %1512 = vmatpush1.msra.mxu0 0.0
        %1513 = vmatprep.subr.mxu0 0.0
        %1514 = vmatpush1.msra.mxu0 0.0
        %1515 = vmatprep.subr.mxu0 0.0
        %1516 = vmatpush1.msra.mxu0 0.0
        %1517 = vmatprep.subr.mxu0 0.0
        %1518 = vmatpush1.msra.mxu0 0.0
        %1519 = vmatprep.subr.mxu0 0.0
        %1520 = vmatpush1.msra.mxu0 0.0
        %1521 = vmatprep.subr.mxu0 0.0
        %1522 = vmatpush1.msra.mxu0 0.0
        %1523 = vmatprep.subr.mxu0 0.0
        %1524 = vmatpush1.msra.mxu0 0.0
        %1525 = vmatprep.subr.mxu0 0.0
        %1526 = vmatpush1.msra.mxu0 0.0
        %1527 = vmatprep.subr.mxu0 0.0
        %1528 = vmatpush1.msra.mxu0 0.0
        %1529 = vmatprep.subr.mxu0 0.0
        %1530 = vmatpush1.msra.mxu0 0.0
        %1531 = vmatprep.subr.mxu0 0.0
        %1532 = vmatpush1.msra.mxu0 0.0
        %1533 = vmatprep.subr.mxu0 0.0
        %1534 = vmatpush1.msra.mxu0 0.0
        %1535 = vmatprep.subr.mxu0 0.0
        %1536 = vmatpush1.msra.mxu0 0.0
        %1537 = vmatprep.subr.mxu0 0.0
        %1538 = vmatpush1.msra.mxu0 0.0
        %1539 = vmatprep.subr.mxu0 0.0
        %1540 = vmatpush1.msra.mxu0 0.0
        %1541 = vmatprep.subr.mxu0 0.0
        %1542 = vmatpush1.msra.mxu0 0.0
        %1543 = vmatprep.subr.mxu0 0.0
        %1544 = vmatpush1.msra.mxu0 0.0
        %1545 = vmatprep.subr.mxu0 0.0
        %1546 = vmatpush1.msra.mxu0 0.0
        %1547 = vmatprep.subr.mxu0 0.0
        %1548 = vmatpush1.msra.mxu0 0.0
        %1549 = vmatprep.subr.mxu0 0.0
        %1550 = vmatpush1.msra.mxu0 0.0
        %1551 = vmatprep.subr.mxu0 0.0
        %1552 = vmatpush1.msra.mxu0 0.0
        %1553 = vmatprep.subr.mxu0 0.0
        %1554 = vmatpush1.msra.mxu0 0.0
        %1555 = vmatprep.subr.mxu0 0.0
        %1556 = vmatpush1.msra.mxu0 0.0
        %1557 = vmatprep.subr.mxu0 0.0
        %1558 = vmatpush1.msra.mxu0 0.0
        %1559 = vmatprep.subr.mxu0 0.0
        %1560 = vmatpush1.msra.mxu0 0.0
        %1561 = vmatprep.subr.mxu0 0.0
        %1562 = vmatpush1.msra.mxu0 0.0
        %1563 = vmatprep.subr.mxu0 0.0
        %1564 = vmatpush1.msra.mxu0 0.0
        %1565 = vmatprep.subr.mxu0 0.0
        %1566 = vmatpush1.msra.mxu0 0.0
        %1567 = vmatprep.subr.mxu0 0.0
        %1568 = vmatpush1.msra.mxu0 0.0
        %1569 = vmatprep.subr.mxu0 0.0
        %1570 = vmatpush1.msra.mxu0 0.0
        %1571 = vmatprep.mubr.f32.mxu0 0.0
        %1572 = vmatmul.mubr.f32.gmra.mrb[0].mxu0 %v873
        %v1573 = vpop.f32.mrb[0].mxu0
        %v1574 = vadd.f32 %v1485, %v1573
        %v1575 = vpop.f32.mrb[0].mxu0
        %v1576 = vadd.f32 %v1487, %v1575
        %1577 = vmatprep.mubr.f32.mxu0 0.0
        %1578 = vmatmul.mubr.f32.gmra.mrb[0].mxu0 %v876
        %v1579 = vpop.f32.mrb[0].mxu0
        %v1580 = vadd.f32 %v1491, %v1579
        %v1581 = vpop.f32.mrb[0].mxu0
        %v1582 = vadd.f32 %v1493, %v1581
        %1583 = vmatprep.mubr.f32.mxu0 0.0
        %1584 = vmatmul.mubr.f32.gmra.mrb[0].mxu0 %v879
        %v1585 = vpop.f32.mrb[0].mxu0
        %v1586 = vadd.f32 %v1497, %v1585
        %v1587 = vpop.f32.mrb[0].mxu0
        %v1588 = vadd.f32 %v1499, %v1587
        %1589 = vmatprep.mubr.f32.mxu0 0.0
        %1590 = vmatmul.mubr.f32.gmra.mrb[0].mxu0 %v882
        %v1591 = vpop.f32.mrb[0].mxu0
        %v1592 = vadd.f32 %v1503, %v1591
        %v1593 = vpop.f32.mrb[0].mxu0
        %v1594 = vadd.f32 %v1505, %v1593
        %1595 = vdwg.mxu0
        %v1596 = vtanh.pop %v1218
        %v1597 = vtanh.pop %v1220
        %v1598 = vtanh.pop %v1574
        %v1599 = vtanh.pop %v1576
        %v1600 = vtanh.pop %v1224
        %v1601 = vtanh.pop %v1226
        %v1602 = vtanh.pop %v1580
        %v1603 = vtanh.pop %v1582
        %v1604 = vtanh.pop %v1230
        %v1605 = vtanh.pop %v1232
        %v1606 = vtanh.pop %v1586
        %v1607 = vtanh.pop %v1588
        %v1608 = vtanh.pop %v1236
        %v1609 = vtanh.pop %v1238
        %v1610 = vtanh.pop %v1592
        %v1611 = vtanh.pop %v1594
        %v1612 = vld [vmem:[%s4] sm:$0xff]
        %v1613 = vld [vmem:[%s4 + $0x8] sm:$0xff]
        %v1614 = vld [vmem:[%s4 + $0x10] sm:$0xff]
        %v1615 = vld [vmem:[%s4 + $0x18] sm:$0xff]
        %v1616 = vld [vmem:[%s4 + $0x20] sm:$0xff]
        %v1617 = vld [vmem:[%s4 + $0x28] sm:$0xff]
        %v1618 = vld [vmem:[%s4 + $0x30] sm:$0xff]
        %v1619 = vld [vmem:[%s4 + $0x38] sm:$0xff]
        %v1620 = vld [vmem:[%s4 + $0x40] sm:$0xff]
        %v1621 = vld [vmem:[%s4 + $0x48] sm:$0xff]
        %v1622 = vld [vmem:[%s4 + $0x50] sm:$0xff]
        %v1623 = vld [vmem:[%s4 + $0x58] sm:$0xff]
        %v1624 = vld [vmem:[%s4 + $0x60] sm:$0xff]
        %v1625 = vld [vmem:[%s4 + $0x68] sm:$0xff]
        %v1626 = vld [vmem:[%s4 + $0x70] sm:$0xff]
        %v1627 = vld [vmem:[%s4 + $0x78] sm:$0xff]
        %v1628 = vld [vmem:[%s4 + $0x80] sm:$0xff]
        %v1629 = vld [vmem:[%s4 + $0x88] sm:$0xff]
        %v1630 = vld [vmem:[%s4 + $0x90] sm:$0xff]
        %v1631 = vld [vmem:[%s4 + $0x98] sm:$0xff]
        %v1632 = vld [vmem:[%s4 + $0xa0] sm:$0xff]
        %v1633 = vld [vmem:[%s4 + $0xa8] sm:$0xff]
        %v1634 = vld [vmem:[%s4 + $0xb0] sm:$0xff]
        %v1635 = vld [vmem:[%s4 + $0xb8] sm:$0xff]
        %v1636 = vld [vmem:[%s4 + $0xc0] sm:$0xff]
        %v1637 = vld [vmem:[%s4 + $0xc8] sm:$0xff]
        %v1638 = vld [vmem:[%s4 + $0xd0] sm:$0xff]
        %v1639 = vld [vmem:[%s4 + $0xd8] sm:$0xff]
        %v1640 = vld [vmem:[%s4 + $0xe0] sm:$0xff]
        %v1641 = vld [vmem:[%s4 + $0xe8] sm:$0xff]
        %v1642 = vld [vmem:[%s4 + $0xf0] sm:$0xff]
        %v1643 = vld [vmem:[%s4 + $0xf8] sm:$0xff]
        %v1644 = vld [vmem:[%s4 + $0x100] sm:$0xff]
        %v1645 = vld [vmem:[%s4 + $0x108] sm:$0xff]
        %v1646 = vld [vmem:[%s4 + $0x110] sm:$0xff]
        %v1647 = vld [vmem:[%s4 + $0x118] sm:$0xff]
        %v1648 = vld [vmem:[%s4 + $0x120] sm:$0xff]
        %v1649 = vld [vmem:[%s4 + $0x128] sm:$0xff]
        %v1650 = vld [vmem:[%s4 + $0x130] sm:$0xff]
        %v1651 = vld [vmem:[%s4 + $0x138] sm:$0xff]
        %v1652 = vld [vmem:[%s4 + $0x140] sm:$0xff]
        %v1653 = vld [vmem:[%s4 + $0x148] sm:$0xff]
        %v1654 = vld [vmem:[%s4 + $0x150] sm:$0xff]
        %v1655 = vld [vmem:[%s4 + $0x158] sm:$0xff]
        %v1656 = vld [vmem:[%s4 + $0x160] sm:$0xff]
        %v1657 = vld [vmem:[%s4 + $0x168] sm:$0xff]
        %v1658 = vld [vmem:[%s4 + $0x170] sm:$0xff]
        %v1659 = vld [vmem:[%s4 + $0x178] sm:$0xff]
        %v1660 = vld [vmem:[%s4 + $0x180] sm:$0xff]
        %v1661 = vld [vmem:[%s4 + $0x188] sm:$0xff]
        %v1662 = vld [vmem:[%s4 + $0x190] sm:$0xff]
        %v1663 = vld [vmem:[%s4 + $0x198] sm:$0xff]
        %v1664 = vld [vmem:[%s4 + $0x1a0] sm:$0xff]
        %v1665 = vld [vmem:[%s4 + $0x1a8] sm:$0xff]
        %v1666 = vld [vmem:[%s4 + $0x1b0] sm:$0xff]
        %v1667 = vld [vmem:[%s4 + $0x1b8] sm:$0xff]
        %v1668 = vld [vmem:[%s4 + $0x1c0] sm:$0xff]
        %v1669 = vld [vmem:[%s4 + $0x1c8] sm:$0xff]
        %v1670 = vld [vmem:[%s4 + $0x1d0] sm:$0xff]
        %v1671 = vld [vmem:[%s4 + $0x1d8] sm:$0xff]
        %v1672 = vld [vmem:[%s4 + $0x1e0] sm:$0xff]
        %v1673 = vld [vmem:[%s4 + $0x1e8] sm:$0xff]
        %v1674 = vld [vmem:[%s4 + $0x1f0] sm:$0xff]
        %v1675 = vld [vmem:[%s4 + $0x1f8] sm:$0xff]
        %v1676 = vld [vmem:[%s4 + $0x200] sm:$0xff]
        %v1677 = vld [vmem:[%s4 + $0x208] sm:$0xff]
        %v1678 = vld [vmem:[%s4 + $0x210] sm:$0xff]
        %v1679 = vld [vmem:[%s4 + $0x218] sm:$0xff]
        %v1680 = vld [vmem:[%s4 + $0x220] sm:$0xff]
        %v1681 = vld [vmem:[%s4 + $0x228] sm:$0xff]
        %v1682 = vld [vmem:[%s4 + $0x230] sm:$0xff]
        %v1683 = vld [vmem:[%s4 + $0x238] sm:$0xff]
        %v1684 = vld [vmem:[%s4 + $0x240] sm:$0xff]
        %v1685 = vld [vmem:[%s4 + $0x248] sm:$0xff]
        %v1686 = vld [vmem:[%s4 + $0x250] sm:$0xff]
        %v1687 = vld [vmem:[%s4 + $0x258] sm:$0xff]
        %v1688 = vld [vmem:[%s4 + $0x260] sm:$0xff]
        %v1689 = vld [vmem:[%s4 + $0x268] sm:$0xff]
        %v1690 = vld [vmem:[%s4 + $0x270] sm:$0xff]
        %v1691 = vld [vmem:[%s4 + $0x278] sm:$0xff]
        %v1692 = vld [vmem:[%s4 + $0x280] sm:$0xff]
        %v1693 = vld [vmem:[%s4 + $0x288] sm:$0xff]
        %v1694 = vld [vmem:[%s4 + $0x290] sm:$0xff]
        %v1695 = vld [vmem:[%s4 + $0x298] sm:$0xff]
        %v1696 = vld [vmem:[%s4 + $0x2a0] sm:$0xff]
        %v1697 = vld [vmem:[%s4 + $0x2a8] sm:$0xff]
        %v1698 = vld [vmem:[%s4 + $0x2b0] sm:$0xff]
        %v1699 = vld [vmem:[%s4 + $0x2b8] sm:$0xff]
        %v1700 = vld [vmem:[%s4 + $0x2c0] sm:$0xff]
        %v1701 = vld [vmem:[%s4 + $0x2c8] sm:$0xff]
        %v1702 = vld [vmem:[%s4 + $0x2d0] sm:$0xff]
        %v1703 = vld [vmem:[%s4 + $0x2d8] sm:$0xff]
        %v1704 = vld [vmem:[%s4 + $0x2e0] sm:$0xff]
        %v1705 = vld [vmem:[%s4 + $0x2e8] sm:$0xff]
        %v1706 = vld [vmem:[%s4 + $0x2f0] sm:$0xff]
        %v1707 = vld [vmem:[%s4 + $0x2f8] sm:$0xff]
        %v1708 = vld [vmem:[%s4 + $0x300] sm:$0xff]
        %v1709 = vld [vmem:[%s4 + $0x308] sm:$0xff]
        %v1710 = vld [vmem:[%s4 + $0x310] sm:$0xff]
        %v1711 = vld [vmem:[%s4 + $0x318] sm:$0xff]
        %v1712 = vld [vmem:[%s4 + $0x320] sm:$0xff]
        %v1713 = vld [vmem:[%s4 + $0x328] sm:$0xff]
        %v1714 = vld [vmem:[%s4 + $0x330] sm:$0xff]
        %v1715 = vld [vmem:[%s4 + $0x338] sm:$0xff]
        %v1716 = vld [vmem:[%s4 + $0x340] sm:$0xff]
        %v1717 = vld [vmem:[%s4 + $0x348] sm:$0xff]
        %v1718 = vld [vmem:[%s4 + $0x350] sm:$0xff]
        %v1719 = vld [vmem:[%s4 + $0x358] sm:$0xff]
        %v1720 = vld [vmem:[%s4 + $0x360] sm:$0xff]
        %v1721 = vld [vmem:[%s4 + $0x368] sm:$0xff]
        %v1722 = vld [vmem:[%s4 + $0x370] sm:$0xff]
        %v1723 = vld [vmem:[%s4 + $0x378] sm:$0xff]
        %v1724 = vld [vmem:[%s4 + $0x380] sm:$0xff]
        %v1725 = vld [vmem:[%s4 + $0x388] sm:$0xff]
        %v1726 = vld [vmem:[%s4 + $0x390] sm:$0xff]
        %v1727 = vld [vmem:[%s4 + $0x398] sm:$0xff]
        %v1728 = vld [vmem:[%s4 + $0x3a0] sm:$0xff]
        %v1729 = vld [vmem:[%s4 + $0x3a8] sm:$0xff]
        %v1730 = vld [vmem:[%s4 + $0x3b0] sm:$0xff]
        %v1731 = vld [vmem:[%s4 + $0x3b8] sm:$0xff]
        %v1732 = vld [vmem:[%s4 + $0x3c0] sm:$0xff]
        %v1733 = vld [vmem:[%s4 + $0x3c8] sm:$0xff]
        %v1734 = vld [vmem:[%s4 + $0x3d0] sm:$0xff]
        %v1735 = vld [vmem:[%s4 + $0x3d8] sm:$0xff]
        %v1736 = vld [vmem:[%s4 + $0x3e0] sm:$0xff]
        %v1737 = vld [vmem:[%s4 + $0x3e8] sm:$0xff]
        %v1738 = vld [vmem:[%s4 + $0x3f0] sm:$0xff]
        %v1739 = vld [vmem:[%s4 + $0x3f8] sm:$0xff]
        %v1740 = vld [vmem:[%s5] sm:$0x3]
        %v1742 = vlaneseq
        %v1743 = vshrl.u32 %v1742, 7
        %v1744 = vsub.s32 0, %v1743
        %v1745 = vrot.slane %v1740, %v1744
        %v1746 = vlaneseq
        %v1747 = vshrl.u32 %v1746, 7
        %v1748 = vsub.s32 1, %v1747
        %v1749 = vrot.slane %v1740, %v1748
        %1752 = vmatprep.subr.mxu0 %v1613
        %1753 = vmatpush1.msra.mxu0 %v1612
        %1754 = vmatprep.subr.mxu0 %v1615
        %1755 = vmatpush1.msra.mxu0 %v1614
        %1756 = vmatprep.subr.mxu0 %v1617
        %1757 = vmatpush1.msra.mxu0 %v1616
        %1758 = vmatprep.subr.mxu0 %v1619
        %1759 = vmatpush1.msra.mxu0 %v1618
        %1760 = vmatprep.subr.mxu0 %v1621
        %1761 = vmatpush1.msra.mxu0 %v1620
        %1762 = vmatprep.subr.mxu0 %v1623
        %1763 = vmatpush1.msra.mxu0 %v1622
        %1764 = vmatprep.subr.mxu0 %v1625
        %1765 = vmatpush1.msra.mxu0 %v1624
        %1766 = vmatprep.subr.mxu0 %v1627
        %1767 = vmatpush1.msra.mxu0 %v1626
        %1768 = vmatprep.subr.mxu0 %v1629
        %1769 = vmatpush1.msra.mxu0 %v1628
        %1770 = vmatprep.subr.mxu0 %v1631
        %1771 = vmatpush1.msra.mxu0 %v1630
        %1772 = vmatprep.subr.mxu0 %v1633
        %1773 = vmatpush1.msra.mxu0 %v1632
        %1774 = vmatprep.subr.mxu0 %v1635
        %1775 = vmatpush1.msra.mxu0 %v1634
        %1776 = vmatprep.subr.mxu0 %v1637
        %1777 = vmatpush1.msra.mxu0 %v1636
        %1778 = vmatprep.subr.mxu0 %v1639
        %1779 = vmatpush1.msra.mxu0 %v1638
        %1780 = vmatprep.subr.mxu0 %v1641
        %1781 = vmatpush1.msra.mxu0 %v1640
        %1782 = vmatprep.subr.mxu0 %v1643
        %1783 = vmatpush1.msra.mxu0 %v1642
        %1784 = vmatprep.subr.mxu0 %v1645
        %1785 = vmatpush1.msra.mxu0 %v1644
        %1786 = vmatprep.subr.mxu0 %v1647
        %1787 = vmatpush1.msra.mxu0 %v1646
        %1788 = vmatprep.subr.mxu0 %v1649
        %1789 = vmatpush1.msra.mxu0 %v1648
        %1790 = vmatprep.subr.mxu0 %v1651
        %1791 = vmatpush1.msra.mxu0 %v1650
        %1792 = vmatprep.subr.mxu0 %v1653
        %1793 = vmatpush1.msra.mxu0 %v1652
        %1794 = vmatprep.subr.mxu0 %v1655
        %1795 = vmatpush1.msra.mxu0 %v1654
        %1796 = vmatprep.subr.mxu0 %v1657
        %1797 = vmatpush1.msra.mxu0 %v1656
        %1798 = vmatprep.subr.mxu0 %v1659
        %1799 = vmatpush1.msra.mxu0 %v1658
        %1800 = vmatprep.subr.mxu0 %v1661
        %1801 = vmatpush1.msra.mxu0 %v1660
        %1802 = vmatprep.subr.mxu0 %v1663
        %1803 = vmatpush1.msra.mxu0 %v1662
        %1804 = vmatprep.subr.mxu0 %v1665
        %1805 = vmatpush1.msra.mxu0 %v1664
        %1806 = vmatprep.subr.mxu0 %v1667
        %1807 = vmatpush1.msra.mxu0 %v1666
        %1808 = vmatprep.subr.mxu0 %v1669
        %1809 = vmatpush1.msra.mxu0 %v1668
        %1810 = vmatprep.subr.mxu0 %v1671
        %1811 = vmatpush1.msra.mxu0 %v1670
        %1812 = vmatprep.subr.mxu0 %v1673
        %1813 = vmatpush1.msra.mxu0 %v1672
        %1814 = vmatprep.subr.mxu0 %v1675
        %1815 = vmatpush1.msra.mxu0 %v1674
        %1816 = vmatprep.mubr.f32.mxu0 %v1597
        %1817 = vmatmul.mubr.f32.gmra.mrb[0].mxu0 %v1596
        %v1818 = vpop.f32.mrb[0].mxu0
        %v1819 = vadd.f32 %v1745, %v1818
        %v1820 = vpop.f32.mrb[0].mxu0
        %v1821 = vadd.f32 %v1749, %v1820
        %1822 = vmatprep.mubr.f32.mxu0 %v1601
        %1823 = vmatmul.mubr.f32.gmra.mrb[0].mxu0 %v1600
        %v1824 = vpop.f32.mrb[0].mxu0
        %v1825 = vadd.f32 %v1745, %v1824
        %v1826 = vpop.f32.mrb[0].mxu0
        %v1827 = vadd.f32 %v1749, %v1826
        %1828 = vmatprep.mubr.f32.mxu0 %v1605
        %1829 = vmatmul.mubr.f32.gmra.mrb[0].mxu0 %v1604
        %v1830 = vpop.f32.mrb[0].mxu0
        %v1831 = vadd.f32 %v1745, %v1830
        %v1832 = vpop.f32.mrb[0].mxu0
        %v1833 = vadd.f32 %v1749, %v1832
        %1834 = vmatprep.mubr.f32.mxu0 %v1609
        %1835 = vmatmul.mubr.f32.gmra.mrb[0].mxu0 %v1608
        %v1836 = vpop.f32.mrb[0].mxu0
        %v1837 = vadd.f32 %v1745, %v1836
        %v1838 = vpop.f32.mrb[0].mxu0
        %v1839 = vadd.f32 %v1749, %v1838
        %1840 = vdwg.mxu0
        %1841 = vmatprep.subr.mxu0 %v1677
        %1842 = vmatpush1.msra.mxu0 %v1676
        %1843 = vmatprep.subr.mxu0 %v1679
        %1844 = vmatpush1.msra.mxu0 %v1678
        %1845 = vmatprep.subr.mxu0 %v1681
        %1846 = vmatpush1.msra.mxu0 %v1680
        %1847 = vmatprep.subr.mxu0 %v1683
        %1848 = vmatpush1.msra.mxu0 %v1682
        %1849 = vmatprep.subr.mxu0 %v1685
        %1850 = vmatpush1.msra.mxu0 %v1684
        %1851 = vmatprep.subr.mxu0 %v1687
        %1852 = vmatpush1.msra.mxu0 %v1686
        %1853 = vmatprep.subr.mxu0 %v1689
        %1854 = vmatpush1.msra.mxu0 %v1688
        %1855 = vmatprep.subr.mxu0 %v1691
        %1856 = vmatpush1.msra.mxu0 %v1690
        %1857 = vmatprep.subr.mxu0 %v1693
        %1858 = vmatpush1.msra.mxu0 %v1692
        %1859 = vmatprep.subr.mxu0 %v1695
        %1860 = vmatpush1.msra.mxu0 %v1694
        %1861 = vmatprep.subr.mxu0 %v1697
        %1862 = vmatpush1.msra.mxu0 %v1696
        %1863 = vmatprep.subr.mxu0 %v1699
        %1864 = vmatpush1.msra.mxu0 %v1698
        %1865 = vmatprep.subr.mxu0 %v1701
        %1866 = vmatpush1.msra.mxu0 %v1700
        %1867 = vmatprep.subr.mxu0 %v1703
        %1868 = vmatpush1.msra.mxu0 %v1702
        %1869 = vmatprep.subr.mxu0 %v1705
        %1870 = vmatpush1.msra.mxu0 %v1704
        %1871 = vmatprep.subr.mxu0 %v1707
        %1872 = vmatpush1.msra.mxu0 %v1706
        %1873 = vmatprep.subr.mxu0 %v1709
        %1874 = vmatpush1.msra.mxu0 %v1708
        %1875 = vmatprep.subr.mxu0 %v1711
        %1876 = vmatpush1.msra.mxu0 %v1710
        %1877 = vmatprep.subr.mxu0 %v1713
        %1878 = vmatpush1.msra.mxu0 %v1712
        %1879 = vmatprep.subr.mxu0 %v1715
        %1880 = vmatpush1.msra.mxu0 %v1714
        %1881 = vmatprep.subr.mxu0 %v1717
        %1882 = vmatpush1.msra.mxu0 %v1716
        %1883 = vmatprep.subr.mxu0 %v1719
        %1884 = vmatpush1.msra.mxu0 %v1718
        %1885 = vmatprep.subr.mxu0 %v1721
        %1886 = vmatpush1.msra.mxu0 %v1720
        %1887 = vmatprep.subr.mxu0 %v1723
        %1888 = vmatpush1.msra.mxu0 %v1722
        %1889 = vmatprep.subr.mxu0 %v1725
        %1890 = vmatpush1.msra.mxu0 %v1724
        %1891 = vmatprep.subr.mxu0 %v1727
        %1892 = vmatpush1.msra.mxu0 %v1726
        %1893 = vmatprep.subr.mxu0 %v1729
        %1894 = vmatpush1.msra.mxu0 %v1728
        %1895 = vmatprep.subr.mxu0 %v1731
        %1896 = vmatpush1.msra.mxu0 %v1730
        %1897 = vmatprep.subr.mxu0 %v1733
        %1898 = vmatpush1.msra.mxu0 %v1732
        %1899 = vmatprep.subr.mxu0 %v1735
        %1900 = vmatpush1.msra.mxu0 %v1734
        %1901 = vmatprep.subr.mxu0 %v1737
        %1902 = vmatpush1.msra.mxu0 %v1736
        %1903 = vmatprep.subr.mxu0 %v1739
        %1904 = vmatpush1.msra.mxu0 %v1738
        %1905 = vmatprep.mubr.f32.mxu0 %v1599
        %1906 = vmatmul.mubr.f32.gmra.mrb[0].mxu0 %v1598
        %v1907 = vpop.f32.mrb[0].mxu0
        %v1908 = vadd.f32 %v1819, %v1907
        %v1909 = vpop.f32.mrb[0].mxu0
        %v1910 = vadd.f32 %v1821, %v1909
        %1911 = vmatprep.mubr.f32.mxu0 %v1603
        %1912 = vmatmul.mubr.f32.gmra.mrb[0].mxu0 %v1602
        %v1913 = vpop.f32.mrb[0].mxu0
        %v1914 = vadd.f32 %v1825, %v1913
        %v1915 = vpop.f32.mrb[0].mxu0
        %v1916 = vadd.f32 %v1827, %v1915
        %1917 = vmatprep.mubr.f32.mxu0 %v1607
        %1918 = vmatmul.mubr.f32.gmra.mrb[0].mxu0 %v1606
        %v1919 = vpop.f32.mrb[0].mxu0
        %v1920 = vadd.f32 %v1831, %v1919
        %v1921 = vpop.f32.mrb[0].mxu0
        %v1922 = vadd.f32 %v1833, %v1921
        %1923 = vmatprep.mubr.f32.mxu0 %v1611
        %1924 = vmatmul.mubr.f32.gmra.mrb[0].mxu0 %v1610
        %v1925 = vpop.f32.mrb[0].mxu0
        %v1926 = vadd.f32 %v1837, %v1925
        %v1927 = vpop.f32.mrb[0].mxu0
        %v1928 = vadd.f32 %v1839, %v1927
        %1929 = vdwg.mxu0
        %v1930 = vmul.f32 %v1910, 0.5
        %v1931 = vmul.f32 %v1916, 0.5
        %v1932 = vmul.f32 %v1922, 0.5
        %v1933 = vmul.f32 %v1928, 0.5
        %v1934 = vmul.f32 %v1930, 1.442695
        %v1935 = vpow.pop %v1934
        %v1936 = vmul.f32 %v1931, 1.442695
        %v1937 = vpow.pop %v1936
        %v1938 = vmul.f32 %v1932, 1.442695
        %v1939 = vpow.pop %v1938
        %v1940 = vmul.f32 %v1933, 1.442695
        %v1941 = vpow.pop %v1940
        %v1942 = vmul.f32 %v453, %v1935
        %v1943 = vmul.f32 %v454, %v1937
        %v1944 = vmul.f32 %v455, %v1939
        %v1945 = vmul.f32 %v456, %v1941
        %v1946 = vadd.f32 %v1908, %v1942
        %v1947 = vadd.f32 %v1914, %v1943
        %v1948 = vadd.f32 %v1920, %v1944
        %v1949 = vadd.f32 %v1926, %v1945
        %v1950 = vld [vmem:[%s6] sm:$0xff]
        %v1951 = vld [vmem:[%s6 + $0x8] sm:$0xff]
        %v1952 = vld [vmem:[%s6 + $0x10] sm:$0xff]
        %v1953 = vld [vmem:[%s6 + $0x18] sm:$0xff]
        %v1954 = vld [vmem:[%s6 + $0x20] sm:$0xff]
        %v1955 = vld [vmem:[%s6 + $0x28] sm:$0xff]
        %v1956 = vld [vmem:[%s6 + $0x30] sm:$0xff]
        %v1957 = vld [vmem:[%s6 + $0x38] sm:$0xff]
        %v1958 = vld [vmem:[%s6 + $0x40] sm:$0xff]
        %v1959 = vld [vmem:[%s6 + $0x48] sm:$0xff]
        %v1960 = vld [vmem:[%s6 + $0x50] sm:$0xff]
        %v1961 = vld [vmem:[%s6 + $0x58] sm:$0xff]
        %v1962 = vld [vmem:[%s6 + $0x60] sm:$0xff]
        %v1963 = vld [vmem:[%s6 + $0x68] sm:$0xff]
        %v1964 = vld [vmem:[%s6 + $0x70] sm:$0xff]
        %v1965 = vld [vmem:[%s6 + $0x78] sm:$0xff]
        %v1966 = vld [vmem:[%s6 + $0x80] sm:$0xff]
        %v1967 = vld [vmem:[%s6 + $0x88] sm:$0xff]
        %v1968 = vld [vmem:[%s6 + $0x90] sm:$0xff]
        %v1969 = vld [vmem:[%s6 + $0x98] sm:$0xff]
        %v1970 = vld [vmem:[%s6 + $0xa0] sm:$0xff]
        %v1971 = vld [vmem:[%s6 + $0xa8] sm:$0xff]
        %v1972 = vld [vmem:[%s6 + $0xb0] sm:$0xff]
        %v1973 = vld [vmem:[%s6 + $0xb8] sm:$0xff]
        %v1974 = vld [vmem:[%s6 + $0xc0] sm:$0xff]
        %v1975 = vld [vmem:[%s6 + $0xc8] sm:$0xff]
        %v1976 = vld [vmem:[%s6 + $0xd0] sm:$0xff]
        %v1977 = vld [vmem:[%s6 + $0xd8] sm:$0xff]
        %v1978 = vld [vmem:[%s6 + $0xe0] sm:$0xff]
        %v1979 = vld [vmem:[%s6 + $0xe8] sm:$0xff]
        %v1980 = vld [vmem:[%s6 + $0xf0] sm:$0xff]
        %v1981 = vld [vmem:[%s6 + $0xf8] sm:$0xff]
        %v1982 = vld [vmem:[%s6 + $0x100] sm:$0xff]
        %v1983 = vld [vmem:[%s6 + $0x108] sm:$0xff]
        %v1984 = vld [vmem:[%s6 + $0x110] sm:$0xff]
        %v1985 = vld [vmem:[%s6 + $0x118] sm:$0xff]
        %v1986 = vld [vmem:[%s6 + $0x120] sm:$0xff]
        %v1987 = vld [vmem:[%s6 + $0x128] sm:$0xff]
        %v1988 = vld [vmem:[%s6 + $0x130] sm:$0xff]
        %v1989 = vld [vmem:[%s6 + $0x138] sm:$0xff]
        %v1990 = vld [vmem:[%s6 + $0x140] sm:$0xff]
        %v1991 = vld [vmem:[%s6 + $0x148] sm:$0xff]
        %v1992 = vld [vmem:[%s6 + $0x150] sm:$0xff]
        %v1993 = vld [vmem:[%s6 + $0x158] sm:$0xff]
        %v1994 = vld [vmem:[%s6 + $0x160] sm:$0xff]
        %v1995 = vld [vmem:[%s6 + $0x168] sm:$0xff]
        %v1996 = vld [vmem:[%s6 + $0x170] sm:$0xff]
        %v1997 = vld [vmem:[%s6 + $0x178] sm:$0xff]
        %v1998 = vld [vmem:[%s6 + $0x180] sm:$0xff]
        %v1999 = vld [vmem:[%s6 + $0x188] sm:$0xff]
        %v2000 = vld [vmem:[%s6 + $0x190] sm:$0xff]
        %v2001 = vld [vmem:[%s6 + $0x198] sm:$0xff]
        %v2002 = vld [vmem:[%s6 + $0x1a0] sm:$0xff]
        %v2003 = vld [vmem:[%s6 + $0x1a8] sm:$0xff]
        %v2004 = vld [vmem:[%s6 + $0x1b0] sm:$0xff]
        %v2005 = vld [vmem:[%s6 + $0x1b8] sm:$0xff]
        %v2006 = vld [vmem:[%s6 + $0x1c0] sm:$0xff]
        %v2007 = vld [vmem:[%s6 + $0x1c8] sm:$0xff]
        %v2008 = vld [vmem:[%s6 + $0x1d0] sm:$0xff]
        %v2009 = vld [vmem:[%s6 + $0x1d8] sm:$0xff]
        %v2010 = vld [vmem:[%s6 + $0x1e0] sm:$0xff]
        %v2011 = vld [vmem:[%s6 + $0x1e8] sm:$0xff]
        %v2012 = vld [vmem:[%s6 + $0x1f0] sm:$0xff]
        %v2013 = vld [vmem:[%s6 + $0x1f8] sm:$0xff]
        %v2014 = vld [vmem:[%s7] sm:$0xf]
        %v2016 = vlaneseq
        %v2017 = vshrl.u32 %v2016, 7
        %v2018 = vsub.s32 0, %v2017
        %v2019 = vrot.slane %v2014, %v2018
        %v2020 = vlaneseq
        %v2021 = vshrl.u32 %v2020, 7
        %v2022 = vsub.s32 1, %v2021
        %v2023 = vrot.slane %v2014, %v2022
        %v2024 = vlaneseq
        %v2025 = vshrl.u32 %v2024, 7
        %v2026 = vsub.s32 2, %v2025
        %v2027 = vrot.slane %v2014, %v2026
        %v2028 = vlaneseq
        %v2029 = vshrl.u32 %v2028, 7
        %v2030 = vsub.s32 3, %v2029
        %v2031 = vrot.slane %v2014, %v2030
        %2036 = vmatprep.subr.mxu0 %v1951
        %2037 = vmatpush1.msra.mxu0 %v1950
        %2038 = vmatprep.subr.mxu0 %v1955
        %2039 = vmatpush1.msra.mxu0 %v1954
        %2040 = vmatprep.subr.mxu0 %v1959
        %2041 = vmatpush1.msra.mxu0 %v1958
        %2042 = vmatprep.subr.mxu0 %v1963
        %2043 = vmatpush1.msra.mxu0 %v1962
        %2044 = vmatprep.subr.mxu0 %v1967
        %2045 = vmatpush1.msra.mxu0 %v1966
        %2046 = vmatprep.subr.mxu0 %v1971
        %2047 = vmatpush1.msra.mxu0 %v1970
        %2048 = vmatprep.subr.mxu0 %v1975
        %2049 = vmatpush1.msra.mxu0 %v1974
        %2050 = vmatprep.subr.mxu0 %v1979
        %2051 = vmatpush1.msra.mxu0 %v1978
        %2052 = vmatprep.subr.mxu0 %v1983
        %2053 = vmatpush1.msra.mxu0 %v1982
        %2054 = vmatprep.subr.mxu0 %v1987
        %2055 = vmatpush1.msra.mxu0 %v1986
        %2056 = vmatprep.subr.mxu0 %v1991
        %2057 = vmatpush1.msra.mxu0 %v1990
        %2058 = vmatprep.subr.mxu0 %v1995
        %2059 = vmatpush1.msra.mxu0 %v1994
        %2060 = vmatprep.subr.mxu0 %v1999
        %2061 = vmatpush1.msra.mxu0 %v1998
        %2062 = vmatprep.subr.mxu0 %v2003
        %2063 = vmatpush1.msra.mxu0 %v2002
        %2064 = vmatprep.subr.mxu0 %v2007
        %2065 = vmatpush1.msra.mxu0 %v2006
        %2066 = vmatprep.subr.mxu0 %v2011
        %2067 = vmatpush1.msra.mxu0 %v2010
        %2068 = vmatprep.subr.mxu0 0.0
        %2069 = vmatpush1.msra.mxu0 0.0
        %2070 = vmatprep.subr.mxu0 0.0
        %2071 = vmatpush1.msra.mxu0 0.0
        %2072 = vmatprep.subr.mxu0 0.0
        %2073 = vmatpush1.msra.mxu0 0.0
        %2074 = vmatprep.subr.mxu0 0.0
        %2075 = vmatpush1.msra.mxu0 0.0
        %2076 = vmatprep.subr.mxu0 0.0
        %2077 = vmatpush1.msra.mxu0 0.0
        %2078 = vmatprep.subr.mxu0 0.0
        %2079 = vmatpush1.msra.mxu0 0.0
        %2080 = vmatprep.subr.mxu0 0.0
        %2081 = vmatpush1.msra.mxu0 0.0
        %2082 = vmatprep.subr.mxu0 0.0
        %2083 = vmatpush1.msra.mxu0 0.0
        %2084 = vmatprep.subr.mxu0 0.0
        %2085 = vmatpush1.msra.mxu0 0.0
        %2086 = vmatprep.subr.mxu0 0.0
        %2087 = vmatpush1.msra.mxu0 0.0
        %2088 = vmatprep.subr.mxu0 0.0
        %2089 = vmatpush1.msra.mxu0 0.0
        %2090 = vmatprep.subr.mxu0 0.0
        %2091 = vmatpush1.msra.mxu0 0.0
        %2092 = vmatprep.subr.mxu0 0.0
        %2093 = vmatpush1.msra.mxu0 0.0
        %2094 = vmatprep.subr.mxu0 0.0
        %2095 = vmatpush1.msra.mxu0 0.0
        %2096 = vmatprep.subr.mxu0 0.0
        %2097 = vmatpush1.msra.mxu0 0.0
        %2098 = vmatprep.subr.mxu0 0.0
        %2099 = vmatpush1.msra.mxu0 0.0
        %2100 = vmatprep.mubr.f32.mxu0 0.0
        %2101 = vmatmul.mubr.f32.gmra.mrb[0].mxu0 %v1946
        %v2102 = vpop.f32.mrb[0].mxu0
        %v2103 = vadd.f32 %v2019, %v2102
        %v2104 = vpop.f32.mrb[0].mxu0
        %v2105 = vadd.f32 %v2023, %v2104
        %2106 = vmatprep.mubr.f32.mxu0 0.0
        %2107 = vmatmul.mubr.f32.gmra.mrb[0].mxu0 %v1947
        %v2108 = vpop.f32.mrb[0].mxu0
        %v2109 = vadd.f32 %v2019, %v2108
        %v2110 = vpop.f32.mrb[0].mxu0
        %v2111 = vadd.f32 %v2023, %v2110
        %2112 = vmatprep.mubr.f32.mxu0 0.0
        %2113 = vmatmul.mubr.f32.gmra.mrb[0].mxu0 %v1948
        %v2114 = vpop.f32.mrb[0].mxu0
        %v2115 = vadd.f32 %v2019, %v2114
        %v2116 = vpop.f32.mrb[0].mxu0
        %v2117 = vadd.f32 %v2023, %v2116
        %2118 = vmatprep.mubr.f32.mxu0 0.0
        %2119 = vmatmul.mubr.f32.gmra.mrb[0].mxu0 %v1949
        %v2120 = vpop.f32.mrb[0].mxu0
        %v2121 = vadd.f32 %v2019, %v2120
        %v2122 = vpop.f32.mrb[0].mxu0
        %v2123 = vadd.f32 %v2023, %v2122
        %2124 = vdwg.mxu0
        %2125 = vmatprep.subr.mxu0 %v1953
        %2126 = vmatpush1.msra.mxu0 %v1952
        %2127 = vmatprep.subr.mxu0 %v1957
        %2128 = vmatpush1.msra.mxu0 %v1956
        %2129 = vmatprep.subr.mxu0 %v1961
        %2130 = vmatpush1.msra.mxu0 %v1960
        %2131 = vmatprep.subr.mxu0 %v1965
        %2132 = vmatpush1.msra.mxu0 %v1964
        %2133 = vmatprep.subr.mxu0 %v1969
        %2134 = vmatpush1.msra.mxu0 %v1968
        %2135 = vmatprep.subr.mxu0 %v1973
        %2136 = vmatpush1.msra.mxu0 %v1972
        %2137 = vmatprep.subr.mxu0 %v1977
        %2138 = vmatpush1.msra.mxu0 %v1976
        %2139 = vmatprep.subr.mxu0 %v1981
        %2140 = vmatpush1.msra.mxu0 %v1980
        %2141 = vmatprep.subr.mxu0 %v1985
        %2142 = vmatpush1.msra.mxu0 %v1984
        %2143 = vmatprep.subr.mxu0 %v1989
        %2144 = vmatpush1.msra.mxu0 %v1988
        %2145 = vmatprep.subr.mxu0 %v1993
        %2146 = vmatpush1.msra.mxu0 %v1992
        %2147 = vmatprep.subr.mxu0 %v1997
        %2148 = vmatpush1.msra.mxu0 %v1996
        %2149 = vmatprep.subr.mxu0 %v2001
        %2150 = vmatpush1.msra.mxu0 %v2000
        %2151 = vmatprep.subr.mxu0 %v2005
        %2152 = vmatpush1.msra.mxu0 %v2004
        %2153 = vmatprep.subr.mxu0 %v2009
        %2154 = vmatpush1.msra.mxu0 %v2008
        %2155 = vmatprep.subr.mxu0 %v2013
        %2156 = vmatpush1.msra.mxu0 %v2012
        %2157 = vmatprep.subr.mxu0 0.0
        %2158 = vmatpush1.msra.mxu0 0.0
        %2159 = vmatprep.subr.mxu0 0.0
        %2160 = vmatpush1.msra.mxu0 0.0
        %2161 = vmatprep.subr.mxu0 0.0
        %2162 = vmatpush1.msra.mxu0 0.0
        %2163 = vmatprep.subr.mxu0 0.0
        %2164 = vmatpush1.msra.mxu0 0.0
        %2165 = vmatprep.subr.mxu0 0.0
        %2166 = vmatpush1.msra.mxu0 0.0
        %2167 = vmatprep.subr.mxu0 0.0
        %2168 = vmatpush1.msra.mxu0 0.0
        %2169 = vmatprep.subr.mxu0 0.0
        %2170 = vmatpush1.msra.mxu0 0.0
        %2171 = vmatprep.subr.mxu0 0.0
        %2172 = vmatpush1.msra.mxu0 0.0
        %2173 = vmatprep.subr.mxu0 0.0
        %2174 = vmatpush1.msra.mxu0 0.0
        %2175 = vmatprep.subr.mxu0 0.0
        %2176 = vmatpush1.msra.mxu0 0.0
        %2177 = vmatprep.subr.mxu0 0.0
        %2178 = vmatpush1.msra.mxu0 0.0
        %2179 = vmatprep.subr.mxu0 0.0
        %2180 = vmatpush1.msra.mxu0 0.0
        %2181 = vmatprep.subr.mxu0 0.0
        %2182 = vmatpush1.msra.mxu0 0.0
        %2183 = vmatprep.subr.mxu0 0.0
        %2184 = vmatpush1.msra.mxu0 0.0
        %2185 = vmatprep.subr.mxu0 0.0
        %2186 = vmatpush1.msra.mxu0 0.0
        %2187 = vmatprep.subr.mxu0 0.0
        %2188 = vmatpush1.msra.mxu0 0.0
        %2189 = vmatprep.mubr.f32.mxu0 0.0
        %2190 = vmatmul.mubr.f32.gmra.mrb[0].mxu0 %v1946
        %v2191 = vpop.f32.mrb[0].mxu0
        %v2192 = vadd.f32 %v2027, %v2191
        %v2193 = vpop.f32.mrb[0].mxu0
        %v2194 = vadd.f32 %v2031, %v2193
        %2195 = vmatprep.mubr.f32.mxu0 0.0
        %2196 = vmatmul.mubr.f32.gmra.mrb[0].mxu0 %v1947
        %v2197 = vpop.f32.mrb[0].mxu0
        %v2198 = vadd.f32 %v2027, %v2197
        %v2199 = vpop.f32.mrb[0].mxu0
        %v2200 = vadd.f32 %v2031, %v2199
        %2201 = vmatprep.mubr.f32.mxu0 0.0
        %2202 = vmatmul.mubr.f32.gmra.mrb[0].mxu0 %v1948
        %v2203 = vpop.f32.mrb[0].mxu0
        %v2204 = vadd.f32 %v2027, %v2203
        %v2205 = vpop.f32.mrb[0].mxu0
        %v2206 = vadd.f32 %v2031, %v2205
        %2207 = vmatprep.mubr.f32.mxu0 0.0
        %2208 = vmatmul.mubr.f32.gmra.mrb[0].mxu0 %v1949
        %v2209 = vpop.f32.mrb[0].mxu0
        %v2210 = vadd.f32 %v2027, %v2209
        %v2211 = vpop.f32.mrb[0].mxu0
        %v2212 = vadd.f32 %v2031, %v2211
        %2213 = vdwg.mxu0
        %v2214 = vtanh.pop %v2103
        %v2215 = vtanh.pop %v2105
        %v2216 = vtanh.pop %v2192
        %v2217 = vtanh.pop %v2194
        %v2218 = vtanh.pop %v2109
        %v2219 = vtanh.pop %v2111
        %v2220 = vtanh.pop %v2198
        %v2221 = vtanh.pop %v2200
        %v2222 = vtanh.pop %v2115
        %v2223 = vtanh.pop %v2117
        %v2224 = vtanh.pop %v2204
        %v2225 = vtanh.pop %v2206
        %v2226 = vtanh.pop %v2121
        %v2227 = vtanh.pop %v2123
        %v2228 = vtanh.pop %v2210
        %v2229 = vtanh.pop %v2212
        %v2230 = vld [vmem:[%s8] sm:$0xff]
        %v2231 = vld [vmem:[%s8 + $0x8] sm:$0xff]
        %v2232 = vld [vmem:[%s8 + $0x10] sm:$0xff]
        %v2233 = vld [vmem:[%s8 + $0x18] sm:$0xff]
        %v2234 = vld [vmem:[%s8 + $0x20] sm:$0xff]
        %v2235 = vld [vmem:[%s8 + $0x28] sm:$0xff]
        %v2236 = vld [vmem:[%s8 + $0x30] sm:$0xff]
        %v2237 = vld [vmem:[%s8 + $0x38] sm:$0xff]
        %v2238 = vld [vmem:[%s8 + $0x40] sm:$0xff]
        %v2239 = vld [vmem:[%s8 + $0x48] sm:$0xff]
        %v2240 = vld [vmem:[%s8 + $0x50] sm:$0xff]
        %v2241 = vld [vmem:[%s8 + $0x58] sm:$0xff]
        %v2242 = vld [vmem:[%s8 + $0x60] sm:$0xff]
        %v2243 = vld [vmem:[%s8 + $0x68] sm:$0xff]
        %v2244 = vld [vmem:[%s8 + $0x70] sm:$0xff]
        %v2245 = vld [vmem:[%s8 + $0x78] sm:$0xff]
        %v2246 = vld [vmem:[%s8 + $0x80] sm:$0xff]
        %v2247 = vld [vmem:[%s8 + $0x88] sm:$0xff]
        %v2248 = vld [vmem:[%s8 + $0x90] sm:$0xff]
        %v2249 = vld [vmem:[%s8 + $0x98] sm:$0xff]
        %v2250 = vld [vmem:[%s8 + $0xa0] sm:$0xff]
        %v2251 = vld [vmem:[%s8 + $0xa8] sm:$0xff]
        %v2252 = vld [vmem:[%s8 + $0xb0] sm:$0xff]
        %v2253 = vld [vmem:[%s8 + $0xb8] sm:$0xff]
        %v2254 = vld [vmem:[%s8 + $0xc0] sm:$0xff]
        %v2255 = vld [vmem:[%s8 + $0xc8] sm:$0xff]
        %v2256 = vld [vmem:[%s8 + $0xd0] sm:$0xff]
        %v2257 = vld [vmem:[%s8 + $0xd8] sm:$0xff]
        %v2258 = vld [vmem:[%s8 + $0xe0] sm:$0xff]
        %v2259 = vld [vmem:[%s8 + $0xe8] sm:$0xff]
        %v2260 = vld [vmem:[%s8 + $0xf0] sm:$0xff]
        %v2261 = vld [vmem:[%s8 + $0xf8] sm:$0xff]
        %v2262 = vld [vmem:[%s8 + $0x100] sm:$0xff]
        %v2263 = vld [vmem:[%s8 + $0x108] sm:$0xff]
        %v2264 = vld [vmem:[%s8 + $0x110] sm:$0xff]
        %v2265 = vld [vmem:[%s8 + $0x118] sm:$0xff]
        %v2266 = vld [vmem:[%s8 + $0x120] sm:$0xff]
        %v2267 = vld [vmem:[%s8 + $0x128] sm:$0xff]
        %v2268 = vld [vmem:[%s8 + $0x130] sm:$0xff]
        %v2269 = vld [vmem:[%s8 + $0x138] sm:$0xff]
        %v2270 = vld [vmem:[%s8 + $0x140] sm:$0xff]
        %v2271 = vld [vmem:[%s8 + $0x148] sm:$0xff]
        %v2272 = vld [vmem:[%s8 + $0x150] sm:$0xff]
        %v2273 = vld [vmem:[%s8 + $0x158] sm:$0xff]
        %v2274 = vld [vmem:[%s8 + $0x160] sm:$0xff]
        %v2275 = vld [vmem:[%s8 + $0x168] sm:$0xff]
        %v2276 = vld [vmem:[%s8 + $0x170] sm:$0xff]
        %v2277 = vld [vmem:[%s8 + $0x178] sm:$0xff]
        %v2278 = vld [vmem:[%s8 + $0x180] sm:$0xff]
        %v2279 = vld [vmem:[%s8 + $0x188] sm:$0xff]
        %v2280 = vld [vmem:[%s8 + $0x190] sm:$0xff]
        %v2281 = vld [vmem:[%s8 + $0x198] sm:$0xff]
        %v2282 = vld [vmem:[%s8 + $0x1a0] sm:$0xff]
        %v2283 = vld [vmem:[%s8 + $0x1a8] sm:$0xff]
        %v2284 = vld [vmem:[%s8 + $0x1b0] sm:$0xff]
        %v2285 = vld [vmem:[%s8 + $0x1b8] sm:$0xff]
        %v2286 = vld [vmem:[%s8 + $0x1c0] sm:$0xff]
        %v2287 = vld [vmem:[%s8 + $0x1c8] sm:$0xff]
        %v2288 = vld [vmem:[%s8 + $0x1d0] sm:$0xff]
        %v2289 = vld [vmem:[%s8 + $0x1d8] sm:$0xff]
        %v2290 = vld [vmem:[%s8 + $0x1e0] sm:$0xff]
        %v2291 = vld [vmem:[%s8 + $0x1e8] sm:$0xff]
        %v2292 = vld [vmem:[%s8 + $0x1f0] sm:$0xff]
        %v2293 = vld [vmem:[%s8 + $0x1f8] sm:$0xff]
        %v2294 = vld [vmem:[%s8 + $0x200] sm:$0xff]
        %v2295 = vld [vmem:[%s8 + $0x208] sm:$0xff]
        %v2296 = vld [vmem:[%s8 + $0x210] sm:$0xff]
        %v2297 = vld [vmem:[%s8 + $0x218] sm:$0xff]
        %v2298 = vld [vmem:[%s8 + $0x220] sm:$0xff]
        %v2299 = vld [vmem:[%s8 + $0x228] sm:$0xff]
        %v2300 = vld [vmem:[%s8 + $0x230] sm:$0xff]
        %v2301 = vld [vmem:[%s8 + $0x238] sm:$0xff]
        %v2302 = vld [vmem:[%s8 + $0x240] sm:$0xff]
        %v2303 = vld [vmem:[%s8 + $0x248] sm:$0xff]
        %v2304 = vld [vmem:[%s8 + $0x250] sm:$0xff]
        %v2305 = vld [vmem:[%s8 + $0x258] sm:$0xff]
        %v2306 = vld [vmem:[%s8 + $0x260] sm:$0xff]
        %v2307 = vld [vmem:[%s8 + $0x268] sm:$0xff]
        %v2308 = vld [vmem:[%s8 + $0x270] sm:$0xff]
        %v2309 = vld [vmem:[%s8 + $0x278] sm:$0xff]
        %v2310 = vld [vmem:[%s8 + $0x280] sm:$0xff]
        %v2311 = vld [vmem:[%s8 + $0x288] sm:$0xff]
        %v2312 = vld [vmem:[%s8 + $0x290] sm:$0xff]
        %v2313 = vld [vmem:[%s8 + $0x298] sm:$0xff]
        %v2314 = vld [vmem:[%s8 + $0x2a0] sm:$0xff]
        %v2315 = vld [vmem:[%s8 + $0x2a8] sm:$0xff]
        %v2316 = vld [vmem:[%s8 + $0x2b0] sm:$0xff]
        %v2317 = vld [vmem:[%s8 + $0x2b8] sm:$0xff]
        %v2318 = vld [vmem:[%s8 + $0x2c0] sm:$0xff]
        %v2319 = vld [vmem:[%s8 + $0x2c8] sm:$0xff]
        %v2320 = vld [vmem:[%s8 + $0x2d0] sm:$0xff]
        %v2321 = vld [vmem:[%s8 + $0x2d8] sm:$0xff]
        %v2322 = vld [vmem:[%s8 + $0x2e0] sm:$0xff]
        %v2323 = vld [vmem:[%s8 + $0x2e8] sm:$0xff]
        %v2324 = vld [vmem:[%s8 + $0x2f0] sm:$0xff]
        %v2325 = vld [vmem:[%s8 + $0x2f8] sm:$0xff]
        %v2326 = vld [vmem:[%s8 + $0x300] sm:$0xff]
        %v2327 = vld [vmem:[%s8 + $0x308] sm:$0xff]
        %v2328 = vld [vmem:[%s8 + $0x310] sm:$0xff]
        %v2329 = vld [vmem:[%s8 + $0x318] sm:$0xff]
        %v2330 = vld [vmem:[%s8 + $0x320] sm:$0xff]
        %v2331 = vld [vmem:[%s8 + $0x328] sm:$0xff]
        %v2332 = vld [vmem:[%s8 + $0x330] sm:$0xff]
        %v2333 = vld [vmem:[%s8 + $0x338] sm:$0xff]
        %v2334 = vld [vmem:[%s8 + $0x340] sm:$0xff]
        %v2335 = vld [vmem:[%s8 + $0x348] sm:$0xff]
        %v2336 = vld [vmem:[%s8 + $0x350] sm:$0xff]
        %v2337 = vld [vmem:[%s8 + $0x358] sm:$0xff]
        %v2338 = vld [vmem:[%s8 + $0x360] sm:$0xff]
        %v2339 = vld [vmem:[%s8 + $0x368] sm:$0xff]
        %v2340 = vld [vmem:[%s8 + $0x370] sm:$0xff]
        %v2341 = vld [vmem:[%s8 + $0x378] sm:$0xff]
        %v2342 = vld [vmem:[%s8 + $0x380] sm:$0xff]
        %v2343 = vld [vmem:[%s8 + $0x388] sm:$0xff]
        %v2344 = vld [vmem:[%s8 + $0x390] sm:$0xff]
        %v2345 = vld [vmem:[%s8 + $0x398] sm:$0xff]
        %v2346 = vld [vmem:[%s8 + $0x3a0] sm:$0xff]
        %v2347 = vld [vmem:[%s8 + $0x3a8] sm:$0xff]
        %v2348 = vld [vmem:[%s8 + $0x3b0] sm:$0xff]
        %v2349 = vld [vmem:[%s8 + $0x3b8] sm:$0xff]
        %v2350 = vld [vmem:[%s8 + $0x3c0] sm:$0xff]
        %v2351 = vld [vmem:[%s8 + $0x3c8] sm:$0xff]
        %v2352 = vld [vmem:[%s8 + $0x3d0] sm:$0xff]
        %v2353 = vld [vmem:[%s8 + $0x3d8] sm:$0xff]
        %v2354 = vld [vmem:[%s8 + $0x3e0] sm:$0xff]
        %v2355 = vld [vmem:[%s8 + $0x3e8] sm:$0xff]
        %v2356 = vld [vmem:[%s8 + $0x3f0] sm:$0xff]
        %v2357 = vld [vmem:[%s8 + $0x3f8] sm:$0xff]
        %v2358 = vld [vmem:[%s8 + $0x400] sm:$0xff]
        %v2359 = vld [vmem:[%s8 + $0x408] sm:$0xff]
        %v2360 = vld [vmem:[%s8 + $0x410] sm:$0xff]
        %v2361 = vld [vmem:[%s8 + $0x418] sm:$0xff]
        %v2362 = vld [vmem:[%s8 + $0x420] sm:$0xff]
        %v2363 = vld [vmem:[%s8 + $0x428] sm:$0xff]
        %v2364 = vld [vmem:[%s8 + $0x430] sm:$0xff]
        %v2365 = vld [vmem:[%s8 + $0x438] sm:$0xff]
        %v2366 = vld [vmem:[%s8 + $0x440] sm:$0xff]
        %v2367 = vld [vmem:[%s8 + $0x448] sm:$0xff]
        %v2368 = vld [vmem:[%s8 + $0x450] sm:$0xff]
        %v2369 = vld [vmem:[%s8 + $0x458] sm:$0xff]
        %v2370 = vld [vmem:[%s8 + $0x460] sm:$0xff]
        %v2371 = vld [vmem:[%s8 + $0x468] sm:$0xff]
        %v2372 = vld [vmem:[%s8 + $0x470] sm:$0xff]
        %v2373 = vld [vmem:[%s8 + $0x478] sm:$0xff]
        %v2374 = vld [vmem:[%s8 + $0x480] sm:$0xff]
        %v2375 = vld [vmem:[%s8 + $0x488] sm:$0xff]
        %v2376 = vld [vmem:[%s8 + $0x490] sm:$0xff]
        %v2377 = vld [vmem:[%s8 + $0x498] sm:$0xff]
        %v2378 = vld [vmem:[%s8 + $0x4a0] sm:$0xff]
        %v2379 = vld [vmem:[%s8 + $0x4a8] sm:$0xff]
        %v2380 = vld [vmem:[%s8 + $0x4b0] sm:$0xff]
        %v2381 = vld [vmem:[%s8 + $0x4b8] sm:$0xff]
        %v2382 = vld [vmem:[%s8 + $0x4c0] sm:$0xff]
        %v2383 = vld [vmem:[%s8 + $0x4c8] sm:$0xff]
        %v2384 = vld [vmem:[%s8 + $0x4d0] sm:$0xff]
        %v2385 = vld [vmem:[%s8 + $0x4d8] sm:$0xff]
        %v2386 = vld [vmem:[%s8 + $0x4e0] sm:$0xff]
        %v2387 = vld [vmem:[%s8 + $0x4e8] sm:$0xff]
        %v2388 = vld [vmem:[%s8 + $0x4f0] sm:$0xff]
        %v2389 = vld [vmem:[%s8 + $0x4f8] sm:$0xff]
        %v2390 = vld [vmem:[%s8 + $0x500] sm:$0xff]
        %v2391 = vld [vmem:[%s8 + $0x508] sm:$0xff]
        %v2392 = vld [vmem:[%s8 + $0x510] sm:$0xff]
        %v2393 = vld [vmem:[%s8 + $0x518] sm:$0xff]
        %v2394 = vld [vmem:[%s8 + $0x520] sm:$0xff]
        %v2395 = vld [vmem:[%s8 + $0x528] sm:$0xff]
        %v2396 = vld [vmem:[%s8 + $0x530] sm:$0xff]
        %v2397 = vld [vmem:[%s8 + $0x538] sm:$0xff]
        %v2398 = vld [vmem:[%s8 + $0x540] sm:$0xff]
        %v2399 = vld [vmem:[%s8 + $0x548] sm:$0xff]
        %v2400 = vld [vmem:[%s8 + $0x550] sm:$0xff]
        %v2401 = vld [vmem:[%s8 + $0x558] sm:$0xff]
        %v2402 = vld [vmem:[%s8 + $0x560] sm:$0xff]
        %v2403 = vld [vmem:[%s8 + $0x568] sm:$0xff]
        %v2404 = vld [vmem:[%s8 + $0x570] sm:$0xff]
        %v2405 = vld [vmem:[%s8 + $0x578] sm:$0xff]
        %v2406 = vld [vmem:[%s8 + $0x580] sm:$0xff]
        %v2407 = vld [vmem:[%s8 + $0x588] sm:$0xff]
        %v2408 = vld [vmem:[%s8 + $0x590] sm:$0xff]
        %v2409 = vld [vmem:[%s8 + $0x598] sm:$0xff]
        %v2410 = vld [vmem:[%s8 + $0x5a0] sm:$0xff]
        %v2411 = vld [vmem:[%s8 + $0x5a8] sm:$0xff]
        %v2412 = vld [vmem:[%s8 + $0x5b0] sm:$0xff]
        %v2413 = vld [vmem:[%s8 + $0x5b8] sm:$0xff]
        %v2414 = vld [vmem:[%s8 + $0x5c0] sm:$0xff]
        %v2415 = vld [vmem:[%s8 + $0x5c8] sm:$0xff]
        %v2416 = vld [vmem:[%s8 + $0x5d0] sm:$0xff]
        %v2417 = vld [vmem:[%s8 + $0x5d8] sm:$0xff]
        %v2418 = vld [vmem:[%s8 + $0x5e0] sm:$0xff]
        %v2419 = vld [vmem:[%s8 + $0x5e8] sm:$0xff]
        %v2420 = vld [vmem:[%s8 + $0x5f0] sm:$0xff]
        %v2421 = vld [vmem:[%s8 + $0x5f8] sm:$0xff]
        %v2422 = vld [vmem:[%s8 + $0x600] sm:$0xff]
        %v2423 = vld [vmem:[%s8 + $0x608] sm:$0xff]
        %v2424 = vld [vmem:[%s8 + $0x610] sm:$0xff]
        %v2425 = vld [vmem:[%s8 + $0x618] sm:$0xff]
        %v2426 = vld [vmem:[%s8 + $0x620] sm:$0xff]
        %v2427 = vld [vmem:[%s8 + $0x628] sm:$0xff]
        %v2428 = vld [vmem:[%s8 + $0x630] sm:$0xff]
        %v2429 = vld [vmem:[%s8 + $0x638] sm:$0xff]
        %v2430 = vld [vmem:[%s8 + $0x640] sm:$0xff]
        %v2431 = vld [vmem:[%s8 + $0x648] sm:$0xff]
        %v2432 = vld [vmem:[%s8 + $0x650] sm:$0xff]
        %v2433 = vld [vmem:[%s8 + $0x658] sm:$0xff]
        %v2434 = vld [vmem:[%s8 + $0x660] sm:$0xff]
        %v2435 = vld [vmem:[%s8 + $0x668] sm:$0xff]
        %v2436 = vld [vmem:[%s8 + $0x670] sm:$0xff]
        %v2437 = vld [vmem:[%s8 + $0x678] sm:$0xff]
        %v2438 = vld [vmem:[%s8 + $0x680] sm:$0xff]
        %v2439 = vld [vmem:[%s8 + $0x688] sm:$0xff]
        %v2440 = vld [vmem:[%s8 + $0x690] sm:$0xff]
        %v2441 = vld [vmem:[%s8 + $0x698] sm:$0xff]
        %v2442 = vld [vmem:[%s8 + $0x6a0] sm:$0xff]
        %v2443 = vld [vmem:[%s8 + $0x6a8] sm:$0xff]
        %v2444 = vld [vmem:[%s8 + $0x6b0] sm:$0xff]
        %v2445 = vld [vmem:[%s8 + $0x6b8] sm:$0xff]
        %v2446 = vld [vmem:[%s8 + $0x6c0] sm:$0xff]
        %v2447 = vld [vmem:[%s8 + $0x6c8] sm:$0xff]
        %v2448 = vld [vmem:[%s8 + $0x6d0] sm:$0xff]
        %v2449 = vld [vmem:[%s8 + $0x6d8] sm:$0xff]
        %v2450 = vld [vmem:[%s8 + $0x6e0] sm:$0xff]
        %v2451 = vld [vmem:[%s8 + $0x6e8] sm:$0xff]
        %v2452 = vld [vmem:[%s8 + $0x6f0] sm:$0xff]
        %v2453 = vld [vmem:[%s8 + $0x6f8] sm:$0xff]
        %v2454 = vld [vmem:[%s8 + $0x700] sm:$0xff]
        %v2455 = vld [vmem:[%s8 + $0x708] sm:$0xff]
        %v2456 = vld [vmem:[%s8 + $0x710] sm:$0xff]
        %v2457 = vld [vmem:[%s8 + $0x718] sm:$0xff]
        %v2458 = vld [vmem:[%s8 + $0x720] sm:$0xff]
        %v2459 = vld [vmem:[%s8 + $0x728] sm:$0xff]
        %v2460 = vld [vmem:[%s8 + $0x730] sm:$0xff]
        %v2461 = vld [vmem:[%s8 + $0x738] sm:$0xff]
        %v2462 = vld [vmem:[%s8 + $0x740] sm:$0xff]
        %v2463 = vld [vmem:[%s8 + $0x748] sm:$0xff]
        %v2464 = vld [vmem:[%s8 + $0x750] sm:$0xff]
        %v2465 = vld [vmem:[%s8 + $0x758] sm:$0xff]
        %v2466 = vld [vmem:[%s8 + $0x760] sm:$0xff]
        %v2467 = vld [vmem:[%s8 + $0x768] sm:$0xff]
        %v2468 = vld [vmem:[%s8 + $0x770] sm:$0xff]
        %v2469 = vld [vmem:[%s8 + $0x778] sm:$0xff]
        %v2470 = vld [vmem:[%s8 + $0x780] sm:$0xff]
        %v2471 = vld [vmem:[%s8 + $0x788] sm:$0xff]
        %v2472 = vld [vmem:[%s8 + $0x790] sm:$0xff]
        %v2473 = vld [vmem:[%s8 + $0x798] sm:$0xff]
        %v2474 = vld [vmem:[%s8 + $0x7a0] sm:$0xff]
        %v2475 = vld [vmem:[%s8 + $0x7a8] sm:$0xff]
        %v2476 = vld [vmem:[%s8 + $0x7b0] sm:$0xff]
        %v2477 = vld [vmem:[%s8 + $0x7b8] sm:$0xff]
        %v2478 = vld [vmem:[%s8 + $0x7c0] sm:$0xff]
        %v2479 = vld [vmem:[%s8 + $0x7c8] sm:$0xff]
        %v2480 = vld [vmem:[%s8 + $0x7d0] sm:$0xff]
        %v2481 = vld [vmem:[%s8 + $0x7d8] sm:$0xff]
        %v2482 = vld [vmem:[%s8 + $0x7e0] sm:$0xff]
        %v2483 = vld [vmem:[%s8 + $0x7e8] sm:$0xff]
        %v2484 = vld [vmem:[%s8 + $0x7f0] sm:$0xff]
        %v2485 = vld [vmem:[%s8 + $0x7f8] sm:$0xff]
        %v2486 = vld [vmem:[%s8 + $0x800] sm:$0xff]
        %v2487 = vld [vmem:[%s8 + $0x808] sm:$0xff]
        %v2488 = vld [vmem:[%s8 + $0x810] sm:$0xff]
        %v2489 = vld [vmem:[%s8 + $0x818] sm:$0xff]
        %v2490 = vld [vmem:[%s8 + $0x820] sm:$0xff]
        %v2491 = vld [vmem:[%s8 + $0x828] sm:$0xff]
        %v2492 = vld [vmem:[%s8 + $0x830] sm:$0xff]
        %v2493 = vld [vmem:[%s8 + $0x838] sm:$0xff]
        %v2494 = vld [vmem:[%s8 + $0x840] sm:$0xff]
        %v2495 = vld [vmem:[%s8 + $0x848] sm:$0xff]
        %v2496 = vld [vmem:[%s8 + $0x850] sm:$0xff]
        %v2497 = vld [vmem:[%s8 + $0x858] sm:$0xff]
        %v2498 = vld [vmem:[%s8 + $0x860] sm:$0xff]
        %v2499 = vld [vmem:[%s8 + $0x868] sm:$0xff]
        %v2500 = vld [vmem:[%s8 + $0x870] sm:$0xff]
        %v2501 = vld [vmem:[%s8 + $0x878] sm:$0xff]
        %v2502 = vld [vmem:[%s8 + $0x880] sm:$0xff]
        %v2503 = vld [vmem:[%s8 + $0x888] sm:$0xff]
        %v2504 = vld [vmem:[%s8 + $0x890] sm:$0xff]
        %v2505 = vld [vmem:[%s8 + $0x898] sm:$0xff]
        %v2506 = vld [vmem:[%s8 + $0x8a0] sm:$0xff]
        %v2507 = vld [vmem:[%s8 + $0x8a8] sm:$0xff]
        %v2508 = vld [vmem:[%s8 + $0x8b0] sm:$0xff]
        %v2509 = vld [vmem:[%s8 + $0x8b8] sm:$0xff]
        %v2510 = vld [vmem:[%s8 + $0x8c0] sm:$0xff]
        %v2511 = vld [vmem:[%s8 + $0x8c8] sm:$0xff]
        %v2512 = vld [vmem:[%s8 + $0x8d0] sm:$0xff]
        %v2513 = vld [vmem:[%s8 + $0x8d8] sm:$0xff]
        %v2514 = vld [vmem:[%s8 + $0x8e0] sm:$0xff]
        %v2515 = vld [vmem:[%s8 + $0x8e8] sm:$0xff]
        %v2516 = vld [vmem:[%s8 + $0x8f0] sm:$0xff]
        %v2517 = vld [vmem:[%s8 + $0x8f8] sm:$0xff]
        %v2518 = vld [vmem:[%s8 + $0x900] sm:$0xff]
        %v2519 = vld [vmem:[%s8 + $0x908] sm:$0xff]
        %v2520 = vld [vmem:[%s8 + $0x910] sm:$0xff]
        %v2521 = vld [vmem:[%s8 + $0x918] sm:$0xff]
        %v2522 = vld [vmem:[%s8 + $0x920] sm:$0xff]
        %v2523 = vld [vmem:[%s8 + $0x928] sm:$0xff]
        %v2524 = vld [vmem:[%s8 + $0x930] sm:$0xff]
        %v2525 = vld [vmem:[%s8 + $0x938] sm:$0xff]
        %v2526 = vld [vmem:[%s8 + $0x940] sm:$0xff]
        %v2527 = vld [vmem:[%s8 + $0x948] sm:$0xff]
        %v2528 = vld [vmem:[%s8 + $0x950] sm:$0xff]
        %v2529 = vld [vmem:[%s8 + $0x958] sm:$0xff]
        %v2530 = vld [vmem:[%s8 + $0x960] sm:$0xff]
        %v2531 = vld [vmem:[%s8 + $0x968] sm:$0xff]
        %v2532 = vld [vmem:[%s8 + $0x970] sm:$0xff]
        %v2533 = vld [vmem:[%s8 + $0x978] sm:$0xff]
        %v2534 = vld [vmem:[%s8 + $0x980] sm:$0xff]
        %v2535 = vld [vmem:[%s8 + $0x988] sm:$0xff]
        %v2536 = vld [vmem:[%s8 + $0x990] sm:$0xff]
        %v2537 = vld [vmem:[%s8 + $0x998] sm:$0xff]
        %v2538 = vld [vmem:[%s8 + $0x9a0] sm:$0xff]
        %v2539 = vld [vmem:[%s8 + $0x9a8] sm:$0xff]
        %v2540 = vld [vmem:[%s8 + $0x9b0] sm:$0xff]
        %v2541 = vld [vmem:[%s8 + $0x9b8] sm:$0xff]
        %v2542 = vld [vmem:[%s8 + $0x9c0] sm:$0xff]
        %v2543 = vld [vmem:[%s8 + $0x9c8] sm:$0xff]
        %v2544 = vld [vmem:[%s8 + $0x9d0] sm:$0xff]
        %v2545 = vld [vmem:[%s8 + $0x9d8] sm:$0xff]
        %v2546 = vld [vmem:[%s8 + $0x9e0] sm:$0xff]
        %v2547 = vld [vmem:[%s8 + $0x9e8] sm:$0xff]
        %v2548 = vld [vmem:[%s8 + $0x9f0] sm:$0xff]
        %v2549 = vld [vmem:[%s8 + $0x9f8] sm:$0xff]
        %v2550 = vld [vmem:[%s8 + $0xa00] sm:$0xff]
        %v2551 = vld [vmem:[%s8 + $0xa08] sm:$0xff]
        %v2552 = vld [vmem:[%s8 + $0xa10] sm:$0xff]
        %v2553 = vld [vmem:[%s8 + $0xa18] sm:$0xff]
        %v2554 = vld [vmem:[%s8 + $0xa20] sm:$0xff]
        %v2555 = vld [vmem:[%s8 + $0xa28] sm:$0xff]
        %v2556 = vld [vmem:[%s8 + $0xa30] sm:$0xff]
        %v2557 = vld [vmem:[%s8 + $0xa38] sm:$0xff]
        %v2558 = vld [vmem:[%s8 + $0xa40] sm:$0xff]
        %v2559 = vld [vmem:[%s8 + $0xa48] sm:$0xff]
        %v2560 = vld [vmem:[%s8 + $0xa50] sm:$0xff]
        %v2561 = vld [vmem:[%s8 + $0xa58] sm:$0xff]
        %v2562 = vld [vmem:[%s8 + $0xa60] sm:$0xff]
        %v2563 = vld [vmem:[%s8 + $0xa68] sm:$0xff]
        %v2564 = vld [vmem:[%s8 + $0xa70] sm:$0xff]
        %v2565 = vld [vmem:[%s8 + $0xa78] sm:$0xff]
        %v2566 = vld [vmem:[%s8 + $0xa80] sm:$0xff]
        %v2567 = vld [vmem:[%s8 + $0xa88] sm:$0xff]
        %v2568 = vld [vmem:[%s8 + $0xa90] sm:$0xff]
        %v2569 = vld [vmem:[%s8 + $0xa98] sm:$0xff]
        %v2570 = vld [vmem:[%s8 + $0xaa0] sm:$0xff]
        %v2571 = vld [vmem:[%s8 + $0xaa8] sm:$0xff]
        %v2572 = vld [vmem:[%s8 + $0xab0] sm:$0xff]
        %v2573 = vld [vmem:[%s8 + $0xab8] sm:$0xff]
        %v2574 = vld [vmem:[%s8 + $0xac0] sm:$0xff]
        %v2575 = vld [vmem:[%s8 + $0xac8] sm:$0xff]
        %v2576 = vld [vmem:[%s8 + $0xad0] sm:$0xff]
        %v2577 = vld [vmem:[%s8 + $0xad8] sm:$0xff]
        %v2578 = vld [vmem:[%s8 + $0xae0] sm:$0xff]
        %v2579 = vld [vmem:[%s8 + $0xae8] sm:$0xff]
        %v2580 = vld [vmem:[%s8 + $0xaf0] sm:$0xff]
        %v2581 = vld [vmem:[%s8 + $0xaf8] sm:$0xff]
        %v2582 = vld [vmem:[%s8 + $0xb00] sm:$0xff]
        %v2583 = vld [vmem:[%s8 + $0xb08] sm:$0xff]
        %v2584 = vld [vmem:[%s8 + $0xb10] sm:$0xff]
        %v2585 = vld [vmem:[%s8 + $0xb18] sm:$0xff]
        %v2586 = vld [vmem:[%s8 + $0xb20] sm:$0xff]
        %v2587 = vld [vmem:[%s8 + $0xb28] sm:$0xff]
        %v2588 = vld [vmem:[%s8 + $0xb30] sm:$0xff]
        %v2589 = vld [vmem:[%s8 + $0xb38] sm:$0xff]
        %v2590 = vld [vmem:[%s8 + $0xb40] sm:$0xff]
        %v2591 = vld [vmem:[%s8 + $0xb48] sm:$0xff]
        %v2592 = vld [vmem:[%s8 + $0xb50] sm:$0xff]
        %v2593 = vld [vmem:[%s8 + $0xb58] sm:$0xff]
        %v2594 = vld [vmem:[%s8 + $0xb60] sm:$0xff]
        %v2595 = vld [vmem:[%s8 + $0xb68] sm:$0xff]
        %v2596 = vld [vmem:[%s8 + $0xb70] sm:$0xff]
        %v2597 = vld [vmem:[%s8 + $0xb78] sm:$0xff]
        %v2598 = vld [vmem:[%s8 + $0xb80] sm:$0xff]
        %v2599 = vld [vmem:[%s8 + $0xb88] sm:$0xff]
        %v2600 = vld [vmem:[%s8 + $0xb90] sm:$0xff]
        %v2601 = vld [vmem:[%s8 + $0xb98] sm:$0xff]
        %v2602 = vld [vmem:[%s8 + $0xba0] sm:$0xff]
        %v2603 = vld [vmem:[%s8 + $0xba8] sm:$0xff]
        %v2604 = vld [vmem:[%s8 + $0xbb0] sm:$0xff]
        %v2605 = vld [vmem:[%s8 + $0xbb8] sm:$0xff]
        %v2606 = vld [vmem:[%s8 + $0xbc0] sm:$0xff]
        %v2607 = vld [vmem:[%s8 + $0xbc8] sm:$0xff]
        %v2608 = vld [vmem:[%s8 + $0xbd0] sm:$0xff]
        %v2609 = vld [vmem:[%s8 + $0xbd8] sm:$0xff]
        %v2610 = vld [vmem:[%s8 + $0xbe0] sm:$0xff]
        %v2611 = vld [vmem:[%s8 + $0xbe8] sm:$0xff]
        %v2612 = vld [vmem:[%s8 + $0xbf0] sm:$0xff]
        %v2613 = vld [vmem:[%s8 + $0xbf8] sm:$0xff]
        %v2614 = vld [vmem:[%s8 + $0xc00] sm:$0xff]
        %v2615 = vld [vmem:[%s8 + $0xc08] sm:$0xff]
        %v2616 = vld [vmem:[%s8 + $0xc10] sm:$0xff]
        %v2617 = vld [vmem:[%s8 + $0xc18] sm:$0xff]
        %v2618 = vld [vmem:[%s8 + $0xc20] sm:$0xff]
        %v2619 = vld [vmem:[%s8 + $0xc28] sm:$0xff]
        %v2620 = vld [vmem:[%s8 + $0xc30] sm:$0xff]
        %v2621 = vld [vmem:[%s8 + $0xc38] sm:$0xff]
        %v2622 = vld [vmem:[%s8 + $0xc40] sm:$0xff]
        %v2623 = vld [vmem:[%s8 + $0xc48] sm:$0xff]
        %v2624 = vld [vmem:[%s8 + $0xc50] sm:$0xff]
        %v2625 = vld [vmem:[%s8 + $0xc58] sm:$0xff]
        %v2626 = vld [vmem:[%s8 + $0xc60] sm:$0xff]
        %v2627 = vld [vmem:[%s8 + $0xc68] sm:$0xff]
        %v2628 = vld [vmem:[%s8 + $0xc70] sm:$0xff]
        %v2629 = vld [vmem:[%s8 + $0xc78] sm:$0xff]
        %v2630 = vld [vmem:[%s8 + $0xc80] sm:$0xff]
        %v2631 = vld [vmem:[%s8 + $0xc88] sm:$0xff]
        %v2632 = vld [vmem:[%s8 + $0xc90] sm:$0xff]
        %v2633 = vld [vmem:[%s8 + $0xc98] sm:$0xff]
        %v2634 = vld [vmem:[%s8 + $0xca0] sm:$0xff]
        %v2635 = vld [vmem:[%s8 + $0xca8] sm:$0xff]
        %v2636 = vld [vmem:[%s8 + $0xcb0] sm:$0xff]
        %v2637 = vld [vmem:[%s8 + $0xcb8] sm:$0xff]
        %v2638 = vld [vmem:[%s8 + $0xcc0] sm:$0xff]
        %v2639 = vld [vmem:[%s8 + $0xcc8] sm:$0xff]
        %v2640 = vld [vmem:[%s8 + $0xcd0] sm:$0xff]
        %v2641 = vld [vmem:[%s8 + $0xcd8] sm:$0xff]
        %v2642 = vld [vmem:[%s8 + $0xce0] sm:$0xff]
        %v2643 = vld [vmem:[%s8 + $0xce8] sm:$0xff]
        %v2644 = vld [vmem:[%s8 + $0xcf0] sm:$0xff]
        %v2645 = vld [vmem:[%s8 + $0xcf8] sm:$0xff]
        %v2646 = vld [vmem:[%s8 + $0xd00] sm:$0xff]
        %v2647 = vld [vmem:[%s8 + $0xd08] sm:$0xff]
        %v2648 = vld [vmem:[%s8 + $0xd10] sm:$0xff]
        %v2649 = vld [vmem:[%s8 + $0xd18] sm:$0xff]
        %v2650 = vld [vmem:[%s8 + $0xd20] sm:$0xff]
        %v2651 = vld [vmem:[%s8 + $0xd28] sm:$0xff]
        %v2652 = vld [vmem:[%s8 + $0xd30] sm:$0xff]
        %v2653 = vld [vmem:[%s8 + $0xd38] sm:$0xff]
        %v2654 = vld [vmem:[%s8 + $0xd40] sm:$0xff]
        %v2655 = vld [vmem:[%s8 + $0xd48] sm:$0xff]
        %v2656 = vld [vmem:[%s8 + $0xd50] sm:$0xff]
        %v2657 = vld [vmem:[%s8 + $0xd58] sm:$0xff]
        %v2658 = vld [vmem:[%s8 + $0xd60] sm:$0xff]
        %v2659 = vld [vmem:[%s8 + $0xd68] sm:$0xff]
        %v2660 = vld [vmem:[%s8 + $0xd70] sm:$0xff]
        %v2661 = vld [vmem:[%s8 + $0xd78] sm:$0xff]
        %v2662 = vld [vmem:[%s8 + $0xd80] sm:$0xff]
        %v2663 = vld [vmem:[%s8 + $0xd88] sm:$0xff]
        %v2664 = vld [vmem:[%s8 + $0xd90] sm:$0xff]
        %v2665 = vld [vmem:[%s8 + $0xd98] sm:$0xff]
        %v2666 = vld [vmem:[%s8 + $0xda0] sm:$0xff]
        %v2667 = vld [vmem:[%s8 + $0xda8] sm:$0xff]
        %v2668 = vld [vmem:[%s8 + $0xdb0] sm:$0xff]
        %v2669 = vld [vmem:[%s8 + $0xdb8] sm:$0xff]
        %v2670 = vld [vmem:[%s8 + $0xdc0] sm:$0xff]
        %v2671 = vld [vmem:[%s8 + $0xdc8] sm:$0xff]
        %v2672 = vld [vmem:[%s8 + $0xdd0] sm:$0xff]
        %v2673 = vld [vmem:[%s8 + $0xdd8] sm:$0xff]
        %v2674 = vld [vmem:[%s8 + $0xde0] sm:$0xff]
        %v2675 = vld [vmem:[%s8 + $0xde8] sm:$0xff]
        %v2676 = vld [vmem:[%s8 + $0xdf0] sm:$0xff]
        %v2677 = vld [vmem:[%s8 + $0xdf8] sm:$0xff]
        %v2678 = vld [vmem:[%s9] sm:$0x7f]
        %v2680 = vlaneseq
        %v2681 = vshrl.u32 %v2680, 7
        %v2682 = vsub.s32 0, %v2681
        %v2683 = vrot.slane %v2678, %v2682
        %v2684 = vlaneseq
        %v2685 = vshrl.u32 %v2684, 7
        %v2686 = vsub.s32 1, %v2685
        %v2687 = vrot.slane %v2678, %v2686
        %v2688 = vlaneseq
        %v2689 = vshrl.u32 %v2688, 7
        %v2690 = vsub.s32 2, %v2689
        %v2691 = vrot.slane %v2678, %v2690
        %v2692 = vlaneseq
        %v2693 = vshrl.u32 %v2692, 7
        %v2694 = vsub.s32 3, %v2693
        %v2695 = vrot.slane %v2678, %v2694
        %v2696 = vlaneseq
        %v2697 = vshrl.u32 %v2696, 7
        %v2698 = vsub.s32 4, %v2697
        %v2699 = vrot.slane %v2678, %v2698
        %v2700 = vlaneseq
        %v2701 = vshrl.u32 %v2700, 7
        %v2702 = vsub.s32 5, %v2701
        %v2703 = vrot.slane %v2678, %v2702
        %v2704 = vlaneseq
        %v2705 = vshrl.u32 %v2704, 7
        %v2706 = vsub.s32 6, %v2705
        %v2707 = vrot.slane %v2678, %v2706
        %2715 = vmatprep.subr.mxu0 %v2231
        %2716 = vmatpush1.msra.mxu0 %v2230
        %2717 = vmatprep.subr.mxu0 %v2238
        %2718 = vmatpush1.msra.mxu0 %v2237
        %2719 = vmatprep.subr.mxu0 %v2245
        %2720 = vmatpush1.msra.mxu0 %v2244
        %2721 = vmatprep.subr.mxu0 %v2252
        %2722 = vmatpush1.msra.mxu0 %v2251
        %2723 = vmatprep.subr.mxu0 %v2259
        %2724 = vmatpush1.msra.mxu0 %v2258
        %2725 = vmatprep.subr.mxu0 %v2266
        %2726 = vmatpush1.msra.mxu0 %v2265
        %2727 = vmatprep.subr.mxu0 %v2273
        %2728 = vmatpush1.msra.mxu0 %v2272
        %2729 = vmatprep.subr.mxu0 %v2280
        %2730 = vmatpush1.msra.mxu0 %v2279
        %2731 = vmatprep.subr.mxu0 %v2287
        %2732 = vmatpush1.msra.mxu0 %v2286
        %2733 = vmatprep.subr.mxu0 %v2294
        %2734 = vmatpush1.msra.mxu0 %v2293
        %2735 = vmatprep.subr.mxu0 %v2301
        %2736 = vmatpush1.msra.mxu0 %v2300
        %2737 = vmatprep.subr.mxu0 %v2308
        %2738 = vmatpush1.msra.mxu0 %v2307
        %2739 = vmatprep.subr.mxu0 %v2315
        %2740 = vmatpush1.msra.mxu0 %v2314
        %2741 = vmatprep.subr.mxu0 %v2322
        %2742 = vmatpush1.msra.mxu0 %v2321
        %2743 = vmatprep.subr.mxu0 %v2329
        %2744 = vmatpush1.msra.mxu0 %v2328
        %2745 = vmatprep.subr.mxu0 %v2336
        %2746 = vmatpush1.msra.mxu0 %v2335
        %2747 = vmatprep.subr.mxu0 %v2343
        %2748 = vmatpush1.msra.mxu0 %v2342
        %2749 = vmatprep.subr.mxu0 %v2350
        %2750 = vmatpush1.msra.mxu0 %v2349
        %2751 = vmatprep.subr.mxu0 %v2357
        %2752 = vmatpush1.msra.mxu0 %v2356
        %2753 = vmatprep.subr.mxu0 %v2364
        %2754 = vmatpush1.msra.mxu0 %v2363
        %2755 = vmatprep.subr.mxu0 %v2371
        %2756 = vmatpush1.msra.mxu0 %v2370
        %2757 = vmatprep.subr.mxu0 %v2378
        %2758 = vmatpush1.msra.mxu0 %v2377
        %2759 = vmatprep.subr.mxu0 %v2385
        %2760 = vmatpush1.msra.mxu0 %v2384
        %2761 = vmatprep.subr.mxu0 %v2392
        %2762 = vmatpush1.msra.mxu0 %v2391
        %2763 = vmatprep.subr.mxu0 %v2399
        %2764 = vmatpush1.msra.mxu0 %v2398
        %2765 = vmatprep.subr.mxu0 %v2406
        %2766 = vmatpush1.msra.mxu0 %v2405
        %2767 = vmatprep.subr.mxu0 %v2413
        %2768 = vmatpush1.msra.mxu0 %v2412
        %2769 = vmatprep.subr.mxu0 %v2420
        %2770 = vmatpush1.msra.mxu0 %v2419
        %2771 = vmatprep.subr.mxu0 %v2427
        %2772 = vmatpush1.msra.mxu0 %v2426
        %2773 = vmatprep.subr.mxu0 %v2434
        %2774 = vmatpush1.msra.mxu0 %v2433
        %2775 = vmatprep.subr.mxu0 %v2441
        %2776 = vmatpush1.msra.mxu0 %v2440
        %2777 = vmatprep.subr.mxu0 %v2448
        %2778 = vmatpush1.msra.mxu0 %v2447
        %2779 = vmatprep.mubr.f32.mxu0 %v2215
        %2780 = vmatmul.mubr.f32.gmra.mrb[0].mxu0 %v2214
        %v2781 = vpop.f32.mrb[0].mxu0
        %v2782 = vadd.f32 %v2683, %v2781
        %v2783 = vpop.f32.mrb[0].mxu0
        %v2784 = vadd.f32 %v2687, %v2783
        %2785 = vmatprep.mubr.f32.mxu0 %v2219
        %2786 = vmatmul.mubr.f32.gmra.mrb[0].mxu0 %v2218
        %v2787 = vpop.f32.mrb[0].mxu0
        %v2788 = vadd.f32 %v2683, %v2787
        %v2789 = vpop.f32.mrb[0].mxu0
        %v2790 = vadd.f32 %v2687, %v2789
        %2791 = vmatprep.mubr.f32.mxu0 %v2223
        %2792 = vmatmul.mubr.f32.gmra.mrb[0].mxu0 %v2222
        %v2793 = vpop.f32.mrb[0].mxu0
        %v2794 = vadd.f32 %v2683, %v2793
        %v2795 = vpop.f32.mrb[0].mxu0
        %v2796 = vadd.f32 %v2687, %v2795
        %2797 = vmatprep.mubr.f32.mxu0 %v2227
        %2798 = vmatmul.mubr.f32.gmra.mrb[0].mxu0 %v2226
        %v2799 = vpop.f32.mrb[0].mxu0
        %v2800 = vadd.f32 %v2683, %v2799
        %v2801 = vpop.f32.mrb[0].mxu0
        %v2802 = vadd.f32 %v2687, %v2801
        %2803 = vdwg.mxu0
        %2804 = vmatprep.subr.mxu0 %v2455
        %2805 = vmatpush1.msra.mxu0 %v2454
        %2806 = vmatprep.subr.mxu0 %v2462
        %2807 = vmatpush1.msra.mxu0 %v2461
        %2808 = vmatprep.subr.mxu0 %v2469
        %2809 = vmatpush1.msra.mxu0 %v2468
        %2810 = vmatprep.subr.mxu0 %v2476
        %2811 = vmatpush1.msra.mxu0 %v2475
        %2812 = vmatprep.subr.mxu0 %v2483
        %2813 = vmatpush1.msra.mxu0 %v2482
        %2814 = vmatprep.subr.mxu0 %v2490
        %2815 = vmatpush1.msra.mxu0 %v2489
        %2816 = vmatprep.subr.mxu0 %v2497
        %2817 = vmatpush1.msra.mxu0 %v2496
        %2818 = vmatprep.subr.mxu0 %v2504
        %2819 = vmatpush1.msra.mxu0 %v2503
        %2820 = vmatprep.subr.mxu0 %v2511
        %2821 = vmatpush1.msra.mxu0 %v2510
        %2822 = vmatprep.subr.mxu0 %v2518
        %2823 = vmatpush1.msra.mxu0 %v2517
        %2824 = vmatprep.subr.mxu0 %v2525
        %2825 = vmatpush1.msra.mxu0 %v2524
        %2826 = vmatprep.subr.mxu0 %v2532
        %2827 = vmatpush1.msra.mxu0 %v2531
        %2828 = vmatprep.subr.mxu0 %v2539
        %2829 = vmatpush1.msra.mxu0 %v2538
        %2830 = vmatprep.subr.mxu0 %v2546
        %2831 = vmatpush1.msra.mxu0 %v2545
        %2832 = vmatprep.subr.mxu0 %v2553
        %2833 = vmatpush1.msra.mxu0 %v2552
        %2834 = vmatprep.subr.mxu0 %v2560
        %2835 = vmatpush1.msra.mxu0 %v2559
        %2836 = vmatprep.subr.mxu0 %v2567
        %2837 = vmatpush1.msra.mxu0 %v2566
        %2838 = vmatprep.subr.mxu0 %v2574
        %2839 = vmatpush1.msra.mxu0 %v2573
        %2840 = vmatprep.subr.mxu0 %v2581
        %2841 = vmatpush1.msra.mxu0 %v2580
        %2842 = vmatprep.subr.mxu0 %v2588
        %2843 = vmatpush1.msra.mxu0 %v2587
        %2844 = vmatprep.subr.mxu0 %v2595
        %2845 = vmatpush1.msra.mxu0 %v2594
        %2846 = vmatprep.subr.mxu0 %v2602
        %2847 = vmatpush1.msra.mxu0 %v2601
        %2848 = vmatprep.subr.mxu0 %v2609
        %2849 = vmatpush1.msra.mxu0 %v2608
        %2850 = vmatprep.subr.mxu0 %v2616
        %2851 = vmatpush1.msra.mxu0 %v2615
        %2852 = vmatprep.subr.mxu0 %v2623
        %2853 = vmatpush1.msra.mxu0 %v2622
        %2854 = vmatprep.subr.mxu0 %v2630
        %2855 = vmatpush1.msra.mxu0 %v2629
        %2856 = vmatprep.subr.mxu0 %v2637
        %2857 = vmatpush1.msra.mxu0 %v2636
        %2858 = vmatprep.subr.mxu0 %v2644
        %2859 = vmatpush1.msra.mxu0 %v2643
        %2860 = vmatprep.subr.mxu0 %v2651
        %2861 = vmatpush1.msra.mxu0 %v2650
        %2862 = vmatprep.subr.mxu0 %v2658
        %2863 = vmatpush1.msra.mxu0 %v2657
        %2864 = vmatprep.subr.mxu0 %v2665
        %2865 = vmatpush1.msra.mxu0 %v2664
        %2866 = vmatprep.subr.mxu0 %v2672
        %2867 = vmatpush1.msra.mxu0 %v2671
        %2868 = vmatprep.mubr.f32.mxu0 %v2217
        %2869 = vmatmul.mubr.f32.gmra.mrb[0].mxu0 %v2216
        %v2870 = vpop.f32.mrb[0].mxu0
        %v2871 = vadd.f32 %v2782, %v2870
        %v2872 = vpop.f32.mrb[0].mxu0
        %v2873 = vadd.f32 %v2784, %v2872
        %2874 = vmatprep.mubr.f32.mxu0 %v2221
        %2875 = vmatmul.mubr.f32.gmra.mrb[0].mxu0 %v2220
        %v2876 = vpop.f32.mrb[0].mxu0
        %v2877 = vadd.f32 %v2788, %v2876
        %v2878 = vpop.f32.mrb[0].mxu0
        %v2879 = vadd.f32 %v2790, %v2878
        %2880 = vmatprep.mubr.f32.mxu0 %v2225
        %2881 = vmatmul.mubr.f32.gmra.mrb[0].mxu0 %v2224
        %v2882 = vpop.f32.mrb[0].mxu0
        %v2883 = vadd.f32 %v2794, %v2882
        %v2884 = vpop.f32.mrb[0].mxu0
        %v2885 = vadd.f32 %v2796, %v2884
        %2886 = vmatprep.mubr.f32.mxu0 %v2229
        %2887 = vmatmul.mubr.f32.gmra.mrb[0].mxu0 %v2228
        %v2888 = vpop.f32.mrb[0].mxu0
        %v2889 = vadd.f32 %v2800, %v2888
        %v2890 = vpop.f32.mrb[0].mxu0
        %v2891 = vadd.f32 %v2802, %v2890
        %2892 = vdwg.mxu0
        %2893 = vmatprep.subr.mxu0 %v2233
        %2894 = vmatpush1.msra.mxu0 %v2232
        %2895 = vmatprep.subr.mxu0 %v2240
        %2896 = vmatpush1.msra.mxu0 %v2239
        %2897 = vmatprep.subr.mxu0 %v2247
        %2898 = vmatpush1.msra.mxu0 %v2246
        %2899 = vmatprep.subr.mxu0 %v2254
        %2900 = vmatpush1.msra.mxu0 %v2253
        %2901 = vmatprep.subr.mxu0 %v2261
        %2902 = vmatpush1.msra.mxu0 %v2260
        %2903 = vmatprep.subr.mxu0 %v2268
        %2904 = vmatpush1.msra.mxu0 %v2267
        %2905 = vmatprep.subr.mxu0 %v2275
        %2906 = vmatpush1.msra.mxu0 %v2274
        %2907 = vmatprep.subr.mxu0 %v2282
        %2908 = vmatpush1.msra.mxu0 %v2281
        %2909 = vmatprep.subr.mxu0 %v2289
        %2910 = vmatpush1.msra.mxu0 %v2288
        %2911 = vmatprep.subr.mxu0 %v2296
        %2912 = vmatpush1.msra.mxu0 %v2295
        %2913 = vmatprep.subr.mxu0 %v2303
        %2914 = vmatpush1.msra.mxu0 %v2302
        %2915 = vmatprep.subr.mxu0 %v2310
        %2916 = vmatpush1.msra.mxu0 %v2309
        %2917 = vmatprep.subr.mxu0 %v2317
        %2918 = vmatpush1.msra.mxu0 %v2316
        %2919 = vmatprep.subr.mxu0 %v2324
        %2920 = vmatpush1.msra.mxu0 %v2323
        %2921 = vmatprep.subr.mxu0 %v2331
        %2922 = vmatpush1.msra.mxu0 %v2330
        %2923 = vmatprep.subr.mxu0 %v2338
        %2924 = vmatpush1.msra.mxu0 %v2337
        %2925 = vmatprep.subr.mxu0 %v2345
        %2926 = vmatpush1.msra.mxu0 %v2344
        %2927 = vmatprep.subr.mxu0 %v2352
        %2928 = vmatpush1.msra.mxu0 %v2351
        %2929 = vmatprep.subr.mxu0 %v2359
        %2930 = vmatpush1.msra.mxu0 %v2358
        %2931 = vmatprep.subr.mxu0 %v2366
        %2932 = vmatpush1.msra.mxu0 %v2365
        %2933 = vmatprep.subr.mxu0 %v2373
        %2934 = vmatpush1.msra.mxu0 %v2372
        %2935 = vmatprep.subr.mxu0 %v2380
        %2936 = vmatpush1.msra.mxu0 %v2379
        %2937 = vmatprep.subr.mxu0 %v2387
        %2938 = vmatpush1.msra.mxu0 %v2386
        %2939 = vmatprep.subr.mxu0 %v2394
        %2940 = vmatpush1.msra.mxu0 %v2393
        %2941 = vmatprep.subr.mxu0 %v2401
        %2942 = vmatpush1.msra.mxu0 %v2400
        %2943 = vmatprep.subr.mxu0 %v2408
        %2944 = vmatpush1.msra.mxu0 %v2407
        %2945 = vmatprep.subr.mxu0 %v2415
        %2946 = vmatpush1.msra.mxu0 %v2414
        %2947 = vmatprep.subr.mxu0 %v2422
        %2948 = vmatpush1.msra.mxu0 %v2421
        %2949 = vmatprep.subr.mxu0 %v2429
        %2950 = vmatpush1.msra.mxu0 %v2428
        %2951 = vmatprep.subr.mxu0 %v2436
        %2952 = vmatpush1.msra.mxu0 %v2435
        %2953 = vmatprep.subr.mxu0 %v2443
        %2954 = vmatpush1.msra.mxu0 %v2442
        %2955 = vmatprep.subr.mxu0 %v2450
        %2956 = vmatpush1.msra.mxu0 %v2449
        %2957 = vmatprep.mubr.f32.mxu0 %v2215
        %2958 = vmatmul.mubr.f32.gmra.mrb[0].mxu0 %v2214
        %v2959 = vpop.f32.mrb[0].mxu0
        %v2960 = vadd.f32 %v2691, %v2959
        %v2961 = vpop.f32.mrb[0].mxu0
        %v2962 = vadd.f32 %v2695, %v2961
        %2963 = vmatprep.mubr.f32.mxu0 %v2219
        %2964 = vmatmul.mubr.f32.gmra.mrb[0].mxu0 %v2218
        %v2965 = vpop.f32.mrb[0].mxu0
        %v2966 = vadd.f32 %v2691, %v2965
        %v2967 = vpop.f32.mrb[0].mxu0
        %v2968 = vadd.f32 %v2695, %v2967
        %2969 = vmatprep.mubr.f32.mxu0 %v2223
        %2970 = vmatmul.mubr.f32.gmra.mrb[0].mxu0 %v2222
        %v2971 = vpop.f32.mrb[0].mxu0
        %v2972 = vadd.f32 %v2691, %v2971
        %v2973 = vpop.f32.mrb[0].mxu0
        %v2974 = vadd.f32 %v2695, %v2973
        %2975 = vmatprep.mubr.f32.mxu0 %v2227
        %2976 = vmatmul.mubr.f32.gmra.mrb[0].mxu0 %v2226
        %v2977 = vpop.f32.mrb[0].mxu0
        %v2978 = vadd.f32 %v2691, %v2977
        %v2979 = vpop.f32.mrb[0].mxu0
        %v2980 = vadd.f32 %v2695, %v2979
        %2981 = vdwg.mxu0
        %2982 = vmatprep.subr.mxu0 %v2457
        %2983 = vmatpush1.msra.mxu0 %v2456
        %2984 = vmatprep.subr.mxu0 %v2464
        %2985 = vmatpush1.msra.mxu0 %v2463
        %2986 = vmatprep.subr.mxu0 %v2471
        %2987 = vmatpush1.msra.mxu0 %v2470
        %2988 = vmatprep.subr.mxu0 %v2478
        %2989 = vmatpush1.msra.mxu0 %v2477
        %2990 = vmatprep.subr.mxu0 %v2485
        %2991 = vmatpush1.msra.mxu0 %v2484
        %2992 = vmatprep.subr.mxu0 %v2492
        %2993 = vmatpush1.msra.mxu0 %v2491
        %2994 = vmatprep.subr.mxu0 %v2499
        %2995 = vmatpush1.msra.mxu0 %v2498
        %2996 = vmatprep.subr.mxu0 %v2506
        %2997 = vmatpush1.msra.mxu0 %v2505
        %2998 = vmatprep.subr.mxu0 %v2513
        %2999 = vmatpush1.msra.mxu0 %v2512
        %3000 = vmatprep.subr.mxu0 %v2520
        %3001 = vmatpush1.msra.mxu0 %v2519
        %3002 = vmatprep.subr.mxu0 %v2527
        %3003 = vmatpush1.msra.mxu0 %v2526
        %3004 = vmatprep.subr.mxu0 %v2534
        %3005 = vmatpush1.msra.mxu0 %v2533
        %3006 = vmatprep.subr.mxu0 %v2541
        %3007 = vmatpush1.msra.mxu0 %v2540
        %3008 = vmatprep.subr.mxu0 %v2548
        %3009 = vmatpush1.msra.mxu0 %v2547
        %3010 = vmatprep.subr.mxu0 %v2555
        %3011 = vmatpush1.msra.mxu0 %v2554
        %3012 = vmatprep.subr.mxu0 %v2562
        %3013 = vmatpush1.msra.mxu0 %v2561
        %3014 = vmatprep.subr.mxu0 %v2569
        %3015 = vmatpush1.msra.mxu0 %v2568
        %3016 = vmatprep.subr.mxu0 %v2576
        %3017 = vmatpush1.msra.mxu0 %v2575
        %3018 = vmatprep.subr.mxu0 %v2583
        %3019 = vmatpush1.msra.mxu0 %v2582
        %3020 = vmatprep.subr.mxu0 %v2590
        %3021 = vmatpush1.msra.mxu0 %v2589
        %3022 = vmatprep.subr.mxu0 %v2597
        %3023 = vmatpush1.msra.mxu0 %v2596
        %3024 = vmatprep.subr.mxu0 %v2604
        %3025 = vmatpush1.msra.mxu0 %v2603
        %3026 = vmatprep.subr.mxu0 %v2611
        %3027 = vmatpush1.msra.mxu0 %v2610
        %3028 = vmatprep.subr.mxu0 %v2618
        %3029 = vmatpush1.msra.mxu0 %v2617
        %3030 = vmatprep.subr.mxu0 %v2625
        %3031 = vmatpush1.msra.mxu0 %v2624
        %3032 = vmatprep.subr.mxu0 %v2632
        %3033 = vmatpush1.msra.mxu0 %v2631
        %3034 = vmatprep.subr.mxu0 %v2639
        %3035 = vmatpush1.msra.mxu0 %v2638
        %3036 = vmatprep.subr.mxu0 %v2646
        %3037 = vmatpush1.msra.mxu0 %v2645
        %3038 = vmatprep.subr.mxu0 %v2653
        %3039 = vmatpush1.msra.mxu0 %v2652
        %3040 = vmatprep.subr.mxu0 %v2660
        %3041 = vmatpush1.msra.mxu0 %v2659
        %3042 = vmatprep.subr.mxu0 %v2667
        %3043 = vmatpush1.msra.mxu0 %v2666
        %3044 = vmatprep.subr.mxu0 %v2674
        %3045 = vmatpush1.msra.mxu0 %v2673
        %3046 = vmatprep.mubr.f32.mxu0 %v2217
        %3047 = vmatmul.mubr.f32.gmra.mrb[0].mxu0 %v2216
        %v3048 = vpop.f32.mrb[0].mxu0
        %v3049 = vadd.f32 %v2960, %v3048
        %v3050 = vpop.f32.mrb[0].mxu0
        %v3051 = vadd.f32 %v2962, %v3050
        %3052 = vmatprep.mubr.f32.mxu0 %v2221
        %3053 = vmatmul.mubr.f32.gmra.mrb[0].mxu0 %v2220
        %v3054 = vpop.f32.mrb[0].mxu0
        %v3055 = vadd.f32 %v2966, %v3054
        %v3056 = vpop.f32.mrb[0].mxu0
        %v3057 = vadd.f32 %v2968, %v3056
        %3058 = vmatprep.mubr.f32.mxu0 %v2225
        %3059 = vmatmul.mubr.f32.gmra.mrb[0].mxu0 %v2224
        %v3060 = vpop.f32.mrb[0].mxu0
        %v3061 = vadd.f32 %v2972, %v3060
        %v3062 = vpop.f32.mrb[0].mxu0
        %v3063 = vadd.f32 %v2974, %v3062
        %3064 = vmatprep.mubr.f32.mxu0 %v2229
        %3065 = vmatmul.mubr.f32.gmra.mrb[0].mxu0 %v2228
        %v3066 = vpop.f32.mrb[0].mxu0
        %v3067 = vadd.f32 %v2978, %v3066
        %v3068 = vpop.f32.mrb[0].mxu0
        %v3069 = vadd.f32 %v2980, %v3068
        %3070 = vdwg.mxu0
        %3071 = vmatprep.subr.mxu0 %v2235
        %3072 = vmatpush1.msra.mxu0 %v2234
        %3073 = vmatprep.subr.mxu0 %v2242
        %3074 = vmatpush1.msra.mxu0 %v2241
        %3075 = vmatprep.subr.mxu0 %v2249
        %3076 = vmatpush1.msra.mxu0 %v2248
        %3077 = vmatprep.subr.mxu0 %v2256
        %3078 = vmatpush1.msra.mxu0 %v2255
        %3079 = vmatprep.subr.mxu0 %v2263
        %3080 = vmatpush1.msra.mxu0 %v2262
        %3081 = vmatprep.subr.mxu0 %v2270
        %3082 = vmatpush1.msra.mxu0 %v2269
        %3083 = vmatprep.subr.mxu0 %v2277
        %3084 = vmatpush1.msra.mxu0 %v2276
        %3085 = vmatprep.subr.mxu0 %v2284
        %3086 = vmatpush1.msra.mxu0 %v2283
        %3087 = vmatprep.subr.mxu0 %v2291
        %3088 = vmatpush1.msra.mxu0 %v2290
        %3089 = vmatprep.subr.mxu0 %v2298
        %3090 = vmatpush1.msra.mxu0 %v2297
        %3091 = vmatprep.subr.mxu0 %v2305
        %3092 = vmatpush1.msra.mxu0 %v2304
        %3093 = vmatprep.subr.mxu0 %v2312
        %3094 = vmatpush1.msra.mxu0 %v2311
        %3095 = vmatprep.subr.mxu0 %v2319
        %3096 = vmatpush1.msra.mxu0 %v2318
        %3097 = vmatprep.subr.mxu0 %v2326
        %3098 = vmatpush1.msra.mxu0 %v2325
        %3099 = vmatprep.subr.mxu0 %v2333
        %3100 = vmatpush1.msra.mxu0 %v2332
        %3101 = vmatprep.subr.mxu0 %v2340
        %3102 = vmatpush1.msra.mxu0 %v2339
        %3103 = vmatprep.subr.mxu0 %v2347
        %3104 = vmatpush1.msra.mxu0 %v2346
        %3105 = vmatprep.subr.mxu0 %v2354
        %3106 = vmatpush1.msra.mxu0 %v2353
        %3107 = vmatprep.subr.mxu0 %v2361
        %3108 = vmatpush1.msra.mxu0 %v2360
        %3109 = vmatprep.subr.mxu0 %v2368
        %3110 = vmatpush1.msra.mxu0 %v2367
        %3111 = vmatprep.subr.mxu0 %v2375
        %3112 = vmatpush1.msra.mxu0 %v2374
        %3113 = vmatprep.subr.mxu0 %v2382
        %3114 = vmatpush1.msra.mxu0 %v2381
        %3115 = vmatprep.subr.mxu0 %v2389
        %3116 = vmatpush1.msra.mxu0 %v2388
        %3117 = vmatprep.subr.mxu0 %v2396
        %3118 = vmatpush1.msra.mxu0 %v2395
        %3119 = vmatprep.subr.mxu0 %v2403
        %3120 = vmatpush1.msra.mxu0 %v2402
        %3121 = vmatprep.subr.mxu0 %v2410
        %3122 = vmatpush1.msra.mxu0 %v2409
        %3123 = vmatprep.subr.mxu0 %v2417
        %3124 = vmatpush1.msra.mxu0 %v2416
        %3125 = vmatprep.subr.mxu0 %v2424
        %3126 = vmatpush1.msra.mxu0 %v2423
        %3127 = vmatprep.subr.mxu0 %v2431
        %3128 = vmatpush1.msra.mxu0 %v2430
        %3129 = vmatprep.subr.mxu0 %v2438
        %3130 = vmatpush1.msra.mxu0 %v2437
        %3131 = vmatprep.subr.mxu0 %v2445
        %3132 = vmatpush1.msra.mxu0 %v2444
        %3133 = vmatprep.subr.mxu0 %v2452
        %3134 = vmatpush1.msra.mxu0 %v2451
        %3135 = vmatprep.mubr.f32.mxu0 %v2215
        %3136 = vmatmul.mubr.f32.gmra.mrb[0].mxu0 %v2214
        %v3137 = vpop.f32.mrb[0].mxu0
        %v3138 = vadd.f32 %v2699, %v3137
        %v3139 = vpop.f32.mrb[0].mxu0
        %v3140 = vadd.f32 %v2703, %v3139
        %3141 = vmatprep.mubr.f32.mxu0 %v2219
        %3142 = vmatmul.mubr.f32.gmra.mrb[0].mxu0 %v2218
        %v3143 = vpop.f32.mrb[0].mxu0
        %v3144 = vadd.f32 %v2699, %v3143
        %v3145 = vpop.f32.mrb[0].mxu0
        %v3146 = vadd.f32 %v2703, %v3145
        %3147 = vmatprep.mubr.f32.mxu0 %v2223
        %3148 = vmatmul.mubr.f32.gmra.mrb[0].mxu0 %v2222
        %v3149 = vpop.f32.mrb[0].mxu0
        %v3150 = vadd.f32 %v2699, %v3149
        %v3151 = vpop.f32.mrb[0].mxu0
        %v3152 = vadd.f32 %v2703, %v3151
        %3153 = vmatprep.mubr.f32.mxu0 %v2227
        %3154 = vmatmul.mubr.f32.gmra.mrb[0].mxu0 %v2226
        %v3155 = vpop.f32.mrb[0].mxu0
        %v3156 = vadd.f32 %v2699, %v3155
        %v3157 = vpop.f32.mrb[0].mxu0
        %v3158 = vadd.f32 %v2703, %v3157
        %3159 = vdwg.mxu0
        %3160 = vmatprep.subr.mxu0 %v2459
        %3161 = vmatpush1.msra.mxu0 %v2458
        %3162 = vmatprep.subr.mxu0 %v2466
        %3163 = vmatpush1.msra.mxu0 %v2465
        %3164 = vmatprep.subr.mxu0 %v2473
        %3165 = vmatpush1.msra.mxu0 %v2472
        %3166 = vmatprep.subr.mxu0 %v2480
        %3167 = vmatpush1.msra.mxu0 %v2479
        %3168 = vmatprep.subr.mxu0 %v2487
        %3169 = vmatpush1.msra.mxu0 %v2486
        %3170 = vmatprep.subr.mxu0 %v2494
        %3171 = vmatpush1.msra.mxu0 %v2493
        %3172 = vmatprep.subr.mxu0 %v2501
        %3173 = vmatpush1.msra.mxu0 %v2500
        %3174 = vmatprep.subr.mxu0 %v2508
        %3175 = vmatpush1.msra.mxu0 %v2507
        %3176 = vmatprep.subr.mxu0 %v2515
        %3177 = vmatpush1.msra.mxu0 %v2514
        %3178 = vmatprep.subr.mxu0 %v2522
        %3179 = vmatpush1.msra.mxu0 %v2521
        %3180 = vmatprep.subr.mxu0 %v2529
        %3181 = vmatpush1.msra.mxu0 %v2528
        %3182 = vmatprep.subr.mxu0 %v2536
        %3183 = vmatpush1.msra.mxu0 %v2535
        %3184 = vmatprep.subr.mxu0 %v2543
        %3185 = vmatpush1.msra.mxu0 %v2542
        %3186 = vmatprep.subr.mxu0 %v2550
        %3187 = vmatpush1.msra.mxu0 %v2549
        %3188 = vmatprep.subr.mxu0 %v2557
        %3189 = vmatpush1.msra.mxu0 %v2556
        %3190 = vmatprep.subr.mxu0 %v2564
        %3191 = vmatpush1.msra.mxu0 %v2563
        %3192 = vmatprep.subr.mxu0 %v2571
        %3193 = vmatpush1.msra.mxu0 %v2570
        %3194 = vmatprep.subr.mxu0 %v2578
        %3195 = vmatpush1.msra.mxu0 %v2577
        %3196 = vmatprep.subr.mxu0 %v2585
        %3197 = vmatpush1.msra.mxu0 %v2584
        %3198 = vmatprep.subr.mxu0 %v2592
        %3199 = vmatpush1.msra.mxu0 %v2591
        %3200 = vmatprep.subr.mxu0 %v2599
        %3201 = vmatpush1.msra.mxu0 %v2598
        %3202 = vmatprep.subr.mxu0 %v2606
        %3203 = vmatpush1.msra.mxu0 %v2605
        %3204 = vmatprep.subr.mxu0 %v2613
        %3205 = vmatpush1.msra.mxu0 %v2612
        %3206 = vmatprep.subr.mxu0 %v2620
        %3207 = vmatpush1.msra.mxu0 %v2619
        %3208 = vmatprep.subr.mxu0 %v2627
        %3209 = vmatpush1.msra.mxu0 %v2626
        %3210 = vmatprep.subr.mxu0 %v2634
        %3211 = vmatpush1.msra.mxu0 %v2633
        %3212 = vmatprep.subr.mxu0 %v2641
        %3213 = vmatpush1.msra.mxu0 %v2640
        %3214 = vmatprep.subr.mxu0 %v2648
        %3215 = vmatpush1.msra.mxu0 %v2647
        %3216 = vmatprep.subr.mxu0 %v2655
        %3217 = vmatpush1.msra.mxu0 %v2654
        %3218 = vmatprep.subr.mxu0 %v2662
        %3219 = vmatpush1.msra.mxu0 %v2661
        %3220 = vmatprep.subr.mxu0 %v2669
        %3221 = vmatpush1.msra.mxu0 %v2668
        %3222 = vmatprep.subr.mxu0 %v2676
        %3223 = vmatpush1.msra.mxu0 %v2675
        %3224 = vmatprep.mubr.f32.mxu0 %v2217
        %3225 = vmatmul.mubr.f32.gmra.mrb[0].mxu0 %v2216
        %v3226 = vpop.f32.mrb[0].mxu0
        %v3227 = vadd.f32 %v3138, %v3226
        %v3228 = vpop.f32.mrb[0].mxu0
        %v3229 = vadd.f32 %v3140, %v3228
        %3230 = vmatprep.mubr.f32.mxu0 %v2221
        %3231 = vmatmul.mubr.f32.gmra.mrb[0].mxu0 %v2220
        %v3232 = vpop.f32.mrb[0].mxu0
        %v3233 = vadd.f32 %v3144, %v3232
        %v3234 = vpop.f32.mrb[0].mxu0
        %v3235 = vadd.f32 %v3146, %v3234
        %3236 = vmatprep.mubr.f32.mxu0 %v2225
        %3237 = vmatmul.mubr.f32.gmra.mrb[0].mxu0 %v2224
        %v3238 = vpop.f32.mrb[0].mxu0
        %v3239 = vadd.f32 %v3150, %v3238
        %v3240 = vpop.f32.mrb[0].mxu0
        %v3241 = vadd.f32 %v3152, %v3240
        %3242 = vmatprep.mubr.f32.mxu0 %v2229
        %3243 = vmatmul.mubr.f32.gmra.mrb[0].mxu0 %v2228
        %v3244 = vpop.f32.mrb[0].mxu0
        %v3245 = vadd.f32 %v3156, %v3244
        %v3246 = vpop.f32.mrb[0].mxu0
        %v3247 = vadd.f32 %v3158, %v3246
        %3248 = vdwg.mxu0
        %3249 = vmatprep.subr.mxu0 0.0
        %3250 = vmatpush1.msra.mxu0 %v2236
        %3251 = vmatprep.subr.mxu0 0.0
        %3252 = vmatpush1.msra.mxu0 %v2243
        %3253 = vmatprep.subr.mxu0 0.0
        %3254 = vmatpush1.msra.mxu0 %v2250
        %3255 = vmatprep.subr.mxu0 0.0
        %3256 = vmatpush1.msra.mxu0 %v2257
        %3257 = vmatprep.subr.mxu0 0.0
        %3258 = vmatpush1.msra.mxu0 %v2264
        %3259 = vmatprep.subr.mxu0 0.0
        %3260 = vmatpush1.msra.mxu0 %v2271
        %3261 = vmatprep.subr.mxu0 0.0
        %3262 = vmatpush1.msra.mxu0 %v2278
        %3263 = vmatprep.subr.mxu0 0.0
        %3264 = vmatpush1.msra.mxu0 %v2285
        %3265 = vmatprep.subr.mxu0 0.0
        %3266 = vmatpush1.msra.mxu0 %v2292
        %3267 = vmatprep.subr.mxu0 0.0
        %3268 = vmatpush1.msra.mxu0 %v2299
        %3269 = vmatprep.subr.mxu0 0.0
        %3270 = vmatpush1.msra.mxu0 %v2306
        %3271 = vmatprep.subr.mxu0 0.0
        %3272 = vmatpush1.msra.mxu0 %v2313
        %3273 = vmatprep.subr.mxu0 0.0
        %3274 = vmatpush1.msra.mxu0 %v2320
        %3275 = vmatprep.subr.mxu0 0.0
        %3276 = vmatpush1.msra.mxu0 %v2327
        %3277 = vmatprep.subr.mxu0 0.0
        %3278 = vmatpush1.msra.mxu0 %v2334
        %3279 = vmatprep.subr.mxu0 0.0
        %3280 = vmatpush1.msra.mxu0 %v2341
        %3281 = vmatprep.subr.mxu0 0.0
        %3282 = vmatpush1.msra.mxu0 %v2348
        %3283 = vmatprep.subr.mxu0 0.0
        %3284 = vmatpush1.msra.mxu0 %v2355
        %3285 = vmatprep.subr.mxu0 0.0
        %3286 = vmatpush1.msra.mxu0 %v2362
        %3287 = vmatprep.subr.mxu0 0.0
        %3288 = vmatpush1.msra.mxu0 %v2369
        %3289 = vmatprep.subr.mxu0 0.0
        %3290 = vmatpush1.msra.mxu0 %v2376
        %3291 = vmatprep.subr.mxu0 0.0
        %3292 = vmatpush1.msra.mxu0 %v2383
        %3293 = vmatprep.subr.mxu0 0.0
        %3294 = vmatpush1.msra.mxu0 %v2390
        %3295 = vmatprep.subr.mxu0 0.0
        %3296 = vmatpush1.msra.mxu0 %v2397
        %3297 = vmatprep.subr.mxu0 0.0
        %3298 = vmatpush1.msra.mxu0 %v2404
        %3299 = vmatprep.subr.mxu0 0.0
        %3300 = vmatpush1.msra.mxu0 %v2411
        %3301 = vmatprep.subr.mxu0 0.0
        %3302 = vmatpush1.msra.mxu0 %v2418
        %3303 = vmatprep.subr.mxu0 0.0
        %3304 = vmatpush1.msra.mxu0 %v2425
        %3305 = vmatprep.subr.mxu0 0.0
        %3306 = vmatpush1.msra.mxu0 %v2432
        %3307 = vmatprep.subr.mxu0 0.0
        %3308 = vmatpush1.msra.mxu0 %v2439
        %3309 = vmatprep.subr.mxu0 0.0
        %3310 = vmatpush1.msra.mxu0 %v2446
        %3311 = vmatprep.subr.mxu0 0.0
        %3312 = vmatpush1.msra.mxu0 %v2453
        %3313 = vmatprep.mubr.f32.mxu0 %v2215
        %3314 = vmatmul.mubr.f32.gmra.mrb[0].mxu0 %v2214
        %v3315 = vpop.f32.mrb[0].mxu0
        %v3316 = vadd.f32 %v2707, %v3315
        %v3317 = vpop.f32.mrb[0].mxu0
        %3318 = vmatprep.mubr.f32.mxu0 %v2219
        %3319 = vmatmul.mubr.f32.gmra.mrb[0].mxu0 %v2218
        %v3320 = vpop.f32.mrb[0].mxu0
        %v3321 = vadd.f32 %v2707, %v3320
        %v3322 = vpop.f32.mrb[0].mxu0
        %3323 = vmatprep.mubr.f32.mxu0 %v2223
        %3324 = vmatmul.mubr.f32.gmra.mrb[0].mxu0 %v2222
        %v3325 = vpop.f32.mrb[0].mxu0
        %v3326 = vadd.f32 %v2707, %v3325
        %v3327 = vpop.f32.mrb[0].mxu0
        %3328 = vmatprep.mubr.f32.mxu0 %v2227
        %3329 = vmatmul.mubr.f32.gmra.mrb[0].mxu0 %v2226
        %v3330 = vpop.f32.mrb[0].mxu0
        %v3331 = vadd.f32 %v2707, %v3330
        %v3332 = vpop.f32.mrb[0].mxu0
        %3333 = vdwg.mxu0
        %3334 = vmatprep.subr.mxu0 0.0
        %3335 = vmatpush1.msra.mxu0 %v2460
        %3336 = vmatprep.subr.mxu0 0.0
        %3337 = vmatpush1.msra.mxu0 %v2467
        %3338 = vmatprep.subr.mxu0 0.0
        %3339 = vmatpush1.msra.mxu0 %v2474
        %3340 = vmatprep.subr.mxu0 0.0
        %3341 = vmatpush1.msra.mxu0 %v2481
        %3342 = vmatprep.subr.mxu0 0.0
        %3343 = vmatpush1.msra.mxu0 %v2488
        %3344 = vmatprep.subr.mxu0 0.0
        %3345 = vmatpush1.msra.mxu0 %v2495
        %3346 = vmatprep.subr.mxu0 0.0
        %3347 = vmatpush1.msra.mxu0 %v2502
        %3348 = vmatprep.subr.mxu0 0.0
        %3349 = vmatpush1.msra.mxu0 %v2509
        %3350 = vmatprep.subr.mxu0 0.0
        %3351 = vmatpush1.msra.mxu0 %v2516
        %3352 = vmatprep.subr.mxu0 0.0
        %3353 = vmatpush1.msra.mxu0 %v2523
        %3354 = vmatprep.subr.mxu0 0.0
        %3355 = vmatpush1.msra.mxu0 %v2530
        %3356 = vmatprep.subr.mxu0 0.0
        %3357 = vmatpush1.msra.mxu0 %v2537
        %3358 = vmatprep.subr.mxu0 0.0
        %3359 = vmatpush1.msra.mxu0 %v2544
        %3360 = vmatprep.subr.mxu0 0.0
        %3361 = vmatpush1.msra.mxu0 %v2551
        %3362 = vmatprep.subr.mxu0 0.0
        %3363 = vmatpush1.msra.mxu0 %v2558
        %3364 = vmatprep.subr.mxu0 0.0
        %3365 = vmatpush1.msra.mxu0 %v2565
        %3366 = vmatprep.subr.mxu0 0.0
        %3367 = vmatpush1.msra.mxu0 %v2572
        %3368 = vmatprep.subr.mxu0 0.0
        %3369 = vmatpush1.msra.mxu0 %v2579
        %3370 = vmatprep.subr.mxu0 0.0
        %3371 = vmatpush1.msra.mxu0 %v2586
        %3372 = vmatprep.subr.mxu0 0.0
        %3373 = vmatpush1.msra.mxu0 %v2593
        %3374 = vmatprep.subr.mxu0 0.0
        %3375 = vmatpush1.msra.mxu0 %v2600
        %3376 = vmatprep.subr.mxu0 0.0
        %3377 = vmatpush1.msra.mxu0 %v2607
        %3378 = vmatprep.subr.mxu0 0.0
        %3379 = vmatpush1.msra.mxu0 %v2614
        %3380 = vmatprep.subr.mxu0 0.0
        %3381 = vmatpush1.msra.mxu0 %v2621
        %3382 = vmatprep.subr.mxu0 0.0
        %3383 = vmatpush1.msra.mxu0 %v2628
        %3384 = vmatprep.subr.mxu0 0.0
        %3385 = vmatpush1.msra.mxu0 %v2635
        %3386 = vmatprep.subr.mxu0 0.0
        %3387 = vmatpush1.msra.mxu0 %v2642
        %3388 = vmatprep.subr.mxu0 0.0
        %3389 = vmatpush1.msra.mxu0 %v2649
        %3390 = vmatprep.subr.mxu0 0.0
        %3391 = vmatpush1.msra.mxu0 %v2656
        %3392 = vmatprep.subr.mxu0 0.0
        %3393 = vmatpush1.msra.mxu0 %v2663
        %3394 = vmatprep.subr.mxu0 0.0
        %3395 = vmatpush1.msra.mxu0 %v2670
        %3396 = vmatprep.subr.mxu0 0.0
        %3397 = vmatpush1.msra.mxu0 %v2677
        %3398 = vmatprep.mubr.f32.mxu0 %v2217
        %3399 = vmatmul.mubr.f32.gmra.mrb[0].mxu0 %v2216
        %v3400 = vpop.f32.mrb[0].mxu0
        %v3401 = vadd.f32 %v3316, %v3400
        %v3402 = vpop.f32.mrb[0].mxu0
        %3403 = vmatprep.mubr.f32.mxu0 %v2221
        %3404 = vmatmul.mubr.f32.gmra.mrb[0].mxu0 %v2220
        %v3405 = vpop.f32.mrb[0].mxu0
        %v3406 = vadd.f32 %v3321, %v3405
        %v3407 = vpop.f32.mrb[0].mxu0
        %3408 = vmatprep.mubr.f32.mxu0 %v2225
        %3409 = vmatmul.mubr.f32.gmra.mrb[0].mxu0 %v2224
        %v3410 = vpop.f32.mrb[0].mxu0
        %v3411 = vadd.f32 %v3326, %v3410
        %v3412 = vpop.f32.mrb[0].mxu0
        %3413 = vmatprep.mubr.f32.mxu0 %v2229
        %3414 = vmatmul.mubr.f32.gmra.mrb[0].mxu0 %v2228
        %v3415 = vpop.f32.mrb[0].mxu0
        %v3416 = vadd.f32 %v3331, %v3415
        %v3417 = vpop.f32.mrb[0].mxu0
        %3418 = vdwg.mxu0
        %3419 = vst [vmem:[%s402] sm:$0xff] %v1908
        %3420 = vst [vmem:[%s402 + $0x8] sm:$0xff] %v1910
        %3421 = vst [vmem:[%s402 + $0x10] sm:$0xff] %v1914
        %3422 = vst [vmem:[%s402 + $0x18] sm:$0xff] %v1916
        %3423 = vst [vmem:[%s402 + $0x20] sm:$0xff] %v1920
        %3424 = vst [vmem:[%s402 + $0x28] sm:$0xff] %v1922
        %3425 = vst [vmem:[%s402 + $0x30] sm:$0xff] %v1926
        %3426 = vst [vmem:[%s402 + $0x38] sm:$0xff] %v1928
        %v3427 = vmul.f32 %v2871, 0.5
        %v3428 = vmul.f32 %v2873, 0.5
        %v3429 = vmul.f32 %v3049, 0.5
        %v3430 = vmul.f32 %v3051, 0.5
        %v3431 = vmul.f32 %v3227, 0.5
        %v3432 = vmul.f32 %v3229, 0.5
        %v3433 = vmul.f32 %v3401, 0.5
        %v3434 = vmul.f32 %v2877, 0.5
        %v3435 = vmul.f32 %v2879, 0.5
        %v3436 = vmul.f32 %v3055, 0.5
        %v3437 = vmul.f32 %v3057, 0.5
        %v3438 = vmul.f32 %v3233, 0.5
        %v3439 = vmul.f32 %v3235, 0.5
        %v3440 = vmul.f32 %v3406, 0.5
        %v3441 = vmul.f32 %v2883, 0.5
        %v3442 = vmul.f32 %v2885, 0.5
        %v3443 = vmul.f32 %v3061, 0.5
        %v3444 = vmul.f32 %v3063, 0.5
        %v3445 = vmul.f32 %v3239, 0.5
        %v3446 = vmul.f32 %v3241, 0.5
        %v3447 = vmul.f32 %v3411, 0.5
        %v3448 = vmul.f32 %v2889, 0.5
        %v3449 = vmul.f32 %v2891, 0.5
        %v3450 = vmul.f32 %v3067, 0.5
        %v3451 = vmul.f32 %v3069, 0.5
        %v3452 = vmul.f32 %v3245, 0.5
        %v3453 = vmul.f32 %v3247, 0.5
        %v3454 = vmul.f32 %v3416, 0.5
        %v3455 = vtanh.pop %v3427
        %v3456 = vtanh.pop %v3428
        %v3457 = vtanh.pop %v3429
        %v3458 = vtanh.pop %v3430
        %v3459 = vtanh.pop %v3431
        %v3460 = vtanh.pop %v3432
        %v3461 = vtanh.pop %v3433
        %v3462 = vtanh.pop %v3434
        %v3463 = vtanh.pop %v3435
        %v3464 = vtanh.pop %v3436
        %v3465 = vtanh.pop %v3437
        %v3466 = vtanh.pop %v3438
        %v3467 = vtanh.pop %v3439
        %v3468 = vtanh.pop %v3440
        %v3469 = vtanh.pop %v3441
        %v3470 = vtanh.pop %v3442
        %v3471 = vtanh.pop %v3443
        %v3472 = vtanh.pop %v3444
        %v3473 = vtanh.pop %v3445
        %v3474 = vtanh.pop %v3446
        %v3475 = vtanh.pop %v3447
        %v3476 = vtanh.pop %v3448
        %v3477 = vtanh.pop %v3449
        %v3478 = vtanh.pop %v3450
        %v3479 = vtanh.pop %v3451
        %v3480 = vtanh.pop %v3452
        %v3481 = vtanh.pop %v3453
        %v3482 = vtanh.pop %v3454
        %v3483 = vmul.f32 %v3455, 0.5
        %v3484 = vmul.f32 %v3456, 0.5
        %v3485 = vmul.f32 %v3457, 0.5
        %v3486 = vmul.f32 %v3458, 0.5
        %v3487 = vmul.f32 %v3459, 0.5
        %v3488 = vmul.f32 %v3460, 0.5
        %v3489 = vmul.f32 %v3461, 0.5
        %v3490 = vmul.f32 %v3462, 0.5
        %v3491 = vmul.f32 %v3463, 0.5
        %v3492 = vmul.f32 %v3464, 0.5
        %v3493 = vmul.f32 %v3465, 0.5
        %v3494 = vmul.f32 %v3466, 0.5
        %v3495 = vmul.f32 %v3467, 0.5
        %v3496 = vmul.f32 %v3468, 0.5
        %v3497 = vmul.f32 %v3469, 0.5
        %v3498 = vmul.f32 %v3470, 0.5
        %v3499 = vmul.f32 %v3471, 0.5
        %v3500 = vmul.f32 %v3472, 0.5
        %v3501 = vmul.f32 %v3473, 0.5
        %v3502 = vmul.f32 %v3474, 0.5
        %v3503 = vmul.f32 %v3475, 0.5
        %v3504 = vmul.f32 %v3476, 0.5
        %v3505 = vmul.f32 %v3477, 0.5
        %v3506 = vmul.f32 %v3478, 0.5
        %v3507 = vmul.f32 %v3479, 0.5
        %v3508 = vmul.f32 %v3480, 0.5
        %v3509 = vmul.f32 %v3481, 0.5
        %v3510 = vmul.f32 %v3482, 0.5
        %v3511 = vadd.f32 %v3483, 0.5
        %v3512 = vadd.f32 %v3484, 0.5
        %v3513 = vadd.f32 %v3485, 0.5
        %v3514 = vadd.f32 %v3486, 0.5
        %v3515 = vadd.f32 %v3487, 0.5
        %v3516 = vadd.f32 %v3488, 0.5
        %v3517 = vadd.f32 %v3489, 0.5
        %v3518 = vadd.f32 %v3490, 0.5
        %v3519 = vadd.f32 %v3491, 0.5
        %v3520 = vadd.f32 %v3492, 0.5
        %v3521 = vadd.f32 %v3493, 0.5
        %v3522 = vadd.f32 %v3494, 0.5
        %v3523 = vadd.f32 %v3495, 0.5
        %v3524 = vadd.f32 %v3496, 0.5
        %v3525 = vadd.f32 %v3497, 0.5
        %v3526 = vadd.f32 %v3498, 0.5
        %v3527 = vadd.f32 %v3499, 0.5
        %v3528 = vadd.f32 %v3500, 0.5
        %v3529 = vadd.f32 %v3501, 0.5
        %v3530 = vadd.f32 %v3502, 0.5
        %v3531 = vadd.f32 %v3503, 0.5
        %v3532 = vadd.f32 %v3504, 0.5
        %v3533 = vadd.f32 %v3505, 0.5
        %v3534 = vadd.f32 %v3506, 0.5
        %v3535 = vadd.f32 %v3507, 0.5
        %v3536 = vadd.f32 %v3508, 0.5
        %v3537 = vadd.f32 %v3509, 0.5
        %v3538 = vadd.f32 %v3510, 0.5
        %3539 = vst [vmem:[%s409] sm:$0xff] %v3511
        %3540 = vst [vmem:[%s409 + $0x8] sm:$0xff] %v3512
        %3541 = vst [vmem:[%s409 + $0x10] sm:$0xff] %v3513
        %3542 = vst [vmem:[%s409 + $0x18] sm:$0xff] %v3514
        %3543 = vst [vmem:[%s409 + $0x20] sm:$0xff] %v3515
        %3544 = vst [vmem:[%s409 + $0x28] sm:$0xff] %v3516
        %3545 = vst.msk [vmem:[%s409 + $0x30] sm:$0xff] %vm871, %v3517
        %3546 = vst [vmem:[%s409 + $0x38] sm:$0xff] %v3518
        %3547 = vst [vmem:[%s409 + $0x40] sm:$0xff] %v3519
        %3548 = vst [vmem:[%s409 + $0x48] sm:$0xff] %v3520
        %3549 = vst [vmem:[%s409 + $0x50] sm:$0xff] %v3521
        %3550 = vst [vmem:[%s409 + $0x58] sm:$0xff] %v3522
        %3551 = vst [vmem:[%s409 + $0x60] sm:$0xff] %v3523
        %3552 = vst.msk [vmem:[%s409 + $0x68] sm:$0xff] %vm871, %v3524
        %3553 = vst [vmem:[%s409 + $0x70] sm:$0xff] %v3525
        %3554 = vst [vmem:[%s409 + $0x78] sm:$0xff] %v3526
        %3555 = vst [vmem:[%s409 + $0x80] sm:$0xff] %v3527
        %3556 = vst [vmem:[%s409 + $0x88] sm:$0xff] %v3528
        %3557 = vst [vmem:[%s409 + $0x90] sm:$0xff] %v3529
        %3558 = vst [vmem:[%s409 + $0x98] sm:$0xff] %v3530
        %3559 = vst.msk [vmem:[%s409 + $0xa0] sm:$0xff] %vm871, %v3531
        %3560 = vst [vmem:[%s409 + $0xa8] sm:$0xff] %v3532
        %3561 = vst [vmem:[%s409 + $0xb0] sm:$0xff] %v3533
        %3562 = vst [vmem:[%s409 + $0xb8] sm:$0xff] %v3534
        %3563 = vst [vmem:[%s409 + $0xc0] sm:$0xff] %v3535
        %3564 = vst [vmem:[%s409 + $0xc8] sm:$0xff] %v3536
        %3565 = vst [vmem:[%s409 + $0xd0] sm:$0xff] %v3537
        %3566 = vst.msk [vmem:[%s409 + $0xd8] sm:$0xff] %vm871, %v3538
        %s3567 = sand.u32 %s257, 1
        %s3568 = scalar_lea.sflag [#allocation3], %s3567
        %s3569 = sand.u32 %s257, 1
        %s3570 = smul.addr %s3569, 64
        %s3571 = scalar_lea.vmem [#allocation2], %s3570
        %s3572 = sand.u32 %s283, 1
        %s3573 = scalar_lea.sflag [#allocation5], %s3572
        %s3574 = sand.u32 %s283, 1
        %s3575 = smul.addr %s3574, 224
        %s3576 = scalar_lea.vmem [#allocation4], %s3575
        // Predicated region
        $region61: #{tpu_custom_call.1} parent=59 // pred_check
          %p3577 = pneg %p267
        $region62: #{tpu_custom_call.1} parent=59 // pred_check_branch
          %3579 = sbr.rel (%p3577) target = $region64
        $region63: #{tpu_custom_call.1} parent=59 // pred_region
          %s3580 = smul.u32 4, %s29
          %s3582 = ssub.s32 1024, 1024
          %3583 = vsyncadd %s3568, %s3582
          %s3584 = smul.addr %s3580, 2
          %s3585 = smul.addr %s3584, 128
          %s3586 = scalar_lea.hbm %s10, %s3585
          %s3587 = sshll.u32 %s3571, 4
          %s3588 = int_to_ptr.vmem [resolvable:$true] %s3587
          %3593 = dma.vmem_to_hbm [thread:$0]  %s3588, 1024, %s3586, %s3568, 256, 256, 16
        $region64: #{tpu_custom_call.1} parent=59 // pred_fallthru
          _
        // Predicated region
        $region65: #{tpu_custom_call.1} parent=59 // pred_check
          %p3594 = pneg %p293
        $region66: #{tpu_custom_call.1} parent=59 // pred_check_branch
          %3596 = sbr.rel (%p3594) target = $region68
        $region67: #{tpu_custom_call.1} parent=59 // pred_region
          %s3597 = smul.u32 4, %s29
          %s3599 = ssub.s32 3584, 3584
          %3600 = vsyncadd %s3573, %s3599
          %s3601 = smul.addr %s3597, 7
          %s3602 = smul.addr %s3601, 128
          %s3603 = scalar_lea.hbm %s11, %s3602
          %s3604 = sshll.u32 %s3576, 4
          %s3605 = int_to_ptr.vmem [resolvable:$true] %s3604
          %3610 = dma.vmem_to_hbm [thread:$0]  %s3605, 3584, %s3603, %s3573, 896, 896, 56
        $region68: #{tpu_custom_call.1} parent=59 // pred_fallthru
          _
      $region60: #{tpu_custom_call.1} parent=5 // pred_fallthru
        _
      %p3611 = scmp.le.s32.totalorder 2, %s24
      // Predicated region
      $region69: #{tpu_custom_call.1} parent=5 // pred_check
        %p3612 = pneg %p3611
      $region70: #{tpu_custom_call.1} parent=5 // pred_check_branch
        %3614 = sbr.rel (%p3612) target = $region72
      $region71: #{tpu_custom_call.1} parent=5 // pred_region
        %s3615 = ssub.s32 %s24, 2
        // Predicated region
        $region73: #{tpu_custom_call.1} parent=71 // pred_check
          %p3616 = pneg %p273
        $region74: #{tpu_custom_call.1} parent=71 // pred_check_branch
          %3618 = sbr.rel (%p3616) target = $region76
        $region75: #{tpu_custom_call.1} parent=71 // pred_region
          %s3619 = sand.u32 %s258, 1
          %s3620 = scalar_lea.sflag [#allocation3], %s3619
          %s3621 = sand.u32 %s258, 1
          %s3622 = smul.addr %s3621, 64
          %s3623 = scalar_lea.vmem [#allocation2], %s3622
          %3624 = dma.done %s3620, 1024
        $region76: #{tpu_custom_call.1} parent=71 // pred_fallthru
          _
        // Predicated region
        $region77: #{tpu_custom_call.1} parent=71 // pred_check
          %p3625 = pneg %p299
        $region78: #{tpu_custom_call.1} parent=71 // pred_check_branch
          %3627 = sbr.rel (%p3625) target = $region80
        $region79: #{tpu_custom_call.1} parent=71 // pred_region
          %s3628 = sand.u32 %s284, 1
          %s3629 = scalar_lea.sflag [#allocation5], %s3628
          %s3630 = sand.u32 %s284, 1
          %s3631 = smul.addr %s3630, 224
          %s3632 = scalar_lea.vmem [#allocation4], %s3631
          %3633 = dma.done %s3629, 3584
        $region80: #{tpu_custom_call.1} parent=71 // pred_fallthru
          _
      $region72: #{tpu_custom_call.1} parent=5 // pred_fallthru
        _
    $region6: #{tpu_custom_call.1} parent=1 // loop_footer
      %s28 = sadd.s32 1, %s24
    $region7: #{tpu_custom_call.1} parent=1 // loop_footer_branch
      %23 = sbr.rel target = $region3
    $region8: #{tpu_custom_call.1} parent=1 // loop_exit
      _
    %3634 = vsyncpa [#allocation3], 1
    %s3635 = scalar_lea.sflag [#allocation3], 1
    %3636 = vsyncpa %s3635, 1
    %3637 = vsyncpa [#allocation5], 1
    %s3638 = scalar_lea.sflag [#allocation5], 1
    %3639 = vsyncpa %s3638, 1

</llo_original>
